<compile_context>
chip_gen: v7x
topology: tpu7x:2x2x1
jax: 0.10.0
libtpu: 0.0.40
codegen_flags: <defaults>
</compile_context>

<pallas_src>
import jax
import jax.numpy as jnp
import numpy as np
from jax.experimental import pallas as pl
from jax.experimental.pallas import tpu as pltpu
from jax.scipy.linalg import block_diag


def _round_up(x, m):
    return -(-x // m) * m


# --------------------------------------------------------------------- per-model raw params
def param_specs(Fn, Fe, D, T, n_tasks):
    """(name, per-model shape) in a fixed order (GRU gate columns ordered [r | z | n])."""
    H3 = 3 * D
    return [
        # --- GNN layer 0 (GetContext) ---
        ("Wn", (Fn, D)), ("bn", (1, D)),
        ("We_src", (Fn, D)), ("We_edge", (Fe, D)), ("be", (1, D)),
        ("Wa1_dst", (D, 1)), ("Wa1_e", (D, 1)), ("ba1", (1, 1)),
        ("Wet1", (D, D)), ("bet1", (1, D)),
        ("Wi1", (D, H3)), ("Wh1", (D, H3)), ("bi1", (1, H3)), ("bh1", (1, H3)),
        # --- GNN layer 1 (GNNLayer) ---
        ("Wa2_dst", (D, 1)), ("Wa2_src", (D, 1)), ("ba2", (1, 1)),
        ("Wpn2", (D, D)), ("bpn2", (1, D)),
        ("Wi2", (D, H3)), ("Wh2", (D, H3)), ("bi2", (1, H3)), ("bh2", (1, H3)),
        # --- Readout: T GlobalPool blocks ---
        ("Wr_g", (T, D, 1)), ("Wr_h", (T, D, 1)), ("br", (T, 1, 1)),
        ("Wrp", (T, D, D)), ("brp", (T, 1, D)),
        ("Wri", (T, D, H3)), ("Wrh", (T, D, H3)), ("bri", (T, 1, H3)), ("brh", (T, 1, H3)),
        # --- Predict head ---
        ("Wp", (D, n_tasks)), ("bp", (1, n_tasks)),
    ]


# ---------------------------------------------------------------------- fused-slab layouts
def make_layouts(M, Fn, Fe, D, T, n_tasks):
    """Column layouts (128-aligned) of the packed weight/bias slabs; shared by wrapper+kernel."""
    MDp = _round_up(M * D, 128)                 # per-model-block lane width, padded
    OUTW = _round_up(max(M * n_tasks, 128), 128)
    R_in = max(Fn, Fe)

    def build(spec):
        off, cur = {}, 0
        for name, w in spec:
            off[name] = (cur, w)
            cur += w
        return off, cur

    w128 = build([("Wa1_d", MDp), ("W_he1", 2 * MDp), ("W_hv2", 3 * MDp),
                  ("W_hv3", 2 * MDp * T), ("Wr_g", MDp * T), ("Wp", OUTW)])
    w256 = build([("W_gru1", 4 * MDp), ("W_gru2", 4 * MDp), ("W_grur", 4 * MDp * T)])
    bias = build([("b_x", 2 * MDp), ("b_he1", 2 * MDp), ("b_gru1", 4 * MDp),
                  ("b_hv2", 3 * MDp), ("b_gru2", 4 * MDp), ("b_hv3", 2 * MDp * T),
                  ("b_grur", 4 * MDp * T), ("bp", OUTW)])
    return {"MDp": MDp, "OUTW": OUTW, "R_in": R_in,
            "w128": w128, "w256": w256, "bias": bias}


# ---------------------------------------------------------------------- wrapper-side fusion
def build_fused_params(raw, *, M, Fn, Fe, D, T, n_tasks, layouts):
    """Fuse per-model parameter stacks [M, ...] into four packed, 128-aligned slabs."""
    MDp, OUTW, R_in = layouts["MDp"], layouts["OUTW"], layouts["R_in"]
    f32 = jnp.float32

    def pad_to(a, rows, cols):
        return jnp.pad(a, ((0, rows - a.shape[0]), (0, cols - a.shape[1])))

    def models(name):
        return [raw[name][m] for m in range(M)]

    def models_t(name, t):
        return [raw[name][m, t] for m in range(M)]

    def bd_pad(blocks, rows, cols):             # block-diag over models, zero-padded
        return pad_to(block_diag(*blocks), rows, cols)

    def cat_pad(rows_list, cols):               # per-model [1, c] concat along lanes, padded
        return pad_to(jnp.concatenate(rows_list, axis=1), 1, cols)

    def bcast_bd(cols_list):                    # per-model [D,1] -> D-lane-broadcast block-diag
        return bd_pad([jnp.tile(c, (1, D)) for c in cols_list], MDp, MDp)

    def bcast_bias(b_list):                     # per-model [1,1] -> D-lane-broadcast bias row
        return cat_pad([jnp.tile(b, (1, D)) for b in b_list], MDp)

    def gru_w(Wi_l, Wh_l):
        # fused [x | h] GRU weight: columns = [r_sum | z_sum | gi_n | gh_n], each MDp wide
        def gate(lst, g):
            return bd_pad([w[:, g * D:(g + 1) * D] for w in lst], MDp, MDp)
        zero = jnp.zeros((MDp, MDp), f32)
        top = jnp.concatenate([gate(Wi_l, 0), gate(Wi_l, 1), gate(Wi_l, 2), zero], axis=1)
        bot = jnp.concatenate([gate(Wh_l, 0), gate(Wh_l, 1), zero, gate(Wh_l, 2)], axis=1)
        return jnp.concatenate([top, bot], axis=0)              # [2*MDp, 4*MDp]

    def gru_b(bi_l, bh_l):
        def gate(lst, g):
            return cat_pad([b[:, g * D:(g + 1) * D] for b in lst], MDp)
        return jnp.concatenate([gate(bi_l, 0) + gate(bh_l, 0),
                                gate(bi_l, 1) + gate(bh_l, 1),
                                gate(bi_l, 2), gate(bh_l, 2)], axis=1)   # [1, 4*MDp]

    # shared-input projections: columns = [project_node | project_edge-src | project_edge-feat]
    W_in = jnp.concatenate(
        [pad_to(jnp.concatenate(models("Wn"), axis=1), R_in, MDp),
         pad_to(jnp.concatenate(models("We_src"), axis=1), R_in, MDp),
         pad_to(jnp.concatenate(models("We_edge"), axis=1), R_in, MDp)], axis=1)

    w128 = {
        "Wa1_d": bcast_bd(models("Wa1_dst")),
        # same-LHS fusion on he1: [attention logits (bcast, +ba1 in bias) | edge transform]
        "W_he1": jnp.concatenate([bcast_bd(models("Wa1_e")),
                                  bd_pad(models("Wet1"), MDp, MDp)], axis=1),
        # same-LHS fusion on hv (layer 1): [att_dst | att_src | project_node]
        "W_hv2": jnp.concatenate([bcast_bd(models("Wa2_dst")),
                                  bcast_bd(models("Wa2_src")),
                                  bd_pad(models("Wpn2"), MDp, MDp)], axis=1),
        # same-LHS fusion on hv (readout, all T steps): per-t [Wr_h (bcast) | Wrp]
        "W_hv3": jnp.concatenate(
            [jnp.concatenate([bcast_bd(models_t("Wr_h", t)),
                              bd_pad(models_t("Wrp", t), MDp, MDp)], axis=1)
             for t in range(T)], axis=1),
        "Wr_g": jnp.concatenate([bcast_bd(models_t("Wr_g", t)) for t in range(T)], axis=1),
        "Wp": bd_pad(models("Wp"), MDp, OUTW),
    }
    w256 = {
        "W_gru1": gru_w(models("Wi1"), models("Wh1")),
        "W_gru2": gru_w(models("Wi2"), models("Wh2")),
        "W_grur": jnp.concatenate([gru_w(models_t("Wri", t), models_t("Wrh", t))
                                   for t in range(T)], axis=1),
    }
    bias = {
        "b_x": jnp.concatenate([cat_pad(models("bn"), MDp),
                                cat_pad(models("be"), MDp)], axis=1),
        "b_he1": jnp.concatenate([bcast_bias(models("ba1")),
                                  cat_pad(models("bet1"), MDp)], axis=1),
        "b_gru1": gru_b(models("bi1"), models("bh1")),
        "b_hv2": jnp.concatenate([bcast_bias(models("ba2")),
                                  jnp.zeros((1, MDp), f32),
                                  cat_pad(models("bpn2"), MDp)], axis=1),
        "b_gru2": gru_b(models("bi2"), models("bh2")),
        "b_hv3": jnp.concatenate(
            [jnp.concatenate([bcast_bias(models_t("br", t)),
                              cat_pad(models_t("brp", t), MDp)], axis=1)
             for t in range(T)], axis=1),
        "b_grur": jnp.concatenate([gru_b(models_t("bri", t), models_t("brh", t))
                                   for t in range(T)], axis=1),
        "bp": cat_pad(models("bp"), OUTW),
    }

    def assemble(parts, layout, rows):
        off, total = layout
        cols, cur = [], 0
        for name, (start, width) in off.items():
            assert start == cur and parts[name].shape == (rows, width), name
            cols.append(parts[name])
            cur += width
        assert cur == total
        return jnp.concatenate(cols, axis=1)

    return {"W_in": W_in,
            "W128": assemble(w128, layouts["w128"], MDp),
            "W256": assemble(w256, layouts["w256"], 2 * MDp),
            "B": assemble(bias, layouts["bias"], 1)}


# --------------------------------------------------------------------------------- kernel
def _make_kernel(dims, layouts):
    M, N, Fn, Fe, D, T, n_tasks = dims
    MDp = layouts["MDp"]
    w128_off = layouts["w128"][0]
    w256_off = layouts["w256"][0]
    b_off = layouts["bias"][0]

    def kernel(x_ref, ef_ref, adj_ref, win_ref, w128_ref, w256_ref, b_ref, out_ref):
        lrelu = lambda v: jnp.where(v > 0, v, 0.01 * v)
        relu = lambda v: jnp.maximum(v, 0.0)
        elu = lambda v: jnp.where(v > 0, v, jnp.exp(jnp.minimum(v, 0.0)) - 1.0)
        # exact logistic via EUP tanh (perf review: GRU gates exact; approx recip only for
        # the softmax denominators).
        sigmoid = lambda v: 0.5 * (jnp.tanh(0.5 * v) + 1.0)

        def dot(a, b):
            return jnp.dot(a, b, preferred_element_type=jnp.float32)

        # lazy, point-of-use loads of 128-aligned column blocks of the packed slabs
        def w128(name):
            s, w = w128_off[name]
            return w128_ref[:, s:s + w]

        def w256(name):
            s, w = w256_off[name]
            return w256_ref[:, s:s + w]

        def bias(name):
            s, w = b_off[name]
            return b_ref[:, s:s + w]

        def gru(xx, hh, Wg, bg):
            # single fused matmul over [x | h]; columns = [r_sum | z_sum | gi_n | gh_n]
            gates = dot(jnp.concatenate([xx, hh], axis=1), Wg) + bg
            r = sigmoid(gates[:, 0:MDp])
            z = sigmoid(gates[:, MDp:2 * MDp])
            n = jnp.tanh(gates[:, 2 * MDp:3 * MDp] + r * gates[:, 3 * MDp:4 * MDp])
            return (1.0 - z) * n + z * hh

        m3 = adj_ref[...]                     # [N_src, N_dst, 1]  (src-major, built in wrapper)

        def masked_softmax_src(logits):       # softmax over src = LEADING axis (VPU adds)
            lg = jnp.where(m3 > 0, logits, -1e9)
            mx = jnp.max(lg, axis=0, keepdims=True)
            e = jnp.exp(lg - mx) * m3
            s = jnp.sum(e, axis=0, keepdims=True)
            return e * pl.reciprocal(jnp.maximum(s, 1e-9), approx=True)

        # ---- shared-input projections (all models at once, lane-batched) ----
        x = x_ref[...]                                            # [N, R_in]
        xp = dot(x, win_ref[:, 0:2 * MDp]) + bias("b_x")          # [N, 2*MDp]
        hv = lrelu(xp[:, 0:MDp])                                  # project_node       [N, MDp]
        e_src = xp[:, MDp:2 * MDp]                                # src part (+ be)    [N, MDp]
        e_edge = dot(ef_ref[...], win_ref[:, 2 * MDp:3 * MDp])    # edge part          [N*N, MDp]

        # ---- GNN layer 0 (GetContext): edge attention + AttentiveGRU1, src-major edges ----
        he1 = lrelu(e_src[:, None, :] + e_edge.reshape(N, N, MDp))      # [src, dst, MDp]
        att_msg = dot(he1.reshape(N * N, MDp), w128("W_he1")) + bias("b_he1")
        e_att = att_msg[:, 0:MDp].reshape(N, N, MDp)              # logits (lane-bcast, +ba1)
        msg = att_msg[:, MDp:2 * MDp].reshape(N, N, MDp)          # AttentiveGRU1 edge transform
        dst_att = dot(hv, w128("Wa1_d"))                          # [N_dst, MDp] (lane-bcast)
        a1 = masked_softmax_src(lrelu(dst_att[None, :, :] + e_att))
        ctx = elu(jnp.sum(a1 * msg, axis=0))                      # [N_dst, MDp]
        hv = relu(gru(ctx, hv, w256("W_gru1"), bias("b_gru1")))

        # ---- GNN layer 1: node attention + AttentiveGRU2 (single fused hv matmul) ----
        hv2 = dot(hv, w128("W_hv2")) + bias("b_hv2")              # [N, 3*MDp]
        att_dst = hv2[:, 0:MDp]                                   # (+ ba2)
        att_src = hv2[:, MDp:2 * MDp]
        proj = hv2[:, 2 * MDp:3 * MDp]
        a2 = masked_softmax_src(lrelu(att_dst[None, :, :] + att_src[:, None, :]))
        ctx2 = elu(jnp.sum(a2 * proj[:, None, :], axis=0))        # [N_dst, MDp]
        hv = relu(gru(ctx2, hv, w256("W_gru2"), bias("b_gru2")))

        # ---- Readout: T GlobalPool+GRU steps; hv-dependent matmuls hoisted & fused ----
        hv3 = dot(hv, w128("W_hv3")) + bias("b_hv3")              # [N, T*2*MDp]
        g = jnp.sum(hv, axis=0, keepdims=True)                    # [1, MDp]
        wr_g_s = w128_off["Wr_g"][0]
        wgr_s = w256_off["W_grur"][0]
        bgr_s = b_off["b_grur"][0]
        for t in range(T):   # TODO(synk): convert to lax.fori_loop(unroll=True) if T grows
            hv_att = hv3[:, 2 * MDp * t:2 * MDp * t + MDp]        # hv@Wr_h + br (lane-bcast)
            pn = hv3[:, 2 * MDp * t + MDp:2 * MDp * (t + 1)]      # hv@Wrp + brp
            zt = lrelu(dot(relu(g), w128_ref[:, wr_g_s + MDp * t:wr_g_s + MDp * (t + 1)])
                       + hv_att)                                  # [N, MDp]
            zt = zt - jnp.max(zt, axis=0, keepdims=True)
            a = jnp.exp(zt)
            a = a * pl.reciprocal(jnp.maximum(jnp.sum(a, axis=0, keepdims=True), 1e-9),
                                  approx=True)
            rctx = elu(jnp.sum(a * pn, axis=0, keepdims=True))    # [1, MDp]
            g = relu(gru(rctx, g,
                         w256_ref[:, wgr_s + 4 * MDp * t:wgr_s + 4 * MDp * (t + 1)],
                         b_ref[:, bgr_s + 4 * MDp * t:bgr_s + 4 * MDp * (t + 1)]))

        # ---- prediction head (lane-dense padded output block) ----
        out_ref[...] = dot(g, w128("Wp")) + bias("bp")            # [1, OUTW]

    return kernel


def ensemble_attfp(node_feats, edge_feats, adj, fused, dims, layouts):
    M, N, Fn, Fe, D, T, n_tasks = dims
    OUTW, R_in = layouts["OUTW"], layouts["R_in"]
    # src-major edge layout (row = src*N + dst): src-axis reductions land on the leading axis
    ef_sm = jnp.pad(jnp.transpose(edge_feats, (1, 0, 2)).reshape(N * N, Fe),
                    ((0, 0), (0, R_in - Fe)))
    x = jnp.pad(node_feats, ((0, 0), (0, R_in - Fn)))
    adj_sm = jnp.transpose(adj)[:, :, None]                       # [src, dst, 1]
    inputs = [x, ef_sm, adj_sm, fused["W_in"], fused["W128"], fused["W256"], fused["B"]]

    def full_spec(arr):
        nd = arr.ndim
        return pl.BlockSpec(arr.shape, lambda i, _nd=nd: (0,) * _nd)

    kernel = _make_kernel(dims, layouts)
    out_pad = pl.pallas_call(
        kernel,
        out_shape=jax.ShapeDtypeStruct((1, OUTW), jnp.float32),
        grid=(1,),
        in_specs=[full_spec(a) for a in inputs],
        out_specs=pl.BlockSpec((1, OUTW), lambda i: (0, 0)),
        compiler_params=pltpu.CompilerParams(dimension_semantics=("arbitrary",)),
    )(*inputs)
    # TODO(synk): when scaling N on v7x (64 MiB VMEM, 2 TCs), tile dst rows with a "parallel"
    #   grid axis and set vmem_limit_bytes; the single-block form is fine at these sizes.
    # torch.stack(..., dim=0) with a single graph in the batch -> [M, 1, n_tasks]
    return out_pad[0, :M * n_tasks].reshape(M, 1, n_tasks)


# ------------------------------------------------------------------- pure-JAX reference
def attfp_forward_ref(x, ef, adj, p, *, N, Fn, Fe, D, T, n_tasks):
    """Per-model AttentiveFP forward on the dense graph (independent of the fused kernel
    math; validates the lane-batching / weight-fusion transformations)."""
    lrelu = lambda v: jnp.where(v > 0, v, 0.01 * v)
    relu = lambda v: jnp.maximum(v, 0.0)
    elu = lambda v: jnp.where(v > 0, v, jnp.exp(jnp.minimum(v, 0.0)) - 1.0)
    sigmoid = lambda v: 1.0 / (1.0 + jnp.exp(-v))

    def gru(xx, hh, Wi, Wh, bi, bh):
        gi = jnp.dot(xx, Wi) + bi
        gh = jnp.dot(hh, Wh) + bh
        r = sigmoid(gi[:, 0:D] + gh[:, 0:D])
        z = sigmoid(gi[:, D:2 * D] + gh[:, D:2 * D])
        n = jnp.tanh(gi[:, 2 * D:3 * D] + r * gh[:, 2 * D:3 * D])
        return (1.0 - z) * n + z * hh

    def masked_softmax(logits, mask):
        lg = jnp.where(mask > 0, logits, -1e9)
        m = jnp.max(lg, axis=1, keepdims=True)
        e = jnp.exp(lg - m) * mask
        s = jnp.sum(e, axis=1, keepdims=True)
        return e / jnp.maximum(s, 1e-9)

    hv = lrelu(jnp.dot(x, p["Wn"]) + p["bn"])
    e_src = jnp.dot(x, p["We_src"])
    e_edge = jnp.dot(ef.reshape(N * N, Fe), p["We_edge"]).reshape(N, N, D)
    he1 = lrelu(e_src[None, :, :] + e_edge + p["be"][None, :, :])
    logits1 = lrelu(jnp.dot(hv, p["Wa1_dst"])
                    + jnp.dot(he1.reshape(N * N, D), p["Wa1_e"]).reshape(N, N)
                    + p["ba1"][0, 0])
    a1 = masked_softmax(logits1, adj)
    msg = (jnp.dot(he1.reshape(N * N, D), p["Wet1"]) + p["bet1"]).reshape(N, N, D)
    ctx = elu(jnp.sum(a1[:, :, None] * msg, axis=1))
    hv = relu(gru(ctx, hv, p["Wi1"], p["Wh1"], p["bi1"], p["bh1"]))

    logits2 = lrelu(jnp.dot(hv, p["Wa2_dst"])
                    + jnp.transpose(jnp.dot(hv, p["Wa2_src"]))
                    + p["ba2"][0, 0])
    a2 = masked_softmax(logits2, adj)
    proj = jnp.dot(hv, p["Wpn2"]) + p["bpn2"]
    ctx2 = elu(jnp.dot(a2, proj))
    hv = relu(gru(ctx2, hv, p["Wi2"], p["Wh2"], p["bi2"], p["bh2"]))

    g_feats = jnp.sum(hv, axis=0, keepdims=True)
    for t in range(T):
        z = lrelu(jnp.dot(relu(g_feats), p["Wr_g"][t])
                  + jnp.dot(hv, p["Wr_h"][t]) + p["br"][t, 0, 0])
        z = z - jnp.max(z, axis=0, keepdims=True)
        a = jnp.exp(z)
        a = a / jnp.maximum(jnp.sum(a, axis=0, keepdims=True), 1e-9)
        pn = jnp.dot(hv, p["Wrp"][t]) + p["brp"][t]
        rctx = elu(jnp.sum(a * pn, axis=0, keepdims=True))
        g_feats = relu(gru(rctx, g_feats, p["Wri"][t], p["Wrh"][t], p["bri"][t], p["brh"][t]))

    return jnp.dot(g_feats, p["Wp"]) + p["bp"]


# --------------------------------------------------------------------------------- main
if __name__ == "__main__":
    # small shapes
    M, N, Fn, Fe, D, T, n_tasks = 3, 16, 8, 4, 32, 2, 2
    dims = (M, N, Fn, Fe, D, T, n_tasks)

    key = jax.random.PRNGKey(0)

    # graph: ring + shortcut edges (every node has incoming edges, no self loops)
    adj_np = np.zeros((N, N), np.float32)
    for i in range(N):
        adj_np[i, (i - 1) % N] = 1.0
        adj_np[i, (i + 3) % N] = 1.0
    adj = jnp.asarray(adj_np)

    key, k1, k2 = jax.random.split(key, 3)
    node_feats = jax.random.normal(k1, (N, Fn), dtype=jnp.float32)
    edge_feats = jax.random.normal(k2, (N, N, Fe), dtype=jnp.float32) * adj[:, :, None]

    # deterministic per-model parameters, stacked on a leading model axis
    raw = {}
    for name, shape in param_specs(Fn, Fe, D, T, n_tasks):
        key, sub = jax.random.split(key)
        raw[name] = 0.1 * jax.random.normal(sub, (M,) + shape, dtype=jnp.float32)

    layouts = make_layouts(M, Fn, Fe, D, T, n_tasks)
    fused = build_fused_params(raw, M=M, Fn=Fn, Fe=Fe, D=D, T=T, n_tasks=n_tasks,
                               layouts=layouts)

    out = ensemble_attfp(node_feats, edge_feats, adj, fused, dims, layouts)
    out = jax.block_until_ready(out)

    # independent per-model reference of the same module semantics (torch.stack over models)
    ref = jnp.stack(
        [attfp_forward_ref(node_feats, edge_feats, adj,
                           {n: a[m] for n, a in raw.items()},
                           N=N, Fn=Fn, Fe=Fe, D=D, T=T, n_tasks=n_tasks)
         for m in range(M)], axis=0)
    ref = jax.block_until_ready(ref)

    # Tolerance covers default-precision MXU (bf16-pass) vs XLA reference rounding plus the
    # approx-reciprocal softmax normalizations; any fusion/batching bug would be O(0.1)+.
    np.testing.assert_allclose(np.asarray(out), np.asarray(ref), rtol=2e-2, atol=2e-2)
    assert out.shape == (M, 1, n_tasks)
    print("KERNEL_OK")
</pallas_src>

<mosaic_0001>
module attributes {stable_mosaic.version = 11 : i64} {
  func.func @kernel(%arg0: i32, %arg1: memref<16x8xf32, #tpu.memory_space<vmem>>, %arg2: memref<256x8xf32, #tpu.memory_space<vmem>>, %arg3: memref<16x16x1xf32, #tpu.memory_space<vmem>>, %arg4: memref<8x384xf32, #tpu.memory_space<vmem>>, %arg5: memref<128x1664xf32, #tpu.memory_space<vmem>>, %arg6: memref<256x2048xf32, #tpu.memory_space<vmem>>, %arg7: memref<1x3584xf32, #tpu.memory_space<vmem>>, %arg8: memref<1x128xf32, #tpu.memory_space<vmem>>) attributes {dimension_semantics = [#tpu.dimension_semantics<arbitrary>], iteration_bounds = array<i64: 1>, scalar_prefetch = 0 : i64, scratch_operands = 0 : i64, tpu.core_type = #tpu.core_type<tc>, window_params = [{pipeline_mode = #tpu.pipeline_mode<synchronous>, transform_indices = @transform_0, window_bounds = array<i64: 16, 8>}, {pipeline_mode = #tpu.pipeline_mode<synchronous>, transform_indices = @transform_1, window_bounds = array<i64: 256, 8>}, {pipeline_mode = #tpu.pipeline_mode<synchronous>, transform_indices = @transform_2, window_bounds = array<i64: 16, 16, 1>}, {pipeline_mode = #tpu.pipeline_mode<synchronous>, transform_indices = @transform_3, window_bounds = array<i64: 8, 384>}, {pipeline_mode = #tpu.pipeline_mode<synchronous>, transform_indices = @transform_4, window_bounds = array<i64: 128, 1664>}, {pipeline_mode = #tpu.pipeline_mode<synchronous>, transform_indices = @transform_5, window_bounds = array<i64: 256, 2048>}, {pipeline_mode = #tpu.pipeline_mode<synchronous>, transform_indices = @transform_6, window_bounds = array<i64: 1, 3584>}, {pipeline_mode = #tpu.pipeline_mode<synchronous>, transform_indices = @transform_7, window_bounds = array<i64: 1, 128>}]} {
    %c0 = arith.constant 0 : index
    %c0_0 = arith.constant 0 : index
    %c0_1 = arith.constant 0 : index
    %0 = vector.load %arg3[%c0, %c0_0, %c0_1] : memref<16x16x1xf32, #tpu.memory_space<vmem>>, vector<16x16x1xf32>
    %c0_2 = arith.constant 0 : index
    %c0_3 = arith.constant 0 : index
    %1 = vector.load %arg1[%c0_2, %c0_3] : memref<16x8xf32, #tpu.memory_space<vmem>>, vector<16x8xf32>
    %c0_4 = arith.constant 0 : index
    %c0_5 = arith.constant 0 : index
    %2 = vector.load %arg4[%c0_4, %c0_5] : memref<8x384xf32, #tpu.memory_space<vmem>>, vector<8x256xf32>
    %cst = arith.constant dense<0.000000e+00> : vector<16x256xf32>
    %3 = tpu.matmul %1, %2, %cst {dimension_numbers = #tpu.dot_dimension_numbers<[1], [0], [0], [1], [0, 0, 1, 1], [], []>} : vector<16x8xf32>, vector<8x256xf32>, vector<16x256xf32> -> vector<16x256xf32>
    %c0_6 = arith.constant 0 : index
    %c0_7 = arith.constant 0 : index
    %4 = vector.load %arg7[%c0_6, %c0_7] : memref<1x3584xf32, #tpu.memory_space<vmem>>, vector<1x256xf32>
    %5 = vector.broadcast %4 : vector<1x256xf32> to vector<16x256xf32>
    %6 = arith.addf %3, %5 : vector<16x256xf32>
    %7 = vector.extract_strided_slice %6 {offsets = [0, 0], sizes = [16, 128], strides = [1, 1]} : vector<16x256xf32> to vector<16x128xf32>
    %cst_8 = arith.constant 0.000000e+00 : f32
    %8 = vector.broadcast %cst_8 : f32 to vector<16x128xf32>
    %9 = arith.cmpf ogt, %7, %8 : vector<16x128xf32>
    %cst_9 = arith.constant 0.00999999977 : f32
    %10 = vector.broadcast %cst_9 : f32 to vector<16x128xf32>
    %11 = arith.mulf %10, %7 : vector<16x128xf32>
    %12 = arith.select %9, %7, %11 : vector<16x128xi1>, vector<16x128xf32>
    %13 = vector.extract_strided_slice %6 {offsets = [0, 128], sizes = [16, 128], strides = [1, 1]} : vector<16x256xf32> to vector<16x128xf32>
    %c0_10 = arith.constant 0 : index
    %c0_11 = arith.constant 0 : index
    %14 = vector.load %arg2[%c0_10, %c0_11] : memref<256x8xf32, #tpu.memory_space<vmem>>, vector<256x8xf32>
    %c0_12 = arith.constant 0 : index
    %c256 = arith.constant 256 : index
    %15 = vector.load %arg4[%c0_12, %c256] : memref<8x384xf32, #tpu.memory_space<vmem>>, vector<8x128xf32>
    %cst_13 = arith.constant dense<0.000000e+00> : vector<256x128xf32>
    %16 = tpu.matmul %14, %15, %cst_13 {dimension_numbers = #tpu.dot_dimension_numbers<[1], [0], [0], [1], [0, 0, 1, 1], [], []>} : vector<256x8xf32>, vector<8x128xf32>, vector<256x128xf32> -> vector<256x128xf32>
    %17 = vector.shape_cast %13 : vector<16x128xf32> to vector<16x1x128xf32>
    %18 = vector.shape_cast %16 : vector<256x128xf32> to vector<16x16x128xf32>
    %19 = vector.broadcast %17 : vector<16x1x128xf32> to vector<16x16x128xf32>
    %20 = arith.addf %19, %18 : vector<16x16x128xf32>
    %cst_14 = arith.constant 0.000000e+00 : f32
    %21 = vector.broadcast %cst_14 : f32 to vector<16x16x128xf32>
    %22 = arith.cmpf ogt, %20, %21 : vector<16x16x128xf32>
    %cst_15 = arith.constant 0.00999999977 : f32
    %23 = vector.broadcast %cst_15 : f32 to vector<16x16x128xf32>
    %24 = arith.mulf %23, %20 : vector<16x16x128xf32>
    %25 = arith.select %22, %20, %24 : vector<16x16x128xi1>, vector<16x16x128xf32>
    %26 = vector.shape_cast %25 : vector<16x16x128xf32> to vector<256x128xf32>
    %c0_16 = arith.constant 0 : index
    %c128 = arith.constant 128 : index
    %27 = vector.load %arg5[%c0_16, %c128] : memref<128x1664xf32, #tpu.memory_space<vmem>>, vector<128x256xf32>
    %cst_17 = arith.constant dense<0.000000e+00> : vector<256x256xf32>
    %28 = tpu.matmul %26, %27, %cst_17 {dimension_numbers = #tpu.dot_dimension_numbers<[1], [0], [0], [1], [0, 0, 1, 1], [], []>} : vector<256x128xf32>, vector<128x256xf32>, vector<256x256xf32> -> vector<256x256xf32>
    %c0_18 = arith.constant 0 : index
    %c256_19 = arith.constant 256 : index
    %29 = vector.load %arg7[%c0_18, %c256_19] : memref<1x3584xf32, #tpu.memory_space<vmem>>, vector<1x256xf32>
    %30 = vector.broadcast %29 : vector<1x256xf32> to vector<256x256xf32>
    %31 = arith.addf %28, %30 : vector<256x256xf32>
    %32 = vector.extract_strided_slice %31 {offsets = [0, 0], sizes = [256, 128], strides = [1, 1]} : vector<256x256xf32> to vector<256x128xf32>
    %33 = vector.shape_cast %32 : vector<256x128xf32> to vector<16x16x128xf32>
    %34 = vector.extract_strided_slice %31 {offsets = [0, 128], sizes = [256, 128], strides = [1, 1]} : vector<256x256xf32> to vector<256x128xf32>
    %35 = vector.shape_cast %34 : vector<256x128xf32> to vector<16x16x128xf32>
    %c0_20 = arith.constant 0 : index
    %c0_21 = arith.constant 0 : index
    %36 = vector.load %arg5[%c0_20, %c0_21] : memref<128x1664xf32, #tpu.memory_space<vmem>>, vector<128x128xf32>
    %cst_22 = arith.constant dense<0.000000e+00> : vector<16x128xf32>
    %37 = tpu.matmul %12, %36, %cst_22 {dimension_numbers = #tpu.dot_dimension_numbers<[1], [0], [0], [1], [0, 0, 1, 1], [], []>} : vector<16x128xf32>, vector<128x128xf32>, vector<16x128xf32> -> vector<16x128xf32>
    %38 = vector.shape_cast %37 : vector<16x128xf32> to vector<1x16x128xf32>
    %39 = vector.broadcast %38 : vector<1x16x128xf32> to vector<16x16x128xf32>
    %40 = arith.addf %39, %33 : vector<16x16x128xf32>
    %cst_23 = arith.constant 0.000000e+00 : f32
    %41 = vector.broadcast %cst_23 : f32 to vector<16x16x128xf32>
    %42 = arith.cmpf ogt, %40, %41 : vector<16x16x128xf32>
    %cst_24 = arith.constant 0.00999999977 : f32
    %43 = vector.broadcast %cst_24 : f32 to vector<16x16x128xf32>
    %44 = arith.mulf %43, %40 : vector<16x16x128xf32>
    %45 = arith.select %42, %40, %44 : vector<16x16x128xi1>, vector<16x16x128xf32>
    %cst_25 = arith.constant 0.000000e+00 : f32
    %46 = vector.broadcast %cst_25 : f32 to vector<16x16x1xf32>
    %47 = arith.cmpf ogt, %0, %46 : vector<16x16x1xf32>
    %cst_26 = arith.constant -1.000000e+09 : f32
    %48 = vector.shape_cast %47 : vector<16x16x1xi1> to vector<16x16x1xi1>
    %49 = vector.broadcast %48 : vector<16x16x1xi1> to vector<16x16x128xi1>
    %50 = vector.broadcast %cst_26 : f32 to vector<16x16x128xf32>
    %51 = arith.select %49, %45, %50 : vector<16x16x128xi1>, vector<16x16x128xf32>
    %cst_27 = arith.constant dense<0xFF800000> : vector<16x128xf32>
    %52 = vector.multi_reduction <maximumf>, %51, %cst_27 [0] : vector<16x16x128xf32> to vector<16x128xf32>
    %53 = vector.shape_cast %52 : vector<16x128xf32> to vector<1x16x128xf32>
    %54 = vector.broadcast %53 : vector<1x16x128xf32> to vector<16x16x128xf32>
    %55 = arith.subf %51, %54 : vector<16x16x128xf32>
    %56 = math.exp %55 : vector<16x16x128xf32>
    %57 = vector.broadcast %0 : vector<16x16x1xf32> to vector<16x16x128xf32>
    %58 = arith.mulf %56, %57 : vector<16x16x128xf32>
    %cst_28 = arith.constant dense<0.000000e+00> : vector<16x128xf32>
    %59 = vector.multi_reduction <add>, %58, %cst_28 [0] : vector<16x16x128xf32> to vector<16x128xf32>
    %60 = vector.shape_cast %59 : vector<16x128xf32> to vector<1x16x128xf32>
    %cst_29 = arith.constant 9.99999971E-10 : f32
    %61 = vector.broadcast %cst_29 : f32 to vector<1x16x128xf32>
    %62 = arith.maximumf %60, %61 : vector<1x16x128xf32>
    %63 = tpu.reciprocal %62 {approx = true} : vector<1x16x128xf32> -> vector<1x16x128xf32>
    %64 = vector.broadcast %63 : vector<1x16x128xf32> to vector<16x16x128xf32>
    %65 = arith.mulf %58, %64 : vector<16x16x128xf32>
    %66 = arith.mulf %65, %35 : vector<16x16x128xf32>
    %cst_30 = arith.constant dense<0.000000e+00> : vector<16x128xf32>
    %67 = vector.multi_reduction <add>, %66, %cst_30 [0] : vector<16x16x128xf32> to vector<16x128xf32>
    %cst_31 = arith.constant 0.000000e+00 : f32
    %68 = vector.broadcast %cst_31 : f32 to vector<16x128xf32>
    %69 = arith.cmpf ogt, %67, %68 : vector<16x128xf32>
    %cst_32 = arith.constant 0.000000e+00 : f32
    %70 = vector.broadcast %cst_32 : f32 to vector<16x128xf32>
    %71 = arith.minimumf %67, %70 : vector<16x128xf32>
    %72 = math.exp %71 : vector<16x128xf32>
    %cst_33 = arith.constant 1.000000e+00 : f32
    %73 = vector.broadcast %cst_33 : f32 to vector<16x128xf32>
    %74 = arith.subf %72, %73 : vector<16x128xf32>
    %75 = arith.select %69, %67, %74 : vector<16x128xi1>, vector<16x128xf32>
    %c0_34 = arith.constant 0 : index
    %c0_35 = arith.constant 0 : index
    %76 = vector.load %arg6[%c0_34, %c0_35] : memref<256x2048xf32, #tpu.memory_space<vmem>>, vector<256x512xf32>
    %c0_36 = arith.constant 0 : index
    %c512 = arith.constant 512 : index
    %77 = vector.load %arg7[%c0_36, %c512] : memref<1x3584xf32, #tpu.memory_space<vmem>>, vector<1x512xf32>
    %78 = tpu.concatenate %75, %12 in 1 : vector<16x128xf32>, vector<16x128xf32> -> vector<16x256xf32>
    %cst_37 = arith.constant dense<0.000000e+00> : vector<16x512xf32>
    %79 = tpu.matmul %78, %76, %cst_37 {dimension_numbers = #tpu.dot_dimension_numbers<[1], [0], [0], [1], [0, 0, 1, 1], [], []>} : vector<16x256xf32>, vector<256x512xf32>, vector<16x512xf32> -> vector<16x512xf32>
    %80 = vector.broadcast %77 : vector<1x512xf32> to vector<16x512xf32>
    %81 = arith.addf %79, %80 : vector<16x512xf32>
    %82 = vector.extract_strided_slice %81 {offsets = [0, 0], sizes = [16, 128], strides = [1, 1]} : vector<16x512xf32> to vector<16x128xf32>
    %cst_38 = arith.constant 5.000000e-01 : f32
    %83 = vector.broadcast %cst_38 : f32 to vector<16x128xf32>
    %84 = arith.mulf %83, %82 : vector<16x128xf32>
    %85 = math.tanh %84 : vector<16x128xf32>
    %cst_39 = arith.constant 1.000000e+00 : f32
    %86 = vector.broadcast %cst_39 : f32 to vector<16x128xf32>
    %87 = arith.addf %85, %86 : vector<16x128xf32>
    %cst_40 = arith.constant 5.000000e-01 : f32
    %88 = vector.broadcast %cst_40 : f32 to vector<16x128xf32>
    %89 = arith.mulf %88, %87 : vector<16x128xf32>
    %90 = vector.extract_strided_slice %81 {offsets = [0, 128], sizes = [16, 128], strides = [1, 1]} : vector<16x512xf32> to vector<16x128xf32>
    %cst_41 = arith.constant 5.000000e-01 : f32
    %91 = vector.broadcast %cst_41 : f32 to vector<16x128xf32>
    %92 = arith.mulf %91, %90 : vector<16x128xf32>
    %93 = math.tanh %92 : vector<16x128xf32>
    %cst_42 = arith.constant 1.000000e+00 : f32
    %94 = vector.broadcast %cst_42 : f32 to vector<16x128xf32>
    %95 = arith.addf %93, %94 : vector<16x128xf32>
    %cst_43 = arith.constant 5.000000e-01 : f32
    %96 = vector.broadcast %cst_43 : f32 to vector<16x128xf32>
    %97 = arith.mulf %96, %95 : vector<16x128xf32>
    %98 = vector.extract_strided_slice %81 {offsets = [0, 256], sizes = [16, 128], strides = [1, 1]} : vector<16x512xf32> to vector<16x128xf32>
    %99 = vector.extract_strided_slice %81 {offsets = [0, 384], sizes = [16, 128], strides = [1, 1]} : vector<16x512xf32> to vector<16x128xf32>
    %100 = arith.mulf %89, %99 : vector<16x128xf32>
    %101 = arith.addf %98, %100 : vector<16x128xf32>
    %102 = math.tanh %101 : vector<16x128xf32>
    %cst_44 = arith.constant 1.000000e+00 : f32
    %103 = vector.broadcast %cst_44 : f32 to vector<16x128xf32>
    %104 = arith.subf %103, %97 : vector<16x128xf32>
    %105 = arith.mulf %104, %102 : vector<16x128xf32>
    %106 = arith.mulf %97, %12 : vector<16x128xf32>
    %107 = arith.addf %105, %106 : vector<16x128xf32>
    %cst_45 = arith.constant 0.000000e+00 : f32
    %108 = vector.broadcast %cst_45 : f32 to vector<16x128xf32>
    %109 = arith.maximumf %107, %108 : vector<16x128xf32>
    %c0_46 = arith.constant 0 : index
    %c384 = arith.constant 384 : index
    %110 = vector.load %arg5[%c0_46, %c384] : memref<128x1664xf32, #tpu.memory_space<vmem>>, vector<128x384xf32>
    %cst_47 = arith.constant dense<0.000000e+00> : vector<16x384xf32>
    %111 = tpu.matmul %109, %110, %cst_47 {dimension_numbers = #tpu.dot_dimension_numbers<[1], [0], [0], [1], [0, 0, 1, 1], [], []>} : vector<16x128xf32>, vector<128x384xf32>, vector<16x384xf32> -> vector<16x384xf32>
    %c0_48 = arith.constant 0 : index
    %c1024 = arith.constant 1024 : index
    %112 = vector.load %arg7[%c0_48, %c1024] : memref<1x3584xf32, #tpu.memory_space<vmem>>, vector<1x384xf32>
    %113 = vector.broadcast %112 : vector<1x384xf32> to vector<16x384xf32>
    %114 = arith.addf %111, %113 : vector<16x384xf32>
    %115 = vector.extract_strided_slice %114 {offsets = [0, 0], sizes = [16, 128], strides = [1, 1]} : vector<16x384xf32> to vector<16x128xf32>
    %116 = vector.extract_strided_slice %114 {offsets = [0, 128], sizes = [16, 128], strides = [1, 1]} : vector<16x384xf32> to vector<16x128xf32>
    %117 = vector.extract_strided_slice %114 {offsets = [0, 256], sizes = [16, 128], strides = [1, 1]} : vector<16x384xf32> to vector<16x128xf32>
    %118 = vector.shape_cast %115 : vector<16x128xf32> to vector<1x16x128xf32>
    %119 = vector.shape_cast %116 : vector<16x128xf32> to vector<16x1x128xf32>
    %120 = vector.broadcast %118 : vector<1x16x128xf32> to vector<16x16x128xf32>
    %121 = vector.broadcast %119 : vector<16x1x128xf32> to vector<16x16x128xf32>
    %122 = arith.addf %120, %121 : vector<16x16x128xf32>
    %cst_49 = arith.constant 0.000000e+00 : f32
    %123 = vector.broadcast %cst_49 : f32 to vector<16x16x128xf32>
    %124 = arith.cmpf ogt, %122, %123 : vector<16x16x128xf32>
    %cst_50 = arith.constant 0.00999999977 : f32
    %125 = vector.broadcast %cst_50 : f32 to vector<16x16x128xf32>
    %126 = arith.mulf %125, %122 : vector<16x16x128xf32>
    %127 = arith.select %124, %122, %126 : vector<16x16x128xi1>, vector<16x16x128xf32>
    %cst_51 = arith.constant 0.000000e+00 : f32
    %128 = vector.broadcast %cst_51 : f32 to vector<16x16x1xf32>
    %129 = arith.cmpf ogt, %0, %128 : vector<16x16x1xf32>
    %cst_52 = arith.constant -1.000000e+09 : f32
    %130 = vector.shape_cast %129 : vector<16x16x1xi1> to vector<16x16x1xi1>
    %131 = vector.broadcast %130 : vector<16x16x1xi1> to vector<16x16x128xi1>
    %132 = vector.broadcast %cst_52 : f32 to vector<16x16x128xf32>
    %133 = arith.select %131, %127, %132 : vector<16x16x128xi1>, vector<16x16x128xf32>
    %cst_53 = arith.constant dense<0xFF800000> : vector<16x128xf32>
    %134 = vector.multi_reduction <maximumf>, %133, %cst_53 [0] : vector<16x16x128xf32> to vector<16x128xf32>
    %135 = vector.shape_cast %134 : vector<16x128xf32> to vector<1x16x128xf32>
    %136 = vector.broadcast %135 : vector<1x16x128xf32> to vector<16x16x128xf32>
    %137 = arith.subf %133, %136 : vector<16x16x128xf32>
    %138 = math.exp %137 : vector<16x16x128xf32>
    %139 = vector.broadcast %0 : vector<16x16x1xf32> to vector<16x16x128xf32>
    %140 = arith.mulf %138, %139 : vector<16x16x128xf32>
    %cst_54 = arith.constant dense<0.000000e+00> : vector<16x128xf32>
    %141 = vector.multi_reduction <add>, %140, %cst_54 [0] : vector<16x16x128xf32> to vector<16x128xf32>
    %142 = vector.shape_cast %141 : vector<16x128xf32> to vector<1x16x128xf32>
    %cst_55 = arith.constant 9.99999971E-10 : f32
    %143 = vector.broadcast %cst_55 : f32 to vector<1x16x128xf32>
    %144 = arith.maximumf %142, %143 : vector<1x16x128xf32>
    %145 = tpu.reciprocal %144 {approx = true} : vector<1x16x128xf32> -> vector<1x16x128xf32>
    %146 = vector.broadcast %145 : vector<1x16x128xf32> to vector<16x16x128xf32>
    %147 = arith.mulf %140, %146 : vector<16x16x128xf32>
    %148 = vector.shape_cast %117 : vector<16x128xf32> to vector<16x1x128xf32>
    %149 = vector.broadcast %148 : vector<16x1x128xf32> to vector<16x16x128xf32>
    %150 = arith.mulf %147, %149 : vector<16x16x128xf32>
    %cst_56 = arith.constant dense<0.000000e+00> : vector<16x128xf32>
    %151 = vector.multi_reduction <add>, %150, %cst_56 [0] : vector<16x16x128xf32> to vector<16x128xf32>
    %cst_57 = arith.constant 0.000000e+00 : f32
    %152 = vector.broadcast %cst_57 : f32 to vector<16x128xf32>
    %153 = arith.cmpf ogt, %151, %152 : vector<16x128xf32>
    %cst_58 = arith.constant 0.000000e+00 : f32
    %154 = vector.broadcast %cst_58 : f32 to vector<16x128xf32>
    %155 = arith.minimumf %151, %154 : vector<16x128xf32>
    %156 = math.exp %155 : vector<16x128xf32>
    %cst_59 = arith.constant 1.000000e+00 : f32
    %157 = vector.broadcast %cst_59 : f32 to vector<16x128xf32>
    %158 = arith.subf %156, %157 : vector<16x128xf32>
    %159 = arith.select %153, %151, %158 : vector<16x128xi1>, vector<16x128xf32>
    %c0_60 = arith.constant 0 : index
    %c512_61 = arith.constant 512 : index
    %160 = vector.load %arg6[%c0_60, %c512_61] : memref<256x2048xf32, #tpu.memory_space<vmem>>, vector<256x512xf32>
    %c0_62 = arith.constant 0 : index
    %c1408 = arith.constant 1408 : index
    %161 = vector.load %arg7[%c0_62, %c1408] : memref<1x3584xf32, #tpu.memory_space<vmem>>, vector<1x512xf32>
    %162 = tpu.concatenate %159, %109 in 1 : vector<16x128xf32>, vector<16x128xf32> -> vector<16x256xf32>
    %cst_63 = arith.constant dense<0.000000e+00> : vector<16x512xf32>
    %163 = tpu.matmul %162, %160, %cst_63 {dimension_numbers = #tpu.dot_dimension_numbers<[1], [0], [0], [1], [0, 0, 1, 1], [], []>} : vector<16x256xf32>, vector<256x512xf32>, vector<16x512xf32> -> vector<16x512xf32>
    %164 = vector.broadcast %161 : vector<1x512xf32> to vector<16x512xf32>
    %165 = arith.addf %163, %164 : vector<16x512xf32>
    %166 = vector.extract_strided_slice %165 {offsets = [0, 0], sizes = [16, 128], strides = [1, 1]} : vector<16x512xf32> to vector<16x128xf32>
    %cst_64 = arith.constant 5.000000e-01 : f32
    %167 = vector.broadcast %cst_64 : f32 to vector<16x128xf32>
    %168 = arith.mulf %167, %166 : vector<16x128xf32>
    %169 = math.tanh %168 : vector<16x128xf32>
    %cst_65 = arith.constant 1.000000e+00 : f32
    %170 = vector.broadcast %cst_65 : f32 to vector<16x128xf32>
    %171 = arith.addf %169, %170 : vector<16x128xf32>
    %cst_66 = arith.constant 5.000000e-01 : f32
    %172 = vector.broadcast %cst_66 : f32 to vector<16x128xf32>
    %173 = arith.mulf %172, %171 : vector<16x128xf32>
    %174 = vector.extract_strided_slice %165 {offsets = [0, 128], sizes = [16, 128], strides = [1, 1]} : vector<16x512xf32> to vector<16x128xf32>
    %cst_67 = arith.constant 5.000000e-01 : f32
    %175 = vector.broadcast %cst_67 : f32 to vector<16x128xf32>
    %176 = arith.mulf %175, %174 : vector<16x128xf32>
    %177 = math.tanh %176 : vector<16x128xf32>
    %cst_68 = arith.constant 1.000000e+00 : f32
    %178 = vector.broadcast %cst_68 : f32 to vector<16x128xf32>
    %179 = arith.addf %177, %178 : vector<16x128xf32>
    %cst_69 = arith.constant 5.000000e-01 : f32
    %180 = vector.broadcast %cst_69 : f32 to vector<16x128xf32>
    %181 = arith.mulf %180, %179 : vector<16x128xf32>
    %182 = vector.extract_strided_slice %165 {offsets = [0, 256], sizes = [16, 128], strides = [1, 1]} : vector<16x512xf32> to vector<16x128xf32>
    %183 = vector.extract_strided_slice %165 {offsets = [0, 384], sizes = [16, 128], strides = [1, 1]} : vector<16x512xf32> to vector<16x128xf32>
    %184 = arith.mulf %173, %183 : vector<16x128xf32>
    %185 = arith.addf %182, %184 : vector<16x128xf32>
    %186 = math.tanh %185 : vector<16x128xf32>
    %cst_70 = arith.constant 1.000000e+00 : f32
    %187 = vector.broadcast %cst_70 : f32 to vector<16x128xf32>
    %188 = arith.subf %187, %181 : vector<16x128xf32>
    %189 = arith.mulf %188, %186 : vector<16x128xf32>
    %190 = arith.mulf %181, %109 : vector<16x128xf32>
    %191 = arith.addf %189, %190 : vector<16x128xf32>
    %cst_71 = arith.constant 0.000000e+00 : f32
    %192 = vector.broadcast %cst_71 : f32 to vector<16x128xf32>
    %193 = arith.maximumf %191, %192 : vector<16x128xf32>
    %c0_72 = arith.constant 0 : index
    %c768 = arith.constant 768 : index
    %194 = vector.load %arg5[%c0_72, %c768] : memref<128x1664xf32, #tpu.memory_space<vmem>>, vector<128x512xf32>
    %cst_73 = arith.constant dense<0.000000e+00> : vector<16x512xf32>
    %195 = tpu.matmul %193, %194, %cst_73 {dimension_numbers = #tpu.dot_dimension_numbers<[1], [0], [0], [1], [0, 0, 1, 1], [], []>} : vector<16x128xf32>, vector<128x512xf32>, vector<16x512xf32> -> vector<16x512xf32>
    %c0_74 = arith.constant 0 : index
    %c1920 = arith.constant 1920 : index
    %196 = vector.load %arg7[%c0_74, %c1920] : memref<1x3584xf32, #tpu.memory_space<vmem>>, vector<1x512xf32>
    %197 = vector.broadcast %196 : vector<1x512xf32> to vector<16x512xf32>
    %198 = arith.addf %195, %197 : vector<16x512xf32>
    %cst_75 = arith.constant dense<0.000000e+00> : vector<128xf32>
    %199 = vector.multi_reduction <add>, %193, %cst_75 [0] : vector<16x128xf32> to vector<128xf32>
    %200 = vector.shape_cast %199 : vector<128xf32> to vector<1x128xf32>
    %201 = vector.extract_strided_slice %198 {offsets = [0, 0], sizes = [16, 128], strides = [1, 1]} : vector<16x512xf32> to vector<16x128xf32>
    %202 = vector.extract_strided_slice %198 {offsets = [0, 128], sizes = [16, 128], strides = [1, 1]} : vector<16x512xf32> to vector<16x128xf32>
    %cst_76 = arith.constant 0.000000e+00 : f32
    %203 = vector.broadcast %cst_76 : f32 to vector<1x128xf32>
    %204 = arith.maximumf %200, %203 : vector<1x128xf32>
    %c0_77 = arith.constant 0 : index
    %c1280 = arith.constant 1280 : index
    %205 = vector.load %arg5[%c0_77, %c1280] : memref<128x1664xf32, #tpu.memory_space<vmem>>, vector<128x128xf32>
    %cst_78 = arith.constant dense<0.000000e+00> : vector<1x128xf32>
    %206 = tpu.matmul %204, %205, %cst_78 {dimension_numbers = #tpu.dot_dimension_numbers<[1], [0], [0], [1], [0, 0, 1, 1], [], []>} : vector<1x128xf32>, vector<128x128xf32>, vector<1x128xf32> -> vector<1x128xf32>
    %207 = vector.broadcast %206 : vector<1x128xf32> to vector<16x128xf32>
    %208 = arith.addf %207, %201 : vector<16x128xf32>
    %cst_79 = arith.constant 0.000000e+00 : f32
    %209 = vector.broadcast %cst_79 : f32 to vector<16x128xf32>
    %210 = arith.cmpf ogt, %208, %209 : vector<16x128xf32>
    %cst_80 = arith.constant 0.00999999977 : f32
    %211 = vector.broadcast %cst_80 : f32 to vector<16x128xf32>
    %212 = arith.mulf %211, %208 : vector<16x128xf32>
    %213 = arith.select %210, %208, %212 : vector<16x128xi1>, vector<16x128xf32>
    %cst_81 = arith.constant dense<0xFF800000> : vector<128xf32>
    %214 = vector.multi_reduction <maximumf>, %213, %cst_81 [0] : vector<16x128xf32> to vector<128xf32>
    %215 = vector.shape_cast %214 : vector<128xf32> to vector<1x128xf32>
    %216 = vector.broadcast %215 : vector<1x128xf32> to vector<16x128xf32>
    %217 = arith.subf %213, %216 : vector<16x128xf32>
    %218 = math.exp %217 : vector<16x128xf32>
    %cst_82 = arith.constant dense<0.000000e+00> : vector<128xf32>
    %219 = vector.multi_reduction <add>, %218, %cst_82 [0] : vector<16x128xf32> to vector<128xf32>
    %220 = vector.shape_cast %219 : vector<128xf32> to vector<1x128xf32>
    %cst_83 = arith.constant 9.99999971E-10 : f32
    %221 = vector.broadcast %cst_83 : f32 to vector<1x128xf32>
    %222 = arith.maximumf %220, %221 : vector<1x128xf32>
    %223 = tpu.reciprocal %222 {approx = true} : vector<1x128xf32> -> vector<1x128xf32>
    %224 = vector.broadcast %223 : vector<1x128xf32> to vector<16x128xf32>
    %225 = arith.mulf %218, %224 : vector<16x128xf32>
    %226 = arith.mulf %225, %202 : vector<16x128xf32>
    %cst_84 = arith.constant dense<0.000000e+00> : vector<128xf32>
    %227 = vector.multi_reduction <add>, %226, %cst_84 [0] : vector<16x128xf32> to vector<128xf32>
    %228 = vector.shape_cast %227 : vector<128xf32> to vector<1x128xf32>
    %cst_85 = arith.constant 0.000000e+00 : f32
    %229 = vector.broadcast %cst_85 : f32 to vector<1x128xf32>
    %230 = arith.cmpf ogt, %228, %229 : vector<1x128xf32>
    %cst_86 = arith.constant 0.000000e+00 : f32
    %231 = vector.broadcast %cst_86 : f32 to vector<1x128xf32>
    %232 = arith.minimumf %228, %231 : vector<1x128xf32>
    %233 = math.exp %232 : vector<1x128xf32>
    %cst_87 = arith.constant 1.000000e+00 : f32
    %234 = vector.broadcast %cst_87 : f32 to vector<1x128xf32>
    %235 = arith.subf %233, %234 : vector<1x128xf32>
    %236 = arith.select %230, %228, %235 : vector<1x128xi1>, vector<1x128xf32>
    %c0_88 = arith.constant 0 : index
    %c1024_89 = arith.constant 1024 : index
    %237 = vector.load %arg6[%c0_88, %c1024_89] : memref<256x2048xf32, #tpu.memory_space<vmem>>, vector<256x512xf32>
    %c0_90 = arith.constant 0 : index
    %c2432 = arith.constant 2432 : index
    %238 = vector.load %arg7[%c0_90, %c2432] : memref<1x3584xf32, #tpu.memory_space<vmem>>, vector<1x512xf32>
    %239 = tpu.concatenate %236, %200 in 1 : vector<1x128xf32>, vector<1x128xf32> -> vector<1x256xf32>
    %cst_91 = arith.constant dense<0.000000e+00> : vector<1x512xf32>
    %240 = tpu.matmul %239, %237, %cst_91 {dimension_numbers = #tpu.dot_dimension_numbers<[1], [0], [0], [1], [0, 0, 1, 1], [], []>} : vector<1x256xf32>, vector<256x512xf32>, vector<1x512xf32> -> vector<1x512xf32>
    %241 = arith.addf %240, %238 : vector<1x512xf32>
    %242 = vector.extract_strided_slice %241 {offsets = [0, 0], sizes = [1, 128], strides = [1, 1]} : vector<1x512xf32> to vector<1x128xf32>
    %cst_92 = arith.constant 5.000000e-01 : f32
    %243 = vector.broadcast %cst_92 : f32 to vector<1x128xf32>
    %244 = arith.mulf %243, %242 : vector<1x128xf32>
    %245 = math.tanh %244 : vector<1x128xf32>
    %cst_93 = arith.constant 1.000000e+00 : f32
    %246 = vector.broadcast %cst_93 : f32 to vector<1x128xf32>
    %247 = arith.addf %245, %246 : vector<1x128xf32>
    %cst_94 = arith.constant 5.000000e-01 : f32
    %248 = vector.broadcast %cst_94 : f32 to vector<1x128xf32>
    %249 = arith.mulf %248, %247 : vector<1x128xf32>
    %250 = vector.extract_strided_slice %241 {offsets = [0, 128], sizes = [1, 128], strides = [1, 1]} : vector<1x512xf32> to vector<1x128xf32>
    %cst_95 = arith.constant 5.000000e-01 : f32
    %251 = vector.broadcast %cst_95 : f32 to vector<1x128xf32>
    %252 = arith.mulf %251, %250 : vector<1x128xf32>
    %253 = math.tanh %252 : vector<1x128xf32>
    %cst_96 = arith.constant 1.000000e+00 : f32
    %254 = vector.broadcast %cst_96 : f32 to vector<1x128xf32>
    %255 = arith.addf %253, %254 : vector<1x128xf32>
    %cst_97 = arith.constant 5.000000e-01 : f32
    %256 = vector.broadcast %cst_97 : f32 to vector<1x128xf32>
    %257 = arith.mulf %256, %255 : vector<1x128xf32>
    %258 = vector.extract_strided_slice %241 {offsets = [0, 256], sizes = [1, 128], strides = [1, 1]} : vector<1x512xf32> to vector<1x128xf32>
    %259 = vector.extract_strided_slice %241 {offsets = [0, 384], sizes = [1, 128], strides = [1, 1]} : vector<1x512xf32> to vector<1x128xf32>
    %260 = arith.mulf %249, %259 : vector<1x128xf32>
    %261 = arith.addf %258, %260 : vector<1x128xf32>
    %262 = math.tanh %261 : vector<1x128xf32>
    %cst_98 = arith.constant 1.000000e+00 : f32
    %263 = vector.broadcast %cst_98 : f32 to vector<1x128xf32>
    %264 = arith.subf %263, %257 : vector<1x128xf32>
    %265 = arith.mulf %264, %262 : vector<1x128xf32>
    %266 = arith.mulf %257, %200 : vector<1x128xf32>
    %267 = arith.addf %265, %266 : vector<1x128xf32>
    %cst_99 = arith.constant 0.000000e+00 : f32
    %268 = vector.broadcast %cst_99 : f32 to vector<1x128xf32>
    %269 = arith.maximumf %267, %268 : vector<1x128xf32>
    %270 = vector.extract_strided_slice %198 {offsets = [0, 256], sizes = [16, 128], strides = [1, 1]} : vector<16x512xf32> to vector<16x128xf32>
    %271 = vector.extract_strided_slice %198 {offsets = [0, 384], sizes = [16, 128], strides = [1, 1]} : vector<16x512xf32> to vector<16x128xf32>
    %cst_100 = arith.constant 0.000000e+00 : f32
    %272 = vector.broadcast %cst_100 : f32 to vector<1x128xf32>
    %273 = arith.maximumf %269, %272 : vector<1x128xf32>
    %c0_101 = arith.constant 0 : index
    %c1408_102 = arith.constant 1408 : index
    %274 = vector.load %arg5[%c0_101, %c1408_102] : memref<128x1664xf32, #tpu.memory_space<vmem>>, vector<128x128xf32>
    %cst_103 = arith.constant dense<0.000000e+00> : vector<1x128xf32>
    %275 = tpu.matmul %273, %274, %cst_103 {dimension_numbers = #tpu.dot_dimension_numbers<[1], [0], [0], [1], [0, 0, 1, 1], [], []>} : vector<1x128xf32>, vector<128x128xf32>, vector<1x128xf32> -> vector<1x128xf32>
    %276 = vector.broadcast %275 : vector<1x128xf32> to vector<16x128xf32>
    %277 = arith.addf %276, %270 : vector<16x128xf32>
    %cst_104 = arith.constant 0.000000e+00 : f32
    %278 = vector.broadcast %cst_104 : f32 to vector<16x128xf32>
    %279 = arith.cmpf ogt, %277, %278 : vector<16x128xf32>
    %cst_105 = arith.constant 0.00999999977 : f32
    %280 = vector.broadcast %cst_105 : f32 to vector<16x128xf32>
    %281 = arith.mulf %280, %277 : vector<16x128xf32>
    %282 = arith.select %279, %277, %281 : vector<16x128xi1>, vector<16x128xf32>
    %cst_106 = arith.constant dense<0xFF800000> : vector<128xf32>
    %283 = vector.multi_reduction <maximumf>, %282, %cst_106 [0] : vector<16x128xf32> to vector<128xf32>
    %284 = vector.shape_cast %283 : vector<128xf32> to vector<1x128xf32>
    %285 = vector.broadcast %284 : vector<1x128xf32> to vector<16x128xf32>
    %286 = arith.subf %282, %285 : vector<16x128xf32>
    %287 = math.exp %286 : vector<16x128xf32>
    %cst_107 = arith.constant dense<0.000000e+00> : vector<128xf32>
    %288 = vector.multi_reduction <add>, %287, %cst_107 [0] : vector<16x128xf32> to vector<128xf32>
    %289 = vector.shape_cast %288 : vector<128xf32> to vector<1x128xf32>
    %cst_108 = arith.constant 9.99999971E-10 : f32
    %290 = vector.broadcast %cst_108 : f32 to vector<1x128xf32>
    %291 = arith.maximumf %289, %290 : vector<1x128xf32>
    %292 = tpu.reciprocal %291 {approx = true} : vector<1x128xf32> -> vector<1x128xf32>
    %293 = vector.broadcast %292 : vector<1x128xf32> to vector<16x128xf32>
    %294 = arith.mulf %287, %293 : vector<16x128xf32>
    %295 = arith.mulf %294, %271 : vector<16x128xf32>
    %cst_109 = arith.constant dense<0.000000e+00> : vector<128xf32>
    %296 = vector.multi_reduction <add>, %295, %cst_109 [0] : vector<16x128xf32> to vector<128xf32>
    %297 = vector.shape_cast %296 : vector<128xf32> to vector<1x128xf32>
    %cst_110 = arith.constant 0.000000e+00 : f32
    %298 = vector.broadcast %cst_110 : f32 to vector<1x128xf32>
    %299 = arith.cmpf ogt, %297, %298 : vector<1x128xf32>
    %cst_111 = arith.constant 0.000000e+00 : f32
    %300 = vector.broadcast %cst_111 : f32 to vector<1x128xf32>
    %301 = arith.minimumf %297, %300 : vector<1x128xf32>
    %302 = math.exp %301 : vector<1x128xf32>
    %cst_112 = arith.constant 1.000000e+00 : f32
    %303 = vector.broadcast %cst_112 : f32 to vector<1x128xf32>
    %304 = arith.subf %302, %303 : vector<1x128xf32>
    %305 = arith.select %299, %297, %304 : vector<1x128xi1>, vector<1x128xf32>
    %c0_113 = arith.constant 0 : index
    %c1536 = arith.constant 1536 : index
    %306 = vector.load %arg6[%c0_113, %c1536] : memref<256x2048xf32, #tpu.memory_space<vmem>>, vector<256x512xf32>
    %c0_114 = arith.constant 0 : index
    %c2944 = arith.constant 2944 : index
    %307 = vector.load %arg7[%c0_114, %c2944] : memref<1x3584xf32, #tpu.memory_space<vmem>>, vector<1x512xf32>
    %308 = tpu.concatenate %305, %269 in 1 : vector<1x128xf32>, vector<1x128xf32> -> vector<1x256xf32>
    %cst_115 = arith.constant dense<0.000000e+00> : vector<1x512xf32>
    %309 = tpu.matmul %308, %306, %cst_115 {dimension_numbers = #tpu.dot_dimension_numbers<[1], [0], [0], [1], [0, 0, 1, 1], [], []>} : vector<1x256xf32>, vector<256x512xf32>, vector<1x512xf32> -> vector<1x512xf32>
    %310 = arith.addf %309, %307 : vector<1x512xf32>
    %311 = vector.extract_strided_slice %310 {offsets = [0, 0], sizes = [1, 128], strides = [1, 1]} : vector<1x512xf32> to vector<1x128xf32>
    %cst_116 = arith.constant 5.000000e-01 : f32
    %312 = vector.broadcast %cst_116 : f32 to vector<1x128xf32>
    %313 = arith.mulf %312, %311 : vector<1x128xf32>
    %314 = math.tanh %313 : vector<1x128xf32>
    %cst_117 = arith.constant 1.000000e+00 : f32
    %315 = vector.broadcast %cst_117 : f32 to vector<1x128xf32>
    %316 = arith.addf %314, %315 : vector<1x128xf32>
    %cst_118 = arith.constant 5.000000e-01 : f32
    %317 = vector.broadcast %cst_118 : f32 to vector<1x128xf32>
    %318 = arith.mulf %317, %316 : vector<1x128xf32>
    %319 = vector.extract_strided_slice %310 {offsets = [0, 128], sizes = [1, 128], strides = [1, 1]} : vector<1x512xf32> to vector<1x128xf32>
    %cst_119 = arith.constant 5.000000e-01 : f32
    %320 = vector.broadcast %cst_119 : f32 to vector<1x128xf32>
    %321 = arith.mulf %320, %319 : vector<1x128xf32>
    %322 = math.tanh %321 : vector<1x128xf32>
    %cst_120 = arith.constant 1.000000e+00 : f32
    %323 = vector.broadcast %cst_120 : f32 to vector<1x128xf32>
    %324 = arith.addf %322, %323 : vector<1x128xf32>
    %cst_121 = arith.constant 5.000000e-01 : f32
    %325 = vector.broadcast %cst_121 : f32 to vector<1x128xf32>
    %326 = arith.mulf %325, %324 : vector<1x128xf32>
    %327 = vector.extract_strided_slice %310 {offsets = [0, 256], sizes = [1, 128], strides = [1, 1]} : vector<1x512xf32> to vector<1x128xf32>
    %328 = vector.extract_strided_slice %310 {offsets = [0, 384], sizes = [1, 128], strides = [1, 1]} : vector<1x512xf32> to vector<1x128xf32>
    %329 = arith.mulf %318, %328 : vector<1x128xf32>
    %330 = arith.addf %327, %329 : vector<1x128xf32>
    %331 = math.tanh %330 : vector<1x128xf32>
    %cst_122 = arith.constant 1.000000e+00 : f32
    %332 = vector.broadcast %cst_122 : f32 to vector<1x128xf32>
    %333 = arith.subf %332, %326 : vector<1x128xf32>
    %334 = arith.mulf %333, %331 : vector<1x128xf32>
    %335 = arith.mulf %326, %269 : vector<1x128xf32>
    %336 = arith.addf %334, %335 : vector<1x128xf32>
    %cst_123 = arith.constant 0.000000e+00 : f32
    %337 = vector.broadcast %cst_123 : f32 to vector<1x128xf32>
    %338 = arith.maximumf %336, %337 : vector<1x128xf32>
    %c0_124 = arith.constant 0 : index
    %c1536_125 = arith.constant 1536 : index
    %339 = vector.load %arg5[%c0_124, %c1536_125] : memref<128x1664xf32, #tpu.memory_space<vmem>>, vector<128x128xf32>
    %cst_126 = arith.constant dense<0.000000e+00> : vector<1x128xf32>
    %340 = tpu.matmul %338, %339, %cst_126 {dimension_numbers = #tpu.dot_dimension_numbers<[1], [0], [0], [1], [0, 0, 1, 1], [], []>} : vector<1x128xf32>, vector<128x128xf32>, vector<1x128xf32> -> vector<1x128xf32>
    %c0_127 = arith.constant 0 : index
    %c3456 = arith.constant 3456 : index
    %341 = vector.load %arg7[%c0_127, %c3456] : memref<1x3584xf32, #tpu.memory_space<vmem>>, vector<1x128xf32>
    %342 = arith.addf %340, %341 : vector<1x128xf32>
    %c0_128 = arith.constant 0 : index
    %c0_129 = arith.constant 0 : index
    %343 = vector.load %arg8[%c0_128, %c0_129] : memref<1x128xf32, #tpu.memory_space<vmem>>, vector<1x128xf32>
    tpu.vector_store %arg8[%c0_128, %c0_129], %342 {strides = array<i32>} : memref<1x128xf32, #tpu.memory_space<vmem>>, vector<1x128xf32>,
    return
  }
  func.func @transform_0(%arg0: i32) -> (i32, i32) {
    %c0_i32 = arith.constant 0 : i32
    %c0_i32_0 = arith.constant 0 : i32
    %c0_i32_1 = arith.constant 0 : i32
    return %c0_i32, %c0_i32_0 : i32, i32
  }
  func.func @transform_1(%arg0: i32) -> (i32, i32) {
    %c0_i32 = arith.constant 0 : i32
    %c0_i32_0 = arith.constant 0 : i32
    %c0_i32_1 = arith.constant 0 : i32
    return %c0_i32, %c0_i32_0 : i32, i32
  }
  func.func @transform_2(%arg0: i32) -> (i32, i32, i32) {
    %c0_i32 = arith.constant 0 : i32
    %c0_i32_0 = arith.constant 0 : i32
    %c0_i32_1 = arith.constant 0 : i32
    %c0_i32_2 = arith.constant 0 : i32
    return %c0_i32, %c0_i32_0, %c0_i32_1 : i32, i32, i32
  }
  func.func @transform_3(%arg0: i32) -> (i32, i32) {
    %c0_i32 = arith.constant 0 : i32
    %c0_i32_0 = arith.constant 0 : i32
    %c0_i32_1 = arith.constant 0 : i32
    return %c0_i32, %c0_i32_0 : i32, i32
  }
  func.func @transform_4(%arg0: i32) -> (i32, i32) {
    %c0_i32 = arith.constant 0 : i32
    %c0_i32_0 = arith.constant 0 : i32
    %c0_i32_1 = arith.constant 0 : i32
    return %c0_i32, %c0_i32_0 : i32, i32
  }
  func.func @transform_5(%arg0: i32) -> (i32, i32) {
    %c0_i32 = arith.constant 0 : i32
    %c0_i32_0 = arith.constant 0 : i32
    %c0_i32_1 = arith.constant 0 : i32
    return %c0_i32, %c0_i32_0 : i32, i32
  }
  func.func @transform_6(%arg0: i32) -> (i32, i32) {
    %c0_i32 = arith.constant 0 : i32
    %c0_i32_0 = arith.constant 0 : i32
    %c0_i32_1 = arith.constant 0 : i32
    return %c0_i32, %c0_i32_0 : i32, i32
  }
  func.func @transform_7(%arg0: i32) -> (i32, i32) {
    %c0_i32 = arith.constant 0 : i32
    %c0_i32_0 = arith.constant 0 : i32
    %c0_i32_1 = arith.constant 0 : i32
    return %c0_i32, %c0_i32_0 : i32, i32
  }
}

</mosaic_0001>

<llo_original>
// kernel: tpu_custom_call.1
$region0: #{tpu_custom_call.1}
  #allocation0 [shape = 'u32[]', space=smem, size = 0x4, offset = 0x4, fixed_abs, tag = 'smem constant byte address 0x4 - core index']
  #allocation1 [shape = 'u32[144,128]{1,0:T(1,128)}', space=vmem, size = 0x12000, scoped, tag = 'internal scratch']
  %s0 = inlined_call_operand.vmem [shape: f32[16,8], index: 0, kind: input, shape index: {}]
  %s1 = inlined_call_operand.vmem [shape: f32[256,8], index: 1, kind: input, shape index: {}]
  %s2 = inlined_call_operand.vmem [shape: f32[16,16,1], index: 2, kind: input, shape index: {}]
  %s3 = inlined_call_operand.hbm [shape: f32[8,384], index: 3, kind: input, shape index: {}]
  %s4 = inlined_call_operand.hbm [shape: f32[128,1664], index: 4, kind: input, shape index: {}]
  %s5 = inlined_call_operand.hbm [shape: f32[256,2048], index: 5, kind: input, shape index: {}]
  %s6 = inlined_call_operand.hbm [shape: f32[1,3584], index: 6, kind: input, shape index: {}]
  %s7 = inlined_call_operand.hbm [shape: f32[1,128], index: 7, kind: output, shape index: {}]
  %s8 = sld [smem:[#allocation0]]
  $region54: #{tpu_custom_call.1} parent=0
    _
  %s10 = ssub.s32 1, %s8
  %s11 = scalar_select 0, %s10, %s8
  $region1: #{tpu_custom_call.1} parent=0
    #allocation2 [shape = 'u8[12288]{0}', space=vmem, size = 0x3000, scoped, tag = 'input window, operand 3, single buffered']
    #allocation3 [shape = 's32[1]{0}', space=sflag, size = 0x4, scoped, tag = 'scoped memory for tpu_custom_call.1']
    #allocation4 [shape = 's32[1]{0}', space=sflag, size = 0x4, scoped, tag = 'scoped memory for tpu_custom_call.1']
    #allocation5 [shape = 'u8[851968]{0}', space=vmem, size = 0xd0000, scoped, tag = 'input window, operand 4, single buffered']
    #allocation6 [shape = 's32[1]{0}', space=sflag, size = 0x4, scoped, tag = 'scoped memory for tpu_custom_call.1']
    #allocation7 [shape = 'u8[2097152]{0}', space=vmem, size = 0x200000, scoped, tag = 'input window, operand 5, single buffered']
    #allocation8 [shape = 'u8[14336]{0}', space=vmem, size = 0x3800, scoped, tag = 'input window, operand 6, single buffered']
    #allocation9 [shape = 's32[1]{0}', space=sflag, size = 0x4, scoped, tag = 'scoped memory for tpu_custom_call.1']
    #allocation10 [shape = 'u8[512]{0}', space=vmem, size = 0x400, scoped, tag = 'output window, operand 0, single buffered']
    %12 = vsyncpa [#allocation3], 0
    %13 = vsyncpa [#allocation6], 0
    %14 = vsyncpa [#allocation9], 0
    %15 = vsyncpa [#allocation4], 0
    // Predicated region
    $region2: #{tpu_custom_call.1} parent=1 // pred_check
      _
    $region3: #{tpu_custom_call.1} parent=1 // pred_check_branch
      %17 = sbr.rel (0) target = $region5
    $region4: #{tpu_custom_call.1} parent=1 // pred_region
      _
    $region5: #{tpu_custom_call.1} parent=1 // pred_fallthru
      _
    // Predicated region
    $region6: #{tpu_custom_call.1} parent=1 // pred_check
      _
    $region7: #{tpu_custom_call.1} parent=1 // pred_check_branch
      %19 = sbr.rel (0) target = $region9
    $region8: #{tpu_custom_call.1} parent=1 // pred_region
      _
    $region9: #{tpu_custom_call.1} parent=1 // pred_fallthru
      _
    // Predicated region
    $region10: #{tpu_custom_call.1} parent=1 // pred_check
      _
    $region11: #{tpu_custom_call.1} parent=1 // pred_check_branch
      %21 = sbr.rel (0) target = $region13
    $region12: #{tpu_custom_call.1} parent=1 // pred_region
      _
    $region13: #{tpu_custom_call.1} parent=1 // pred_fallthru
      _
    // Predicated region
    $region14: #{tpu_custom_call.1} parent=1 // pred_check
      _
    $region15: #{tpu_custom_call.1} parent=1 // pred_check_branch
      %23 = sbr.rel (0) target = $region17
    $region16: #{tpu_custom_call.1} parent=1 // pred_region
      %s25 = ssub.s32 384, 384
      %26 = vsyncadd [#allocation3], %s25
      %s28 = sshll.u32 [#allocation2], 4
      %s29 = int_to_ptr.vmem [resolvable:$true] %s28
      %31 = dma.hbm_to_vmem [thread:$0]  %s3, 384, %s29, [#allocation3]
    $region17: #{tpu_custom_call.1} parent=1 // pred_fallthru
      _
    // Predicated region
    $region18: #{tpu_custom_call.1} parent=1 // pred_check
      _
    $region19: #{tpu_custom_call.1} parent=1 // pred_check_branch
      %33 = sbr.rel (0) target = $region21
    $region20: #{tpu_custom_call.1} parent=1 // pred_region
      %s35 = ssub.s32 26624, 26624
      %36 = vsyncadd [#allocation6], %s35
      %s37 = sshll.u32 [#allocation5], 4
      %s38 = int_to_ptr.vmem [resolvable:$true] %s37
      %43 = dma.hbm_to_vmem [thread:$0]  %s4, 26624, %s38, [#allocation6], 1664, 1664, 104
    $region21: #{tpu_custom_call.1} parent=1 // pred_fallthru
      _
    // Predicated region
    $region22: #{tpu_custom_call.1} parent=1 // pred_check
      _
    $region23: #{tpu_custom_call.1} parent=1 // pred_check_branch
      %45 = sbr.rel (0) target = $region25
    $region24: #{tpu_custom_call.1} parent=1 // pred_region
      %s47 = ssub.s32 65536, 65536
      %48 = vsyncadd [#allocation6], %s47
      %s49 = sshll.u32 [#allocation7], 4
      %s50 = int_to_ptr.vmem [resolvable:$true] %s49
      %55 = dma.hbm_to_vmem [thread:$0]  %s5, 65536, %s50, [#allocation6], 2048, 2048, 128
    $region25: #{tpu_custom_call.1} parent=1 // pred_fallthru
      _
    // Predicated region
    $region26: #{tpu_custom_call.1} parent=1 // pred_check
      _
    $region27: #{tpu_custom_call.1} parent=1 // pred_check_branch
      %57 = sbr.rel (0) target = $region29
    $region28: #{tpu_custom_call.1} parent=1 // pred_region
      %s59 = ssub.s32 448, 448
      %60 = vsyncadd [#allocation9], %s59
      %s62 = sshll.u32 [#allocation8], 4
      %s63 = int_to_ptr.vmem [resolvable:$true] %s62
      %65 = dma.hbm_to_vmem [thread:$0]  %s6, 448, %s63, [#allocation9]
    $region29: #{tpu_custom_call.1} parent=1 // pred_fallthru
      _
    // Predicated region
    $region30: #{tpu_custom_call.1} parent=1 // pred_check
      _
    $region31: #{tpu_custom_call.1} parent=1 // pred_check_branch
      %67 = sbr.rel (0) target = $region33
    $region32: #{tpu_custom_call.1} parent=1 // pred_region
      %68 = dma.done [#allocation3], 384
    $region33: #{tpu_custom_call.1} parent=1 // pred_fallthru
      _
    // Predicated region
    $region34: #{tpu_custom_call.1} parent=1 // pred_check
      _
    $region35: #{tpu_custom_call.1} parent=1 // pred_check_branch
      %70 = sbr.rel (0) target = $region37
    $region36: #{tpu_custom_call.1} parent=1 // pred_region
      %71 = dma.done [#allocation6], 26624
    $region37: #{tpu_custom_call.1} parent=1 // pred_fallthru
      _
    // Predicated region
    $region38: #{tpu_custom_call.1} parent=1 // pred_check
      _
    $region39: #{tpu_custom_call.1} parent=1 // pred_check_branch
      %73 = sbr.rel (0) target = $region41
    $region40: #{tpu_custom_call.1} parent=1 // pred_region
      %74 = dma.done [#allocation6], 65536
    $region41: #{tpu_custom_call.1} parent=1 // pred_fallthru
      _
    // Predicated region
    $region42: #{tpu_custom_call.1} parent=1 // pred_check
      _
    $region43: #{tpu_custom_call.1} parent=1 // pred_check_branch
      %76 = sbr.rel (0) target = $region45
    $region44: #{tpu_custom_call.1} parent=1 // pred_region
      %77 = dma.done [#allocation9], 448
    $region45: #{tpu_custom_call.1} parent=1 // pred_fallthru
      _
    %v78 = vld [vmem:[%s2] sm:$0xff]
    %v79 = vld [vmem:[%s2 + $0x8] sm:$0xff]
    %v80 = vld [vmem:[%s2 + $0x10] sm:$0xff]
    %v81 = vld [vmem:[%s2 + $0x18] sm:$0xff]
    %v82 = vld [vmem:[%s2 + $0x20] sm:$0xff]
    %v83 = vld [vmem:[%s2 + $0x28] sm:$0xff]
    %v84 = vld [vmem:[%s2 + $0x30] sm:$0xff]
    %v85 = vld [vmem:[%s2 + $0x38] sm:$0xff]
    %v86 = vld [vmem:[%s2 + $0x40] sm:$0xff]
    %v87 = vld [vmem:[%s2 + $0x48] sm:$0xff]
    %v88 = vld [vmem:[%s2 + $0x50] sm:$0xff]
    %v89 = vld [vmem:[%s2 + $0x58] sm:$0xff]
    %v90 = vld [vmem:[%s2 + $0x60] sm:$0xff]
    %v91 = vld [vmem:[%s2 + $0x68] sm:$0xff]
    %v92 = vld [vmem:[%s2 + $0x70] sm:$0xff]
    %v93 = vld [vmem:[%s2 + $0x78] sm:$0xff]
    %v94 = vld [vmem:[%s2 + $0x80] sm:$0xff]
    %v95 = vld [vmem:[%s2 + $0x88] sm:$0xff]
    %v96 = vld [vmem:[%s2 + $0x90] sm:$0xff]
    %v97 = vld [vmem:[%s2 + $0x98] sm:$0xff]
    %v98 = vld [vmem:[%s2 + $0xa0] sm:$0xff]
    %v99 = vld [vmem:[%s2 + $0xa8] sm:$0xff]
    %v100 = vld [vmem:[%s2 + $0xb0] sm:$0xff]
    %v101 = vld [vmem:[%s2 + $0xb8] sm:$0xff]
    %v102 = vld [vmem:[%s2 + $0xc0] sm:$0xff]
    %v103 = vld [vmem:[%s2 + $0xc8] sm:$0xff]
    %v104 = vld [vmem:[%s2 + $0xd0] sm:$0xff]
    %v105 = vld [vmem:[%s2 + $0xd8] sm:$0xff]
    %v106 = vld [vmem:[%s2 + $0xe0] sm:$0xff]
    %v107 = vld [vmem:[%s2 + $0xe8] sm:$0xff]
    %v108 = vld [vmem:[%s2 + $0xf0] sm:$0xff]
    %v109 = vld [vmem:[%s2 + $0xf8] sm:$0xff]
    %v110 = vld [vmem:[%s0] sm:$0xff]
    %v111 = vld [vmem:[%s0 + $0x8] sm:$0xff]
    %v112 = vld [vmem:[#allocation2] sm:$0xff]
    %v113 = vld [vmem:[#allocation2 + $0x8] sm:$0xff]
    %v114 = vld [vmem:[#allocation8] sm:$0x3]
    %v116 = vlaneseq
    %v117 = vshrl.u32 %v116, 7
    %v118 = vsub.s32 0, %v117
    %v119 = vrot.slane %v114, %v118
    %v120 = vlaneseq
    %v121 = vshrl.u32 %v120, 7
    %v122 = vsub.s32 1, %v121
    %v123 = vrot.slane %v114, %v122
    %vm126 = vcmask 64512
    %v128 = vsel %vm126, %v110, 0
    %v131 = vsel %vm126, %v111, 0
    %133 = vmatprep.subr.mxu0 %v113
    %134 = vmatpush1.msra.mxu0 %v112
    %135 = vmatprep.subr.mxu0 0.0
    %136 = vmatpush1.msra.mxu0 0.0
    %137 = vmatprep.subr.mxu0 0.0
    %138 = vmatpush1.msra.mxu0 0.0
    %139 = vmatprep.subr.mxu0 0.0
    %140 = vmatpush1.msra.mxu0 0.0
    %141 = vmatprep.subr.mxu0 0.0
    %142 = vmatpush1.msra.mxu0 0.0
    %143 = vmatprep.subr.mxu0 0.0
    %144 = vmatpush1.msra.mxu0 0.0
    %145 = vmatprep.subr.mxu0 0.0
    %146 = vmatpush1.msra.mxu0 0.0
    %147 = vmatprep.subr.mxu0 0.0
    %148 = vmatpush1.msra.mxu0 0.0
    %149 = vmatprep.subr.mxu0 0.0
    %150 = vmatpush1.msra.mxu0 0.0
    %151 = vmatprep.subr.mxu0 0.0
    %152 = vmatpush1.msra.mxu0 0.0
    %153 = vmatprep.subr.mxu0 0.0
    %154 = vmatpush1.msra.mxu0 0.0
    %155 = vmatprep.subr.mxu0 0.0
    %156 = vmatpush1.msra.mxu0 0.0
    %157 = vmatprep.subr.mxu0 0.0
    %158 = vmatpush1.msra.mxu0 0.0
    %159 = vmatprep.subr.mxu0 0.0
    %160 = vmatpush1.msra.mxu0 0.0
    %161 = vmatprep.subr.mxu0 0.0
    %162 = vmatpush1.msra.mxu0 0.0
    %163 = vmatprep.subr.mxu0 0.0
    %164 = vmatpush1.msra.mxu0 0.0
    %165 = vmatprep.subr.mxu0 0.0
    %166 = vmatpush1.msra.mxu0 0.0
    %167 = vmatprep.subr.mxu0 0.0
    %168 = vmatpush1.msra.mxu0 0.0
    %169 = vmatprep.subr.mxu0 0.0
    %170 = vmatpush1.msra.mxu0 0.0
    %171 = vmatprep.subr.mxu0 0.0
    %172 = vmatpush1.msra.mxu0 0.0
    %173 = vmatprep.subr.mxu0 0.0
    %174 = vmatpush1.msra.mxu0 0.0
    %175 = vmatprep.subr.mxu0 0.0
    %176 = vmatpush1.msra.mxu0 0.0
    %177 = vmatprep.subr.mxu0 0.0
    %178 = vmatpush1.msra.mxu0 0.0
    %179 = vmatprep.subr.mxu0 0.0
    %180 = vmatpush1.msra.mxu0 0.0
    %181 = vmatprep.subr.mxu0 0.0
    %182 = vmatpush1.msra.mxu0 0.0
    %183 = vmatprep.subr.mxu0 0.0
    %184 = vmatpush1.msra.mxu0 0.0
    %185 = vmatprep.subr.mxu0 0.0
    %186 = vmatpush1.msra.mxu0 0.0
    %187 = vmatprep.subr.mxu0 0.0
    %188 = vmatpush1.msra.mxu0 0.0
    %189 = vmatprep.subr.mxu0 0.0
    %190 = vmatpush1.msra.mxu0 0.0
    %191 = vmatprep.subr.mxu0 0.0
    %192 = vmatpush1.msra.mxu0 0.0
    %193 = vmatprep.subr.mxu0 0.0
    %194 = vmatpush1.msra.mxu0 0.0
    %195 = vmatprep.subr.mxu0 0.0
    %196 = vmatpush1.msra.mxu0 0.0
    %197 = vmatprep.mubr.f32.mxu0 0.0
    %198 = vmatmul.mubr.f32.gmra.mrb[0].mxu0 %v128
    %v199 = vpop.f32.mrb[0].mxu0
    %v200 = vadd.f32 %v119, %v199
    %v201 = vpop.f32.mrb[0].mxu0
    %v202 = vadd.f32 %v123, %v201
    %203 = vmatprep.mubr.f32.mxu0 0.0
    %204 = vmatmul.mubr.f32.gmra.mrb[0].mxu0 %v131
    %v205 = vpop.f32.mrb[0].mxu0
    %v206 = vadd.f32 %v119, %v205
    %v207 = vpop.f32.mrb[0].mxu0
    %v208 = vadd.f32 %v123, %v207
    %209 = vdwg.mxu0
    %vm210 = vcmp.gt.f32.partialorder %v200, 0.0
    %vm211 = vcmp.gt.f32.partialorder %v206, 0.0
    %v212 = vmul.f32 %v200, 0.01
    %v213 = vmul.f32 %v206, 0.01
    %v214 = vsel %vm210, %v200, %v212
    %v215 = vsel %vm211, %v206, %v213
    %v216 = vld [vmem:[%s1] sm:$0xff]
    %v217 = vld [vmem:[%s1 + $0x8] sm:$0xff]
    %v218 = vld [vmem:[%s1 + $0x10] sm:$0xff]
    %v219 = vld [vmem:[%s1 + $0x18] sm:$0xff]
    %v220 = vld [vmem:[%s1 + $0x20] sm:$0xff]
    %v221 = vld [vmem:[%s1 + $0x28] sm:$0xff]
    %v222 = vld [vmem:[%s1 + $0x30] sm:$0xff]
    %v223 = vld [vmem:[%s1 + $0x38] sm:$0xff]
    %v224 = vld [vmem:[%s1 + $0x40] sm:$0xff]
    %v225 = vld [vmem:[%s1 + $0x48] sm:$0xff]
    %v226 = vld [vmem:[%s1 + $0x50] sm:$0xff]
    %v227 = vld [vmem:[%s1 + $0x58] sm:$0xff]
    %v228 = vld [vmem:[%s1 + $0x60] sm:$0xff]
    %v229 = vld [vmem:[%s1 + $0x68] sm:$0xff]
    %v230 = vld [vmem:[%s1 + $0x70] sm:$0xff]
    %v231 = vld [vmem:[%s1 + $0x78] sm:$0xff]
    %v232 = vld [vmem:[%s1 + $0x80] sm:$0xff]
    %v233 = vld [vmem:[%s1 + $0x88] sm:$0xff]
    %v234 = vld [vmem:[%s1 + $0x90] sm:$0xff]
    %v235 = vld [vmem:[%s1 + $0x98] sm:$0xff]
    %v236 = vld [vmem:[%s1 + $0xa0] sm:$0xff]
    %v237 = vld [vmem:[%s1 + $0xa8] sm:$0xff]
    %v238 = vld [vmem:[%s1 + $0xb0] sm:$0xff]
    %v239 = vld [vmem:[%s1 + $0xb8] sm:$0xff]
    %v240 = vld [vmem:[%s1 + $0xc0] sm:$0xff]
    %v241 = vld [vmem:[%s1 + $0xc8] sm:$0xff]
    %v242 = vld [vmem:[%s1 + $0xd0] sm:$0xff]
    %v243 = vld [vmem:[%s1 + $0xd8] sm:$0xff]
    %v244 = vld [vmem:[%s1 + $0xe0] sm:$0xff]
    %v245 = vld [vmem:[%s1 + $0xe8] sm:$0xff]
    %v246 = vld [vmem:[%s1 + $0xf0] sm:$0xff]
    %v247 = vld [vmem:[%s1 + $0xf8] sm:$0xff]
    %v248 = vld [vmem:[#allocation2 + $0x10] sm:$0xff]
    %v250 = vsel %vm126, %v216, 0
    %v253 = vsel %vm126, %v217, 0
    %v256 = vsel %vm126, %v218, 0
    %v259 = vsel %vm126, %v219, 0
    %v262 = vsel %vm126, %v220, 0
    %v265 = vsel %vm126, %v221, 0
    %v268 = vsel %vm126, %v222, 0
    %v271 = vsel %vm126, %v223, 0
    %v274 = vsel %vm126, %v224, 0
    %v277 = vsel %vm126, %v225, 0
    %v280 = vsel %vm126, %v226, 0
    %v283 = vsel %vm126, %v227, 0
    %v286 = vsel %vm126, %v228, 0
    %v289 = vsel %vm126, %v229, 0
    %v292 = vsel %vm126, %v230, 0
    %v295 = vsel %vm126, %v231, 0
    %v298 = vsel %vm126, %v232, 0
    %v301 = vsel %vm126, %v233, 0
    %v304 = vsel %vm126, %v234, 0
    %v307 = vsel %vm126, %v235, 0
    %v310 = vsel %vm126, %v236, 0
    %v313 = vsel %vm126, %v237, 0
    %v316 = vsel %vm126, %v238, 0
    %v319 = vsel %vm126, %v239, 0
    %v322 = vsel %vm126, %v240, 0
    %v325 = vsel %vm126, %v241, 0
    %v328 = vsel %vm126, %v242, 0
    %v331 = vsel %vm126, %v243, 0
    %v334 = vsel %vm126, %v244, 0
    %v337 = vsel %vm126, %v245, 0
    %v340 = vsel %vm126, %v246, 0
    %v343 = vsel %vm126, %v247, 0
    %345 = vmatprep.subr.mxu0 0.0
    %346 = vmatpush1.msra.mxu0 %v248
    %347 = vmatprep.subr.mxu0 0.0
    %348 = vmatpush1.msra.mxu0 0.0
    %349 = vmatprep.subr.mxu0 0.0
    %350 = vmatpush1.msra.mxu0 0.0
    %351 = vmatprep.subr.mxu0 0.0
    %352 = vmatpush1.msra.mxu0 0.0
    %353 = vmatprep.subr.mxu0 0.0
    %354 = vmatpush1.msra.mxu0 0.0
    %355 = vmatprep.subr.mxu0 0.0
    %356 = vmatpush1.msra.mxu0 0.0
    %357 = vmatprep.subr.mxu0 0.0
    %358 = vmatpush1.msra.mxu0 0.0
    %359 = vmatprep.subr.mxu0 0.0
    %360 = vmatpush1.msra.mxu0 0.0
    %361 = vmatprep.subr.mxu0 0.0
    %362 = vmatpush1.msra.mxu0 0.0
    %363 = vmatprep.subr.mxu0 0.0
    %364 = vmatpush1.msra.mxu0 0.0
    %365 = vmatprep.subr.mxu0 0.0
    %366 = vmatpush1.msra.mxu0 0.0
    %367 = vmatprep.subr.mxu0 0.0
    %368 = vmatpush1.msra.mxu0 0.0
    %369 = vmatprep.subr.mxu0 0.0
    %370 = vmatpush1.msra.mxu0 0.0
    %371 = vmatprep.subr.mxu0 0.0
    %372 = vmatpush1.msra.mxu0 0.0
    %373 = vmatprep.subr.mxu0 0.0
    %374 = vmatpush1.msra.mxu0 0.0
    %375 = vmatprep.subr.mxu0 0.0
    %376 = vmatpush1.msra.mxu0 0.0
    %377 = vmatprep.subr.mxu0 0.0
    %378 = vmatpush1.msra.mxu0 0.0
    %379 = vmatprep.subr.mxu0 0.0
    %380 = vmatpush1.msra.mxu0 0.0
    %381 = vmatprep.subr.mxu0 0.0
    %382 = vmatpush1.msra.mxu0 0.0
    %383 = vmatprep.subr.mxu0 0.0
    %384 = vmatpush1.msra.mxu0 0.0
    %385 = vmatprep.subr.mxu0 0.0
    %386 = vmatpush1.msra.mxu0 0.0
    %387 = vmatprep.subr.mxu0 0.0
    %388 = vmatpush1.msra.mxu0 0.0
    %389 = vmatprep.subr.mxu0 0.0
    %390 = vmatpush1.msra.mxu0 0.0
    %391 = vmatprep.subr.mxu0 0.0
    %392 = vmatpush1.msra.mxu0 0.0
    %393 = vmatprep.subr.mxu0 0.0
    %394 = vmatpush1.msra.mxu0 0.0
    %395 = vmatprep.subr.mxu0 0.0
    %396 = vmatpush1.msra.mxu0 0.0
    %397 = vmatprep.subr.mxu0 0.0
    %398 = vmatpush1.msra.mxu0 0.0
    %399 = vmatprep.subr.mxu0 0.0
    %400 = vmatpush1.msra.mxu0 0.0
    %401 = vmatprep.subr.mxu0 0.0
    %402 = vmatpush1.msra.mxu0 0.0
    %403 = vmatprep.subr.mxu0 0.0
    %404 = vmatpush1.msra.mxu0 0.0
    %405 = vmatprep.subr.mxu0 0.0
    %406 = vmatpush1.msra.mxu0 0.0
    %407 = vmatprep.subr.mxu0 0.0
    %408 = vmatpush1.msra.mxu0 0.0
    %409 = vmatprep.mubr.f32.mxu0 0.0
    %410 = vmatmul.mubr.f32.gmra.mrb[0].mxu0 %v250
    %v411 = vpop.f32.mrb[0].mxu0
    %v412 = vadd.f32 0.0, %v411
    %v413 = vpop.f32.mrb[0].mxu0
    %414 = vmatprep.mubr.f32.mxu0 0.0
    %415 = vmatmul.mubr.f32.gmra.mrb[0].mxu0 %v253
    %v416 = vpop.f32.mrb[0].mxu0
    %v417 = vadd.f32 0.0, %v416
    %v418 = vpop.f32.mrb[0].mxu0
    %419 = vmatprep.mubr.f32.mxu0 0.0
    %420 = vmatmul.mubr.f32.gmra.mrb[0].mxu0 %v256
    %v421 = vpop.f32.mrb[0].mxu0
    %v422 = vadd.f32 0.0, %v421
    %v423 = vpop.f32.mrb[0].mxu0
    %424 = vmatprep.mubr.f32.mxu0 0.0
    %425 = vmatmul.mubr.f32.gmra.mrb[0].mxu0 %v259
    %v426 = vpop.f32.mrb[0].mxu0
    %v427 = vadd.f32 0.0, %v426
    %v428 = vpop.f32.mrb[0].mxu0
    %429 = vmatprep.mubr.f32.mxu0 0.0
    %430 = vmatmul.mubr.f32.gmra.mrb[0].mxu0 %v262
    %v431 = vpop.f32.mrb[0].mxu0
    %v432 = vadd.f32 0.0, %v431
    %v433 = vpop.f32.mrb[0].mxu0
    %434 = vmatprep.mubr.f32.mxu0 0.0
    %435 = vmatmul.mubr.f32.gmra.mrb[0].mxu0 %v265
    %v436 = vpop.f32.mrb[0].mxu0
    %v437 = vadd.f32 0.0, %v436
    %v438 = vpop.f32.mrb[0].mxu0
    %439 = vmatprep.mubr.f32.mxu0 0.0
    %440 = vmatmul.mubr.f32.gmra.mrb[0].mxu0 %v268
    %v441 = vpop.f32.mrb[0].mxu0
    %v442 = vadd.f32 0.0, %v441
    %v443 = vpop.f32.mrb[0].mxu0
    %444 = vmatprep.mubr.f32.mxu0 0.0
    %445 = vmatmul.mubr.f32.gmra.mrb[0].mxu0 %v271
    %v446 = vpop.f32.mrb[0].mxu0
    %v447 = vadd.f32 0.0, %v446
    %v448 = vpop.f32.mrb[0].mxu0
    %449 = vmatprep.mubr.f32.mxu0 0.0
    %450 = vmatmul.mubr.f32.gmra.mrb[0].mxu0 %v274
    %v451 = vpop.f32.mrb[0].mxu0
    %v452 = vadd.f32 0.0, %v451
    %v453 = vpop.f32.mrb[0].mxu0
    %454 = vmatprep.mubr.f32.mxu0 0.0
    %455 = vmatmul.mubr.f32.gmra.mrb[0].mxu0 %v277
    %v456 = vpop.f32.mrb[0].mxu0
    %v457 = vadd.f32 0.0, %v456
    %v458 = vpop.f32.mrb[0].mxu0
    %459 = vmatprep.mubr.f32.mxu0 0.0
    %460 = vmatmul.mubr.f32.gmra.mrb[0].mxu0 %v280
    %v461 = vpop.f32.mrb[0].mxu0
    %v462 = vadd.f32 0.0, %v461
    %v463 = vpop.f32.mrb[0].mxu0
    %464 = vmatprep.mubr.f32.mxu0 0.0
    %465 = vmatmul.mubr.f32.gmra.mrb[0].mxu0 %v283
    %v466 = vpop.f32.mrb[0].mxu0
    %v467 = vadd.f32 0.0, %v466
    %v468 = vpop.f32.mrb[0].mxu0
    %469 = vmatprep.mubr.f32.mxu0 0.0
    %470 = vmatmul.mubr.f32.gmra.mrb[0].mxu0 %v286
    %v471 = vpop.f32.mrb[0].mxu0
    %v472 = vadd.f32 0.0, %v471
    %v473 = vpop.f32.mrb[0].mxu0
    %474 = vmatprep.mubr.f32.mxu0 0.0
    %475 = vmatmul.mubr.f32.gmra.mrb[0].mxu0 %v289
    %v476 = vpop.f32.mrb[0].mxu0
    %v477 = vadd.f32 0.0, %v476
    %v478 = vpop.f32.mrb[0].mxu0
    %479 = vmatprep.mubr.f32.mxu0 0.0
    %480 = vmatmul.mubr.f32.gmra.mrb[0].mxu0 %v292
    %v481 = vpop.f32.mrb[0].mxu0
    %v482 = vadd.f32 0.0, %v481
    %v483 = vpop.f32.mrb[0].mxu0
    %484 = vmatprep.mubr.f32.mxu0 0.0
    %485 = vmatmul.mubr.f32.gmra.mrb[0].mxu0 %v295
    %v486 = vpop.f32.mrb[0].mxu0
    %v487 = vadd.f32 0.0, %v486
    %v488 = vpop.f32.mrb[0].mxu0
    %489 = vmatprep.mubr.f32.mxu0 0.0
    %490 = vmatmul.mubr.f32.gmra.mrb[0].mxu0 %v298
    %v491 = vpop.f32.mrb[0].mxu0
    %v492 = vadd.f32 0.0, %v491
    %v493 = vpop.f32.mrb[0].mxu0
    %494 = vmatprep.mubr.f32.mxu0 0.0
    %495 = vmatmul.mubr.f32.gmra.mrb[0].mxu0 %v301
    %v496 = vpop.f32.mrb[0].mxu0
    %v497 = vadd.f32 0.0, %v496
    %v498 = vpop.f32.mrb[0].mxu0
    %499 = vmatprep.mubr.f32.mxu0 0.0
    %500 = vmatmul.mubr.f32.gmra.mrb[0].mxu0 %v304
    %v501 = vpop.f32.mrb[0].mxu0
    %v502 = vadd.f32 0.0, %v501
    %v503 = vpop.f32.mrb[0].mxu0
    %504 = vmatprep.mubr.f32.mxu0 0.0
    %505 = vmatmul.mubr.f32.gmra.mrb[0].mxu0 %v307
    %v506 = vpop.f32.mrb[0].mxu0
    %v507 = vadd.f32 0.0, %v506
    %v508 = vpop.f32.mrb[0].mxu0
    %509 = vmatprep.mubr.f32.mxu0 0.0
    %510 = vmatmul.mubr.f32.gmra.mrb[0].mxu0 %v310
    %v511 = vpop.f32.mrb[0].mxu0
    %v512 = vadd.f32 0.0, %v511
    %v513 = vpop.f32.mrb[0].mxu0
    %514 = vmatprep.mubr.f32.mxu0 0.0
    %515 = vmatmul.mubr.f32.gmra.mrb[0].mxu0 %v313
    %v516 = vpop.f32.mrb[0].mxu0
    %v517 = vadd.f32 0.0, %v516
    %v518 = vpop.f32.mrb[0].mxu0
    %519 = vmatprep.mubr.f32.mxu0 0.0
    %520 = vmatmul.mubr.f32.gmra.mrb[0].mxu0 %v316
    %v521 = vpop.f32.mrb[0].mxu0
    %v522 = vadd.f32 0.0, %v521
    %v523 = vpop.f32.mrb[0].mxu0
    %524 = vmatprep.mubr.f32.mxu0 0.0
    %525 = vmatmul.mubr.f32.gmra.mrb[0].mxu0 %v319
    %v526 = vpop.f32.mrb[0].mxu0
    %v527 = vadd.f32 0.0, %v526
    %v528 = vpop.f32.mrb[0].mxu0
    %529 = vmatprep.mubr.f32.mxu0 0.0
    %530 = vmatmul.mubr.f32.gmra.mrb[0].mxu0 %v322
    %v531 = vpop.f32.mrb[0].mxu0
    %v532 = vadd.f32 0.0, %v531
    %v533 = vpop.f32.mrb[0].mxu0
    %534 = vmatprep.mubr.f32.mxu0 0.0
    %535 = vmatmul.mubr.f32.gmra.mrb[0].mxu0 %v325
    %v536 = vpop.f32.mrb[0].mxu0
    %v537 = vadd.f32 0.0, %v536
    %v538 = vpop.f32.mrb[0].mxu0
    %539 = vmatprep.mubr.f32.mxu0 0.0
    %540 = vmatmul.mubr.f32.gmra.mrb[0].mxu0 %v328
    %v541 = vpop.f32.mrb[0].mxu0
    %v542 = vadd.f32 0.0, %v541
    %v543 = vpop.f32.mrb[0].mxu0
    %544 = vmatprep.mubr.f32.mxu0 0.0
    %545 = vmatmul.mubr.f32.gmra.mrb[0].mxu0 %v331
    %v546 = vpop.f32.mrb[0].mxu0
    %v547 = vadd.f32 0.0, %v546
    %v548 = vpop.f32.mrb[0].mxu0
    %549 = vmatprep.mubr.f32.mxu0 0.0
    %550 = vmatmul.mubr.f32.gmra.mrb[0].mxu0 %v334
    %v551 = vpop.f32.mrb[0].mxu0
    %v552 = vadd.f32 0.0, %v551
    %v553 = vpop.f32.mrb[0].mxu0
    %554 = vmatprep.mubr.f32.mxu0 0.0
    %555 = vmatmul.mubr.f32.gmra.mrb[0].mxu0 %v337
    %v556 = vpop.f32.mrb[0].mxu0
    %v557 = vadd.f32 0.0, %v556
    %v558 = vpop.f32.mrb[0].mxu0
    %559 = vmatprep.mubr.f32.mxu0 0.0
    %560 = vmatmul.mubr.f32.gmra.mrb[0].mxu0 %v340
    %v561 = vpop.f32.mrb[0].mxu0
    %v562 = vadd.f32 0.0, %v561
    %v563 = vpop.f32.mrb[0].mxu0
    %564 = vmatprep.mubr.f32.mxu0 0.0
    %565 = vmatmul.mubr.f32.gmra.mrb[0].mxu0 %v343
    %v566 = vpop.f32.mrb[0].mxu0
    %v567 = vadd.f32 0.0, %v566
    %v568 = vpop.f32.mrb[0].mxu0
    %569 = vdwg.mxu0
    %v572 = vcombine.high %v202, %v202
    %v574 = vunpack.c.l.s4 1966171168
    %v575 = vunpack.c.0.s8 %v574
    %v576 = vlaneseq
    %v577 = vshrl.u32 %v576, 7
    %v578 = vsub.s32 %v575, %v577
    %v579 = vrot.slane %v202, %v578
    %v581 = vunpack.c.l.s4 1966171168
    %v582 = vunpack.c.0.s8 %v581
    %v583 = vlaneseq
    %v584 = vshrl.u32 %v583, 7
    %v585 = vsub.s32 %v582, %v584
    %v586 = vrot.slane %v572, %v585
    %v587 = vcombine.high %v579, %v579
    %v588 = vcombine.high %v586, %v586
    %v590 = vunpack.c.l.s4 1966171168
    %v591 = vunpack.c.0.s8 %v590
    %v592 = vlaneseq
    %v593 = vshrl.u32 %v592, 7
    %v594 = vsub.s32 %v591, %v593
    %v595 = vrot.slane %v579, %v594
    %v597 = vunpack.c.l.s4 1966171168
    %v598 = vunpack.c.0.s8 %v597
    %v599 = vlaneseq
    %v600 = vshrl.u32 %v599, 7
    %v601 = vsub.s32 %v598, %v600
    %v602 = vrot.slane %v586, %v601
    %v604 = vunpack.c.l.s4 1966171168
    %v605 = vunpack.c.0.s8 %v604
    %v606 = vlaneseq
    %v607 = vshrl.u32 %v606, 7
    %v608 = vsub.s32 %v605, %v607
    %v609 = vrot.slane %v587, %v608
    %v611 = vunpack.c.l.s4 1966171168
    %v612 = vunpack.c.0.s8 %v611
    %v613 = vlaneseq
    %v614 = vshrl.u32 %v613, 7
    %v615 = vsub.s32 %v612, %v614
    %v616 = vrot.slane %v588, %v615
    %v617 = vcombine.high %v595, %v595
    %v618 = vcombine.high %v602, %v602
    %v619 = vcombine.high %v609, %v609
    %v620 = vcombine.high %v616, %v616
    %v621 = vcombine.high %v208, %v208
    %v623 = vunpack.c.l.s4 1966171168
    %v624 = vunpack.c.0.s8 %v623
    %v625 = vlaneseq
    %v626 = vshrl.u32 %v625, 7
    %v627 = vsub.s32 %v624, %v626
    %v628 = vrot.slane %v208, %v627
    %v630 = vunpack.c.l.s4 1966171168
    %v631 = vunpack.c.0.s8 %v630
    %v632 = vlaneseq
    %v633 = vshrl.u32 %v632, 7
    %v634 = vsub.s32 %v631, %v633
    %v635 = vrot.slane %v621, %v634
    %v636 = vcombine.high %v628, %v628
    %v637 = vcombine.high %v635, %v635
    %v639 = vunpack.c.l.s4 1966171168
    %v640 = vunpack.c.0.s8 %v639
    %v641 = vlaneseq
    %v642 = vshrl.u32 %v641, 7
    %v643 = vsub.s32 %v640, %v642
    %v644 = vrot.slane %v628, %v643
    %v646 = vunpack.c.l.s4 1966171168
    %v647 = vunpack.c.0.s8 %v646
    %v648 = vlaneseq
    %v649 = vshrl.u32 %v648, 7
    %v650 = vsub.s32 %v647, %v649
    %v651 = vrot.slane %v635, %v650
    %v653 = vunpack.c.l.s4 1966171168
    %v654 = vunpack.c.0.s8 %v653
    %v655 = vlaneseq
    %v656 = vshrl.u32 %v655, 7
    %v657 = vsub.s32 %v654, %v656
    %v658 = vrot.slane %v636, %v657
    %v660 = vunpack.c.l.s4 1966171168
    %v661 = vunpack.c.0.s8 %v660
    %v662 = vlaneseq
    %v663 = vshrl.u32 %v662, 7
    %v664 = vsub.s32 %v661, %v663
    %v665 = vrot.slane %v637, %v664
    %v666 = vcombine.high %v644, %v644
    %v667 = vcombine.high %v651, %v651
    %v668 = vcombine.high %v658, %v658
    %v669 = vcombine.high %v665, %v665
    %v670 = vlaneseq
    %v671 = vshrl.u32 %v670, 7
    %v672 = vsub.s32 0, %v671
    %v673 = vrot.slane %v595, %v672
    %v674 = vlaneseq
    %v675 = vshrl.u32 %v674, 7
    %v676 = vsub.s32 0, %v675
    %v677 = vrot.slane %v609, %v676
    %v678 = vlaneseq
    %v679 = vshrl.u32 %v678, 7
    %v680 = vsub.s32 0, %v679
    %v681 = vrot.slane %v617, %v680
    %v682 = vlaneseq
    %v683 = vshrl.u32 %v682, 7
    %v684 = vsub.s32 0, %v683
    %v685 = vrot.slane %v619, %v684
    %v686 = vlaneseq
    %v687 = vshrl.u32 %v686, 7
    %v688 = vsub.s32 0, %v687
    %v689 = vrot.slane %v602, %v688
    %v690 = vlaneseq
    %v691 = vshrl.u32 %v690, 7
    %v692 = vsub.s32 0, %v691
    %v693 = vrot.slane %v616, %v692
    %v694 = vlaneseq
    %v695 = vshrl.u32 %v694, 7
    %v696 = vsub.s32 0, %v695
    %v697 = vrot.slane %v618, %v696
    %v698 = vlaneseq
    %v699 = vshrl.u32 %v698, 7
    %v700 = vsub.s32 0, %v699
    %v701 = vrot.slane %v620, %v700
    %v702 = vlaneseq
    %v703 = vshrl.u32 %v702, 7
    %v704 = vsub.s32 0, %v703
    %v705 = vrot.slane %v644, %v704
    %v706 = vlaneseq
    %v707 = vshrl.u32 %v706, 7
    %v708 = vsub.s32 0, %v707
    %v709 = vrot.slane %v658, %v708
    %v710 = vlaneseq
    %v711 = vshrl.u32 %v710, 7
    %v712 = vsub.s32 0, %v711
    %v713 = vrot.slane %v666, %v712
    %v714 = vlaneseq
    %v715 = vshrl.u32 %v714, 7
    %v716 = vsub.s32 0, %v715
    %v717 = vrot.slane %v668, %v716
    %v718 = vlaneseq
    %v719 = vshrl.u32 %v718, 7
    %v720 = vsub.s32 0, %v719
    %v721 = vrot.slane %v651, %v720
    %v722 = vlaneseq
    %v723 = vshrl.u32 %v722, 7
    %v724 = vsub.s32 0, %v723
    %v725 = vrot.slane %v665, %v724
    %v726 = vlaneseq
    %v727 = vshrl.u32 %v726, 7
    %v728 = vsub.s32 0, %v727
    %v729 = vrot.slane %v667, %v728
    %v730 = vlaneseq
    %v731 = vshrl.u32 %v730, 7
    %v732 = vsub.s32 0, %v731
    %v733 = vrot.slane %v669, %v732
    %v750 = vadd.f32 %v673, %v412
    %v751 = vadd.f32 %v673, %v417
    %v752 = vadd.f32 %v677, %v422
    %v753 = vadd.f32 %v677, %v427
    %v754 = vadd.f32 %v681, %v432
    %v755 = vadd.f32 %v681, %v437
    %v756 = vadd.f32 %v685, %v442
    %v757 = vadd.f32 %v685, %v447
    %v758 = vadd.f32 %v689, %v452
    %v759 = vadd.f32 %v689, %v457
    %v760 = vadd.f32 %v693, %v462
    %v761 = vadd.f32 %v693, %v467
    %v762 = vadd.f32 %v697, %v472
    %v763 = vadd.f32 %v697, %v477
    %v764 = vadd.f32 %v701, %v482
    %v765 = vadd.f32 %v701, %v487
    %v766 = vadd.f32 %v705, %v492
    %v767 = vadd.f32 %v705, %v497
    %v768 = vadd.f32 %v709, %v502
    %v769 = vadd.f32 %v709, %v507
    %v770 = vadd.f32 %v713, %v512
    %v771 = vadd.f32 %v713, %v517
    %v772 = vadd.f32 %v717, %v522
    %v773 = vadd.f32 %v717, %v527
    %v774 = vadd.f32 %v721, %v532
    %v775 = vadd.f32 %v721, %v537
    %v776 = vadd.f32 %v725, %v542
    %v777 = vadd.f32 %v725, %v547
    %v778 = vadd.f32 %v729, %v552
    %v779 = vadd.f32 %v729, %v557
    %v780 = vadd.f32 %v733, %v562
    %v781 = vadd.f32 %v733, %v567
    %vm782 = vcmp.gt.f32.partialorder %v750, 0.0
    %vm783 = vcmp.gt.f32.partialorder %v751, 0.0
    %vm784 = vcmp.gt.f32.partialorder %v752, 0.0
    %vm785 = vcmp.gt.f32.partialorder %v753, 0.0
    %vm786 = vcmp.gt.f32.partialorder %v754, 0.0
    %vm787 = vcmp.gt.f32.partialorder %v755, 0.0
    %vm788 = vcmp.gt.f32.partialorder %v756, 0.0
    %vm789 = vcmp.gt.f32.partialorder %v757, 0.0
    %vm790 = vcmp.gt.f32.partialorder %v758, 0.0
    %vm791 = vcmp.gt.f32.partialorder %v759, 0.0
    %vm792 = vcmp.gt.f32.partialorder %v760, 0.0
    %vm793 = vcmp.gt.f32.partialorder %v761, 0.0
    %vm794 = vcmp.gt.f32.partialorder %v762, 0.0
    %vm795 = vcmp.gt.f32.partialorder %v763, 0.0
    %vm796 = vcmp.gt.f32.partialorder %v764, 0.0
    %vm797 = vcmp.gt.f32.partialorder %v765, 0.0
    %vm798 = vcmp.gt.f32.partialorder %v766, 0.0
    %vm799 = vcmp.gt.f32.partialorder %v767, 0.0
    %vm800 = vcmp.gt.f32.partialorder %v768, 0.0
    %vm801 = vcmp.gt.f32.partialorder %v769, 0.0
    %vm802 = vcmp.gt.f32.partialorder %v770, 0.0
    %vm803 = vcmp.gt.f32.partialorder %v771, 0.0
    %vm804 = vcmp.gt.f32.partialorder %v772, 0.0
    %vm805 = vcmp.gt.f32.partialorder %v773, 0.0
    %vm806 = vcmp.gt.f32.partialorder %v774, 0.0
    %vm807 = vcmp.gt.f32.partialorder %v775, 0.0
    %vm808 = vcmp.gt.f32.partialorder %v776, 0.0
    %vm809 = vcmp.gt.f32.partialorder %v777, 0.0
    %vm810 = vcmp.gt.f32.partialorder %v778, 0.0
    %vm811 = vcmp.gt.f32.partialorder %v779, 0.0
    %vm812 = vcmp.gt.f32.partialorder %v780, 0.0
    %vm813 = vcmp.gt.f32.partialorder %v781, 0.0
    %v814 = vmul.f32 %v750, 0.01
    %v815 = vmul.f32 %v751, 0.01
    %v816 = vmul.f32 %v752, 0.01
    %v817 = vmul.f32 %v753, 0.01
    %v818 = vmul.f32 %v754, 0.01
    %v819 = vmul.f32 %v755, 0.01
    %v820 = vmul.f32 %v756, 0.01
    %v821 = vmul.f32 %v757, 0.01
    %v822 = vmul.f32 %v758, 0.01
    %v823 = vmul.f32 %v759, 0.01
    %v824 = vmul.f32 %v760, 0.01
    %v825 = vmul.f32 %v761, 0.01
    %v826 = vmul.f32 %v762, 0.01
    %v827 = vmul.f32 %v763, 0.01
    %v828 = vmul.f32 %v764, 0.01
    %v829 = vmul.f32 %v765, 0.01
    %v830 = vmul.f32 %v766, 0.01
    %v831 = vmul.f32 %v767, 0.01
    %v832 = vmul.f32 %v768, 0.01
    %v833 = vmul.f32 %v769, 0.01
    %v834 = vmul.f32 %v770, 0.01
    %v835 = vmul.f32 %v771, 0.01
    %v836 = vmul.f32 %v772, 0.01
    %v837 = vmul.f32 %v773, 0.01
    %v838 = vmul.f32 %v774, 0.01
    %v839 = vmul.f32 %v775, 0.01
    %v840 = vmul.f32 %v776, 0.01
    %v841 = vmul.f32 %v777, 0.01
    %v842 = vmul.f32 %v778, 0.01
    %v843 = vmul.f32 %v779, 0.01
    %v844 = vmul.f32 %v780, 0.01
    %v845 = vmul.f32 %v781, 0.01
    %v846 = vsel %vm782, %v750, %v814
    %v847 = vsel %vm783, %v751, %v815
    %v848 = vsel %vm784, %v752, %v816
    %v849 = vsel %vm785, %v753, %v817
    %v850 = vsel %vm786, %v754, %v818
    %v851 = vsel %vm787, %v755, %v819
    %v852 = vsel %vm788, %v756, %v820
    %v853 = vsel %vm789, %v757, %v821
    %v854 = vsel %vm790, %v758, %v822
    %v855 = vsel %vm791, %v759, %v823
    %v856 = vsel %vm792, %v760, %v824
    %v857 = vsel %vm793, %v761, %v825
    %v858 = vsel %vm794, %v762, %v826
    %v859 = vsel %vm795, %v763, %v827
    %v860 = vsel %vm796, %v764, %v828
    %v861 = vsel %vm797, %v765, %v829
    %v862 = vsel %vm798, %v766, %v830
    %v863 = vsel %vm799, %v767, %v831
    %v864 = vsel %vm800, %v768, %v832
    %v865 = vsel %vm801, %v769, %v833
    %v866 = vsel %vm802, %v770, %v834
    %v867 = vsel %vm803, %v771, %v835
    %v868 = vsel %vm804, %v772, %v836
    %v869 = vsel %vm805, %v773, %v837
    %v870 = vsel %vm806, %v774, %v838
    %v871 = vsel %vm807, %v775, %v839
    %v872 = vsel %vm808, %v776, %v840
    %v873 = vsel %vm809, %v777, %v841
    %v874 = vsel %vm810, %v778, %v842
    %v875 = vsel %vm811, %v779, %v843
    %v876 = vsel %vm812, %v780, %v844
    %v877 = vsel %vm813, %v781, %v845
    %v878 = vld [vmem:[#allocation5 + $0x8] sm:$0xff]
    %v879 = vld [vmem:[#allocation5 + $0x10] sm:$0xff]
    %v880 = vld [vmem:[#allocation5 + $0x70] sm:$0xff]
    %v881 = vld [vmem:[#allocation5 + $0x78] sm:$0xff]
    %v882 = vld [vmem:[#allocation5 + $0xd8] sm:$0xff]
    %v883 = vld [vmem:[#allocation5 + $0xe0] sm:$0xff]
    %v884 = vld [vmem:[#allocation5 + $0x140] sm:$0xff]
    %v885 = vld [vmem:[#allocation5 + $0x148] sm:$0xff]
    %v886 = vld [vmem:[#allocation5 + $0x1a8] sm:$0xff]
    %v887 = vld [vmem:[#allocation5 + $0x1b0] sm:$0xff]
    %v888 = vld [vmem:[#allocation5 + $0x210] sm:$0xff]
    %v889 = vld [vmem:[#allocation5 + $0x218] sm:$0xff]
    %v890 = vld [vmem:[#allocation5 + $0x278] sm:$0xff]
    %v891 = vld [vmem:[#allocation5 + $0x280] sm:$0xff]
    %v892 = vld [vmem:[#allocation5 + $0x2e0] sm:$0xff]
    %v893 = vld [vmem:[#allocation5 + $0x2e8] sm:$0xff]
    %v894 = vld [vmem:[#allocation5 + $0x348] sm:$0xff]
    %v895 = vld [vmem:[#allocation5 + $0x350] sm:$0xff]
    %v896 = vld [vmem:[#allocation5 + $0x3b0] sm:$0xff]
    %v897 = vld [vmem:[#allocation5 + $0x3b8] sm:$0xff]
    %v898 = vld [vmem:[#allocation5 + $0x418] sm:$0xff]
    %v899 = vld [vmem:[#allocation5 + $0x420] sm:$0xff]
    %v900 = vld [vmem:[#allocation5 + $0x480] sm:$0xff]
    %v901 = vld [vmem:[#allocation5 + $0x488] sm:$0xff]
    %v902 = vld [vmem:[#allocation5 + $0x4e8] sm:$0xff]
    %v903 = vld [vmem:[#allocation5 + $0x4f0] sm:$0xff]
    %v904 = vld [vmem:[#allocation5 + $0x550] sm:$0xff]
    %v905 = vld [vmem:[#allocation5 + $0x558] sm:$0xff]
    %v906 = vld [vmem:[#allocation5 + $0x5b8] sm:$0xff]
    %v907 = vld [vmem:[#allocation5 + $0x5c0] sm:$0xff]
    %v908 = vld [vmem:[#allocation5 + $0x620] sm:$0xff]
    %v909 = vld [vmem:[#allocation5 + $0x628] sm:$0xff]
    %v910 = vld [vmem:[#allocation8 + $0x2] sm:$0x3]
    %v912 = vlaneseq
    %v913 = vshrl.u32 %v912, 7
    %v914 = vsub.s32 0, %v913
    %v915 = vrot.slane %v910, %v914
    %v916 = vlaneseq
    %v917 = vshrl.u32 %v916, 7
    %v918 = vsub.s32 1, %v917
    %v919 = vrot.slane %v910, %v918
    %922 = vmatprep.subr.mxu0 %v879
    %923 = vmatpush1.msra.mxu0 %v878
    %924 = vmatprep.subr.mxu0 %v881
    %925 = vmatpush1.msra.mxu0 %v880
    %926 = vmatprep.subr.mxu0 %v883
    %927 = vmatpush1.msra.mxu0 %v882
    %928 = vmatprep.subr.mxu0 %v885
    %929 = vmatpush1.msra.mxu0 %v884
    %930 = vmatprep.subr.mxu0 %v887
    %931 = vmatpush1.msra.mxu0 %v886
    %932 = vmatprep.subr.mxu0 %v889
    %933 = vmatpush1.msra.mxu0 %v888
    %934 = vmatprep.subr.mxu0 %v891
    %935 = vmatpush1.msra.mxu0 %v890
    %936 = vmatprep.subr.mxu0 %v893
    %937 = vmatpush1.msra.mxu0 %v892
    %938 = vmatprep.subr.mxu0 %v895
    %939 = vmatpush1.msra.mxu0 %v894
    %940 = vmatprep.subr.mxu0 %v897
    %941 = vmatpush1.msra.mxu0 %v896
    %942 = vmatprep.subr.mxu0 %v899
    %943 = vmatpush1.msra.mxu0 %v898
    %944 = vmatprep.subr.mxu0 %v901
    %945 = vmatpush1.msra.mxu0 %v900
    %946 = vmatprep.subr.mxu0 %v903
    %947 = vmatpush1.msra.mxu0 %v902
    %948 = vmatprep.subr.mxu0 %v905
    %949 = vmatpush1.msra.mxu0 %v904
    %950 = vmatprep.subr.mxu0 %v907
    %951 = vmatpush1.msra.mxu0 %v906
    %952 = vmatprep.subr.mxu0 %v909
    %953 = vmatpush1.msra.mxu0 %v908
    %954 = vmatprep.subr.mxu0 0.0
    %955 = vmatpush1.msra.mxu0 0.0
    %956 = vmatprep.subr.mxu0 0.0
    %957 = vmatpush1.msra.mxu0 0.0
    %958 = vmatprep.subr.mxu0 0.0
    %959 = vmatpush1.msra.mxu0 0.0
    %960 = vmatprep.subr.mxu0 0.0
    %961 = vmatpush1.msra.mxu0 0.0
    %962 = vmatprep.subr.mxu0 0.0
    %963 = vmatpush1.msra.mxu0 0.0
    %964 = vmatprep.subr.mxu0 0.0
    %965 = vmatpush1.msra.mxu0 0.0
    %966 = vmatprep.subr.mxu0 0.0
    %967 = vmatpush1.msra.mxu0 0.0
    %968 = vmatprep.subr.mxu0 0.0
    %969 = vmatpush1.msra.mxu0 0.0
    %970 = vmatprep.subr.mxu0 0.0
    %971 = vmatpush1.msra.mxu0 0.0
    %972 = vmatprep.subr.mxu0 0.0
    %973 = vmatpush1.msra.mxu0 0.0
    %974 = vmatprep.subr.mxu0 0.0
    %975 = vmatpush1.msra.mxu0 0.0
    %976 = vmatprep.subr.mxu0 0.0
    %977 = vmatpush1.msra.mxu0 0.0
    %978 = vmatprep.subr.mxu0 0.0
    %979 = vmatpush1.msra.mxu0 0.0
    %980 = vmatprep.subr.mxu0 0.0
    %981 = vmatpush1.msra.mxu0 0.0
    %982 = vmatprep.subr.mxu0 0.0
    %983 = vmatpush1.msra.mxu0 0.0
    %984 = vmatprep.subr.mxu0 0.0
    %985 = vmatpush1.msra.mxu0 0.0
    %986 = vmatprep.mubr.f32.mxu0 0.0
    %987 = vmatmul.mubr.f32.gmra.mrb[0].mxu0 %v846
    %v988 = vpop.f32.mrb[0].mxu0
    %v989 = vadd.f32 %v915, %v988
    %v990 = vpop.f32.mrb[0].mxu0
    %v991 = vadd.f32 %v919, %v990
    %992 = vmatprep.mubr.f32.mxu0 0.0
    %993 = vmatmul.mubr.f32.gmra.mrb[0].mxu0 %v847
    %v994 = vpop.f32.mrb[0].mxu0
    %v995 = vadd.f32 %v915, %v994
    %v996 = vpop.f32.mrb[0].mxu0
    %v997 = vadd.f32 %v919, %v996
    %998 = vmatprep.mubr.f32.mxu0 0.0
    %999 = vmatmul.mubr.f32.gmra.mrb[0].mxu0 %v848
    %v1000 = vpop.f32.mrb[0].mxu0
    %v1001 = vadd.f32 %v915, %v1000
    %v1002 = vpop.f32.mrb[0].mxu0
    %v1003 = vadd.f32 %v919, %v1002
    %1004 = vmatprep.mubr.f32.mxu0 0.0
    %1005 = vmatmul.mubr.f32.gmra.mrb[0].mxu0 %v849
    %v1006 = vpop.f32.mrb[0].mxu0
    %v1007 = vadd.f32 %v915, %v1006
    %v1008 = vpop.f32.mrb[0].mxu0
    %v1009 = vadd.f32 %v919, %v1008
    %1010 = vmatprep.mubr.f32.mxu0 0.0
    %1011 = vmatmul.mubr.f32.gmra.mrb[0].mxu0 %v850
    %v1012 = vpop.f32.mrb[0].mxu0
    %v1013 = vadd.f32 %v915, %v1012
    %v1014 = vpop.f32.mrb[0].mxu0
    %v1015 = vadd.f32 %v919, %v1014
    %1016 = vmatprep.mubr.f32.mxu0 0.0
    %1017 = vmatmul.mubr.f32.gmra.mrb[0].mxu0 %v851
    %v1018 = vpop.f32.mrb[0].mxu0
    %v1019 = vadd.f32 %v915, %v1018
    %v1020 = vpop.f32.mrb[0].mxu0
    %v1021 = vadd.f32 %v919, %v1020
    %1022 = vmatprep.mubr.f32.mxu0 0.0
    %1023 = vmatmul.mubr.f32.gmra.mrb[0].mxu0 %v852
    %v1024 = vpop.f32.mrb[0].mxu0
    %v1025 = vadd.f32 %v915, %v1024
    %v1026 = vpop.f32.mrb[0].mxu0
    %v1027 = vadd.f32 %v919, %v1026
    %1028 = vmatprep.mubr.f32.mxu0 0.0
    %1029 = vmatmul.mubr.f32.gmra.mrb[0].mxu0 %v853
    %v1030 = vpop.f32.mrb[0].mxu0
    %v1031 = vadd.f32 %v915, %v1030
    %v1032 = vpop.f32.mrb[0].mxu0
    %v1033 = vadd.f32 %v919, %v1032
    %1034 = vmatprep.mubr.f32.mxu0 0.0
    %1035 = vmatmul.mubr.f32.gmra.mrb[0].mxu0 %v854
    %v1036 = vpop.f32.mrb[0].mxu0
    %v1037 = vadd.f32 %v915, %v1036
    %v1038 = vpop.f32.mrb[0].mxu0
    %v1039 = vadd.f32 %v919, %v1038
    %1040 = vmatprep.mubr.f32.mxu0 0.0
    %1041 = vmatmul.mubr.f32.gmra.mrb[0].mxu0 %v855
    %v1042 = vpop.f32.mrb[0].mxu0
    %v1043 = vadd.f32 %v915, %v1042
    %v1044 = vpop.f32.mrb[0].mxu0
    %v1045 = vadd.f32 %v919, %v1044
    %1046 = vmatprep.mubr.f32.mxu0 0.0
    %1047 = vmatmul.mubr.f32.gmra.mrb[0].mxu0 %v856
    %v1048 = vpop.f32.mrb[0].mxu0
    %v1049 = vadd.f32 %v915, %v1048
    %v1050 = vpop.f32.mrb[0].mxu0
    %v1051 = vadd.f32 %v919, %v1050
    %1052 = vmatprep.mubr.f32.mxu0 0.0
    %1053 = vmatmul.mubr.f32.gmra.mrb[0].mxu0 %v857
    %v1054 = vpop.f32.mrb[0].mxu0
    %v1055 = vadd.f32 %v915, %v1054
    %v1056 = vpop.f32.mrb[0].mxu0
    %v1057 = vadd.f32 %v919, %v1056
    %1058 = vmatprep.mubr.f32.mxu0 0.0
    %1059 = vmatmul.mubr.f32.gmra.mrb[0].mxu0 %v858
    %v1060 = vpop.f32.mrb[0].mxu0
    %v1061 = vadd.f32 %v915, %v1060
    %v1062 = vpop.f32.mrb[0].mxu0
    %v1063 = vadd.f32 %v919, %v1062
    %1064 = vmatprep.mubr.f32.mxu0 0.0
    %1065 = vmatmul.mubr.f32.gmra.mrb[0].mxu0 %v859
    %v1066 = vpop.f32.mrb[0].mxu0
    %v1067 = vadd.f32 %v915, %v1066
    %v1068 = vpop.f32.mrb[0].mxu0
    %v1069 = vadd.f32 %v919, %v1068
    %1070 = vmatprep.mubr.f32.mxu0 0.0
    %1071 = vmatmul.mubr.f32.gmra.mrb[0].mxu0 %v860
    %v1072 = vpop.f32.mrb[0].mxu0
    %v1073 = vadd.f32 %v915, %v1072
    %v1074 = vpop.f32.mrb[0].mxu0
    %v1075 = vadd.f32 %v919, %v1074
    %1076 = vmatprep.mubr.f32.mxu0 0.0
    %1077 = vmatmul.mubr.f32.gmra.mrb[0].mxu0 %v861
    %v1078 = vpop.f32.mrb[0].mxu0
    %v1079 = vadd.f32 %v915, %v1078
    %v1080 = vpop.f32.mrb[0].mxu0
    %v1081 = vadd.f32 %v919, %v1080
    %1082 = vmatprep.mubr.f32.mxu0 0.0
    %1083 = vmatmul.mubr.f32.gmra.mrb[0].mxu0 %v862
    %v1084 = vpop.f32.mrb[0].mxu0
    %v1085 = vadd.f32 %v915, %v1084
    %v1086 = vpop.f32.mrb[0].mxu0
    %v1087 = vadd.f32 %v919, %v1086
    %1088 = vmatprep.mubr.f32.mxu0 0.0
    %1089 = vmatmul.mubr.f32.gmra.mrb[0].mxu0 %v863
    %v1090 = vpop.f32.mrb[0].mxu0
    %v1091 = vadd.f32 %v915, %v1090
    %v1092 = vpop.f32.mrb[0].mxu0
    %v1093 = vadd.f32 %v919, %v1092
    %1094 = vmatprep.mubr.f32.mxu0 0.0
    %1095 = vmatmul.mubr.f32.gmra.mrb[0].mxu0 %v864
    %v1096 = vpop.f32.mrb[0].mxu0
    %v1097 = vadd.f32 %v915, %v1096
    %v1098 = vpop.f32.mrb[0].mxu0
    %v1099 = vadd.f32 %v919, %v1098
    %1100 = vmatprep.mubr.f32.mxu0 0.0
    %1101 = vmatmul.mubr.f32.gmra.mrb[0].mxu0 %v865
    %v1102 = vpop.f32.mrb[0].mxu0
    %v1103 = vadd.f32 %v915, %v1102
    %v1104 = vpop.f32.mrb[0].mxu0
    %v1105 = vadd.f32 %v919, %v1104
    %1106 = vmatprep.mubr.f32.mxu0 0.0
    %1107 = vmatmul.mubr.f32.gmra.mrb[0].mxu0 %v866
    %v1108 = vpop.f32.mrb[0].mxu0
    %v1109 = vadd.f32 %v915, %v1108
    %v1110 = vpop.f32.mrb[0].mxu0
    %v1111 = vadd.f32 %v919, %v1110
    %1112 = vmatprep.mubr.f32.mxu0 0.0
    %1113 = vmatmul.mubr.f32.gmra.mrb[0].mxu0 %v867
    %v1114 = vpop.f32.mrb[0].mxu0
    %v1115 = vadd.f32 %v915, %v1114
    %v1116 = vpop.f32.mrb[0].mxu0
    %v1117 = vadd.f32 %v919, %v1116
    %1118 = vmatprep.mubr.f32.mxu0 0.0
    %1119 = vmatmul.mubr.f32.gmra.mrb[0].mxu0 %v868
    %v1120 = vpop.f32.mrb[0].mxu0
    %v1121 = vadd.f32 %v915, %v1120
    %v1122 = vpop.f32.mrb[0].mxu0
    %v1123 = vadd.f32 %v919, %v1122
    %1124 = vmatprep.mubr.f32.mxu0 0.0
    %1125 = vmatmul.mubr.f32.gmra.mrb[0].mxu0 %v869
    %v1126 = vpop.f32.mrb[0].mxu0
    %v1127 = vadd.f32 %v915, %v1126
    %v1128 = vpop.f32.mrb[0].mxu0
    %v1129 = vadd.f32 %v919, %v1128
    %1130 = vmatprep.mubr.f32.mxu0 0.0
    %1131 = vmatmul.mubr.f32.gmra.mrb[0].mxu0 %v870
    %v1132 = vpop.f32.mrb[0].mxu0
    %v1133 = vadd.f32 %v915, %v1132
    %v1134 = vpop.f32.mrb[0].mxu0
    %v1135 = vadd.f32 %v919, %v1134
    %1136 = vmatprep.mubr.f32.mxu0 0.0
    %1137 = vmatmul.mubr.f32.gmra.mrb[0].mxu0 %v871
    %v1138 = vpop.f32.mrb[0].mxu0
    %v1139 = vadd.f32 %v915, %v1138
    %v1140 = vpop.f32.mrb[0].mxu0
    %v1141 = vadd.f32 %v919, %v1140
    %1142 = vmatprep.mubr.f32.mxu0 0.0
    %1143 = vmatmul.mubr.f32.gmra.mrb[0].mxu0 %v872
    %v1144 = vpop.f32.mrb[0].mxu0
    %v1145 = vadd.f32 %v915, %v1144
    %v1146 = vpop.f32.mrb[0].mxu0
    %v1147 = vadd.f32 %v919, %v1146
    %1148 = vmatprep.mubr.f32.mxu0 0.0
    %1149 = vmatmul.mubr.f32.gmra.mrb[0].mxu0 %v873
    %v1150 = vpop.f32.mrb[0].mxu0
    %v1151 = vadd.f32 %v915, %v1150
    %v1152 = vpop.f32.mrb[0].mxu0
    %v1153 = vadd.f32 %v919, %v1152
    %1154 = vmatprep.mubr.f32.mxu0 0.0
    %1155 = vmatmul.mubr.f32.gmra.mrb[0].mxu0 %v874
    %v1156 = vpop.f32.mrb[0].mxu0
    %v1157 = vadd.f32 %v915, %v1156
    %v1158 = vpop.f32.mrb[0].mxu0
    %v1159 = vadd.f32 %v919, %v1158
    %1160 = vmatprep.mubr.f32.mxu0 0.0
    %1161 = vmatmul.mubr.f32.gmra.mrb[0].mxu0 %v875
    %v1162 = vpop.f32.mrb[0].mxu0
    %v1163 = vadd.f32 %v915, %v1162
    %v1164 = vpop.f32.mrb[0].mxu0
    %v1165 = vadd.f32 %v919, %v1164
    %1166 = vmatprep.mubr.f32.mxu0 0.0
    %1167 = vmatmul.mubr.f32.gmra.mrb[0].mxu0 %v876
    %v1168 = vpop.f32.mrb[0].mxu0
    %v1169 = vadd.f32 %v915, %v1168
    %v1170 = vpop.f32.mrb[0].mxu0
    %v1171 = vadd.f32 %v919, %v1170
    %1172 = vmatprep.mubr.f32.mxu0 0.0
    %1173 = vmatmul.mubr.f32.gmra.mrb[0].mxu0 %v877
    %v1174 = vpop.f32.mrb[0].mxu0
    %v1175 = vadd.f32 %v915, %v1174
    %v1176 = vpop.f32.mrb[0].mxu0
    %v1177 = vadd.f32 %v919, %v1176
    %1178 = vdwg.mxu0
    %v1179 = vld [vmem:[#allocation5] sm:$0xff]
    %v1180 = vld [vmem:[#allocation5 + $0x68] sm:$0xff]
    %v1181 = vld [vmem:[#allocation5 + $0xd0] sm:$0xff]
    %v1182 = vld [vmem:[#allocation5 + $0x138] sm:$0xff]
    %v1183 = vld [vmem:[#allocation5 + $0x1a0] sm:$0xff]
    %v1184 = vld [vmem:[#allocation5 + $0x208] sm:$0xff]
    %v1185 = vld [vmem:[#allocation5 + $0x270] sm:$0xff]
    %v1186 = vld [vmem:[#allocation5 + $0x2d8] sm:$0xff]
    %v1187 = vld [vmem:[#allocation5 + $0x340] sm:$0xff]
    %v1188 = vld [vmem:[#allocation5 + $0x3a8] sm:$0xff]
    %v1189 = vld [vmem:[#allocation5 + $0x410] sm:$0xff]
    %v1190 = vld [vmem:[#allocation5 + $0x478] sm:$0xff]
    %v1191 = vld [vmem:[#allocation5 + $0x4e0] sm:$0xff]
    %v1192 = vld [vmem:[#allocation5 + $0x548] sm:$0xff]
    %v1193 = vld [vmem:[#allocation5 + $0x5b0] sm:$0xff]
    %v1194 = vld [vmem:[#allocation5 + $0x618] sm:$0xff]
    %1195 = vmatprep.subr.mxu0 0.0
    %1196 = vmatpush1.msra.mxu0 %v1179
    %1197 = vmatprep.subr.mxu0 0.0
    %1198 = vmatpush1.msra.mxu0 %v1180
    %1199 = vmatprep.subr.mxu0 0.0
    %1200 = vmatpush1.msra.mxu0 %v1181
    %1201 = vmatprep.subr.mxu0 0.0
    %1202 = vmatpush1.msra.mxu0 %v1182
    %1203 = vmatprep.subr.mxu0 0.0
    %1204 = vmatpush1.msra.mxu0 %v1183
    %1205 = vmatprep.subr.mxu0 0.0
    %1206 = vmatpush1.msra.mxu0 %v1184
    %1207 = vmatprep.subr.mxu0 0.0
    %1208 = vmatpush1.msra.mxu0 %v1185
    %1209 = vmatprep.subr.mxu0 0.0
    %1210 = vmatpush1.msra.mxu0 %v1186
    %1211 = vmatprep.subr.mxu0 0.0
    %1212 = vmatpush1.msra.mxu0 %v1187
    %1213 = vmatprep.subr.mxu0 0.0
    %1214 = vmatpush1.msra.mxu0 %v1188
    %1215 = vmatprep.subr.mxu0 0.0
    %1216 = vmatpush1.msra.mxu0 %v1189
    %1217 = vmatprep.subr.mxu0 0.0
    %1218 = vmatpush1.msra.mxu0 %v1190
    %1219 = vmatprep.subr.mxu0 0.0
    %1220 = vmatpush1.msra.mxu0 %v1191
    %1221 = vmatprep.subr.mxu0 0.0
    %1222 = vmatpush1.msra.mxu0 %v1192
    %1223 = vmatprep.subr.mxu0 0.0
    %1224 = vmatpush1.msra.mxu0 %v1193
    %1225 = vmatprep.subr.mxu0 0.0
    %1226 = vmatpush1.msra.mxu0 %v1194
    %1227 = vmatprep.subr.mxu0 0.0
    %1228 = vmatpush1.msra.mxu0 0.0
    %1229 = vmatprep.subr.mxu0 0.0
    %1230 = vmatpush1.msra.mxu0 0.0
    %1231 = vmatprep.subr.mxu0 0.0
    %1232 = vmatpush1.msra.mxu0 0.0
    %1233 = vmatprep.subr.mxu0 0.0
    %1234 = vmatpush1.msra.mxu0 0.0
    %1235 = vmatprep.subr.mxu0 0.0
    %1236 = vmatpush1.msra.mxu0 0.0
    %1237 = vmatprep.subr.mxu0 0.0
    %1238 = vmatpush1.msra.mxu0 0.0
    %1239 = vmatprep.subr.mxu0 0.0
    %1240 = vmatpush1.msra.mxu0 0.0
    %1241 = vmatprep.subr.mxu0 0.0
    %1242 = vmatpush1.msra.mxu0 0.0
    %1243 = vmatprep.subr.mxu0 0.0
    %1244 = vmatpush1.msra.mxu0 0.0
    %1245 = vmatprep.subr.mxu0 0.0
    %1246 = vmatpush1.msra.mxu0 0.0
    %1247 = vmatprep.subr.mxu0 0.0
    %1248 = vmatpush1.msra.mxu0 0.0
    %1249 = vmatprep.subr.mxu0 0.0
    %1250 = vmatpush1.msra.mxu0 0.0
    %1251 = vmatprep.subr.mxu0 0.0
    %1252 = vmatpush1.msra.mxu0 0.0
    %1253 = vmatprep.subr.mxu0 0.0
    %1254 = vmatpush1.msra.mxu0 0.0
    %1255 = vmatprep.subr.mxu0 0.0
    %1256 = vmatpush1.msra.mxu0 0.0
    %1257 = vmatprep.subr.mxu0 0.0
    %1258 = vmatpush1.msra.mxu0 0.0
    %1259 = vmatprep.mubr.f32.mxu0 0.0
    %1260 = vmatmul.mubr.f32.gmra.mrb[0].mxu0 %v214
    %v1261 = vpop.f32.mrb[0].mxu0
    %v1262 = vadd.f32 0.0, %v1261
    %v1263 = vpop.f32.mrb[0].mxu0
    %1264 = vmatprep.mubr.f32.mxu0 0.0
    %1265 = vmatmul.mubr.f32.gmra.mrb[0].mxu0 %v215
    %v1266 = vpop.f32.mrb[0].mxu0
    %v1267 = vadd.f32 0.0, %v1266
    %v1268 = vpop.f32.mrb[0].mxu0
    %1269 = vdwg.mxu0
    %v1270 = vadd.f32 %v1262, %v989
    %v1271 = vadd.f32 %v1267, %v995
    %v1272 = vadd.f32 %v1262, %v1001
    %v1273 = vadd.f32 %v1267, %v1007
    %v1274 = vadd.f32 %v1262, %v1013
    %v1275 = vadd.f32 %v1267, %v1019
    %v1276 = vadd.f32 %v1262, %v1025
    %v1277 = vadd.f32 %v1267, %v1031
    %v1278 = vadd.f32 %v1262, %v1037
    %v1279 = vadd.f32 %v1267, %v1043
    %v1280 = vadd.f32 %v1262, %v1049
    %v1281 = vadd.f32 %v1267, %v1055
    %v1282 = vadd.f32 %v1262, %v1061
    %v1283 = vadd.f32 %v1267, %v1067
    %v1284 = vadd.f32 %v1262, %v1073
    %v1285 = vadd.f32 %v1267, %v1079
    %v1286 = vadd.f32 %v1262, %v1085
    %v1287 = vadd.f32 %v1267, %v1091
    %v1288 = vadd.f32 %v1262, %v1097
    %v1289 = vadd.f32 %v1267, %v1103
    %v1290 = vadd.f32 %v1262, %v1109
    %v1291 = vadd.f32 %v1267, %v1115
    %v1292 = vadd.f32 %v1262, %v1121
    %v1293 = vadd.f32 %v1267, %v1127
    %v1294 = vadd.f32 %v1262, %v1133
    %v1295 = vadd.f32 %v1267, %v1139
    %v1296 = vadd.f32 %v1262, %v1145
    %v1297 = vadd.f32 %v1267, %v1151
    %v1298 = vadd.f32 %v1262, %v1157
    %v1299 = vadd.f32 %v1267, %v1163
    %v1300 = vadd.f32 %v1262, %v1169
    %v1301 = vadd.f32 %v1267, %v1175
    %vm1302 = vcmp.gt.f32.partialorder %v1270, 0.0
    %vm1303 = vcmp.gt.f32.partialorder %v1271, 0.0
    %vm1304 = vcmp.gt.f32.partialorder %v1272, 0.0
    %vm1305 = vcmp.gt.f32.partialorder %v1273, 0.0
    %vm1306 = vcmp.gt.f32.partialorder %v1274, 0.0
    %vm1307 = vcmp.gt.f32.partialorder %v1275, 0.0
    %vm1308 = vcmp.gt.f32.partialorder %v1276, 0.0
    %vm1309 = vcmp.gt.f32.partialorder %v1277, 0.0
    %vm1310 = vcmp.gt.f32.partialorder %v1278, 0.0
    %vm1311 = vcmp.gt.f32.partialorder %v1279, 0.0
    %vm1312 = vcmp.gt.f32.partialorder %v1280, 0.0
    %vm1313 = vcmp.gt.f32.partialorder %v1281, 0.0
    %vm1314 = vcmp.gt.f32.partialorder %v1282, 0.0
    %vm1315 = vcmp.gt.f32.partialorder %v1283, 0.0
    %vm1316 = vcmp.gt.f32.partialorder %v1284, 0.0
    %vm1317 = vcmp.gt.f32.partialorder %v1285, 0.0
    %vm1318 = vcmp.gt.f32.partialorder %v1286, 0.0
    %vm1319 = vcmp.gt.f32.partialorder %v1287, 0.0
    %vm1320 = vcmp.gt.f32.partialorder %v1288, 0.0
    %vm1321 = vcmp.gt.f32.partialorder %v1289, 0.0
    %vm1322 = vcmp.gt.f32.partialorder %v1290, 0.0
    %vm1323 = vcmp.gt.f32.partialorder %v1291, 0.0
    %vm1324 = vcmp.gt.f32.partialorder %v1292, 0.0
    %vm1325 = vcmp.gt.f32.partialorder %v1293, 0.0
    %vm1326 = vcmp.gt.f32.partialorder %v1294, 0.0
    %vm1327 = vcmp.gt.f32.partialorder %v1295, 0.0
    %vm1328 = vcmp.gt.f32.partialorder %v1296, 0.0
    %vm1329 = vcmp.gt.f32.partialorder %v1297, 0.0
    %vm1330 = vcmp.gt.f32.partialorder %v1298, 0.0
    %vm1331 = vcmp.gt.f32.partialorder %v1299, 0.0
    %vm1332 = vcmp.gt.f32.partialorder %v1300, 0.0
    %vm1333 = vcmp.gt.f32.partialorder %v1301, 0.0
    %v1334 = vmul.f32 %v1270, 0.01
    %v1335 = vmul.f32 %v1271, 0.01
    %v1336 = vmul.f32 %v1272, 0.01
    %v1337 = vmul.f32 %v1273, 0.01
    %v1338 = vmul.f32 %v1274, 0.01
    %v1339 = vmul.f32 %v1275, 0.01
    %v1340 = vmul.f32 %v1276, 0.01
    %v1341 = vmul.f32 %v1277, 0.01
    %v1342 = vmul.f32 %v1278, 0.01
    %v1343 = vmul.f32 %v1279, 0.01
    %v1344 = vmul.f32 %v1280, 0.01
    %v1345 = vmul.f32 %v1281, 0.01
    %v1346 = vmul.f32 %v1282, 0.01
    %v1347 = vmul.f32 %v1283, 0.01
    %v1348 = vmul.f32 %v1284, 0.01
    %v1349 = vmul.f32 %v1285, 0.01
    %v1350 = vmul.f32 %v1286, 0.01
    %v1351 = vmul.f32 %v1287, 0.01
    %v1352 = vmul.f32 %v1288, 0.01
    %v1353 = vmul.f32 %v1289, 0.01
    %v1354 = vmul.f32 %v1290, 0.01
    %v1355 = vmul.f32 %v1291, 0.01
    %v1356 = vmul.f32 %v1292, 0.01
    %v1357 = vmul.f32 %v1293, 0.01
    %v1358 = vmul.f32 %v1294, 0.01
    %v1359 = vmul.f32 %v1295, 0.01
    %v1360 = vmul.f32 %v1296, 0.01
    %v1361 = vmul.f32 %v1297, 0.01
    %v1362 = vmul.f32 %v1298, 0.01
    %v1363 = vmul.f32 %v1299, 0.01
    %v1364 = vmul.f32 %v1300, 0.01
    %v1365 = vmul.f32 %v1301, 0.01
    %v1366 = vsel %vm1302, %v1270, %v1334
    %v1367 = vsel %vm1303, %v1271, %v1335
    %v1368 = vsel %vm1304, %v1272, %v1336
    %v1369 = vsel %vm1305, %v1273, %v1337
    %v1370 = vsel %vm1306, %v1274, %v1338
    %v1371 = vsel %vm1307, %v1275, %v1339
    %v1372 = vsel %vm1308, %v1276, %v1340
    %v1373 = vsel %vm1309, %v1277, %v1341
    %v1374 = vsel %vm1310, %v1278, %v1342
    %v1375 = vsel %vm1311, %v1279, %v1343
    %v1376 = vsel %vm1312, %v1280, %v1344
    %v1377 = vsel %vm1313, %v1281, %v1345
    %v1378 = vsel %vm1314, %v1282, %v1346
    %v1379 = vsel %vm1315, %v1283, %v1347
    %v1380 = vsel %vm1316, %v1284, %v1348
    %v1381 = vsel %vm1317, %v1285, %v1349
    %v1382 = vsel %vm1318, %v1286, %v1350
    %v1383 = vsel %vm1319, %v1287, %v1351
    %v1384 = vsel %vm1320, %v1288, %v1352
    %v1385 = vsel %vm1321, %v1289, %v1353
    %v1386 = vsel %vm1322, %v1290, %v1354
    %v1387 = vsel %vm1323, %v1291, %v1355
    %v1388 = vsel %vm1324, %v1292, %v1356
    %v1389 = vsel %vm1325, %v1293, %v1357
    %v1390 = vsel %vm1326, %v1294, %v1358
    %v1391 = vsel %vm1327, %v1295, %v1359
    %v1392 = vsel %vm1328, %v1296, %v1360
    %v1393 = vsel %vm1329, %v1297, %v1361
    %v1394 = vsel %vm1330, %v1298, %v1362
    %v1395 = vsel %vm1331, %v1299, %v1363
    %v1396 = vsel %vm1332, %v1300, %v1364
    %v1397 = vsel %vm1333, %v1301, %v1365
    %vm1398 = vcmp.gt.f32.partialorder %v78, 0.0
    %vm1399 = vcmp.gt.f32.partialorder %v79, 0.0
    %vm1400 = vcmp.gt.f32.partialorder %v80, 0.0
    %vm1401 = vcmp.gt.f32.partialorder %v81, 0.0
    %vm1402 = vcmp.gt.f32.partialorder %v82, 0.0
    %vm1403 = vcmp.gt.f32.partialorder %v83, 0.0
    %vm1404 = vcmp.gt.f32.partialorder %v84, 0.0
    %vm1405 = vcmp.gt.f32.partialorder %v85, 0.0
    %vm1406 = vcmp.gt.f32.partialorder %v86, 0.0
    %vm1407 = vcmp.gt.f32.partialorder %v87, 0.0
    %vm1408 = vcmp.gt.f32.partialorder %v88, 0.0
    %vm1409 = vcmp.gt.f32.partialorder %v89, 0.0
    %vm1410 = vcmp.gt.f32.partialorder %v90, 0.0
    %vm1411 = vcmp.gt.f32.partialorder %v91, 0.0
    %vm1412 = vcmp.gt.f32.partialorder %v92, 0.0
    %vm1413 = vcmp.gt.f32.partialorder %v93, 0.0
    %vm1414 = vcmp.gt.f32.partialorder %v94, 0.0
    %vm1415 = vcmp.gt.f32.partialorder %v95, 0.0
    %vm1416 = vcmp.gt.f32.partialorder %v96, 0.0
    %vm1417 = vcmp.gt.f32.partialorder %v97, 0.0
    %vm1418 = vcmp.gt.f32.partialorder %v98, 0.0
    %vm1419 = vcmp.gt.f32.partialorder %v99, 0.0
    %vm1420 = vcmp.gt.f32.partialorder %v100, 0.0
    %vm1421 = vcmp.gt.f32.partialorder %v101, 0.0
    %vm1422 = vcmp.gt.f32.partialorder %v102, 0.0
    %vm1423 = vcmp.gt.f32.partialorder %v103, 0.0
    %vm1424 = vcmp.gt.f32.partialorder %v104, 0.0
    %vm1425 = vcmp.gt.f32.partialorder %v105, 0.0
    %vm1426 = vcmp.gt.f32.partialorder %v106, 0.0
    %vm1427 = vcmp.gt.f32.partialorder %v107, 0.0
    %vm1428 = vcmp.gt.f32.partialorder %v108, 0.0
    %vm1429 = vcmp.gt.f32.partialorder %v109, 0.0
    %v1430 = vsel %vm1398, 1, 0
    %v1431 = vsel %vm1399, 1, 0
    %v1432 = vsel %vm1400, 1, 0
    %v1433 = vsel %vm1401, 1, 0
    %v1434 = vsel %vm1402, 1, 0
    %v1435 = vsel %vm1403, 1, 0
    %v1436 = vsel %vm1404, 1, 0
    %v1437 = vsel %vm1405, 1, 0
    %v1438 = vsel %vm1406, 1, 0
    %v1439 = vsel %vm1407, 1, 0
    %v1440 = vsel %vm1408, 1, 0
    %v1441 = vsel %vm1409, 1, 0
    %v1442 = vsel %vm1410, 1, 0
    %v1443 = vsel %vm1411, 1, 0
    %v1444 = vsel %vm1412, 1, 0
    %v1445 = vsel %vm1413, 1, 0
    %v1446 = vsel %vm1414, 1, 0
    %v1447 = vsel %vm1415, 1, 0
    %v1448 = vsel %vm1416, 1, 0
    %v1449 = vsel %vm1417, 1, 0
    %v1450 = vsel %vm1418, 1, 0
    %v1451 = vsel %vm1419, 1, 0
    %v1452 = vsel %vm1420, 1, 0
    %v1453 = vsel %vm1421, 1, 0
    %v1454 = vsel %vm1422, 1, 0
    %v1455 = vsel %vm1423, 1, 0
    %v1456 = vsel %vm1424, 1, 0
    %v1457 = vsel %vm1425, 1, 0
    %v1458 = vsel %vm1426, 1, 0
    %v1459 = vsel %vm1427, 1, 0
    %v1460 = vsel %vm1428, 1, 0
    %v1461 = vsel %vm1429, 1, 0
    %1462 = vset.pattern.permute.xlu0 0
    %1463 = vperm.xlu0 %1462, %v1430
    %v1464 = vpop.permute.xlu0 %1463
    %1465 = vset.pattern.permute.xlu0 0
    %1466 = vperm.xlu0 %1465, %v1431
    %v1467 = vpop.permute.xlu0 %1466
    %1468 = vset.pattern.permute.xlu0 0
    %1469 = vperm.xlu0 %1468, %v1432
    %v1470 = vpop.permute.xlu0 %1469
    %1471 = vset.pattern.permute.xlu0 0
    %1472 = vperm.xlu0 %1471, %v1433
    %v1473 = vpop.permute.xlu0 %1472
    %1474 = vset.pattern.permute.xlu0 0
    %1475 = vperm.xlu0 %1474, %v1434
    %v1476 = vpop.permute.xlu0 %1475
    %1477 = vset.pattern.permute.xlu0 0
    %1478 = vperm.xlu0 %1477, %v1435
    %v1479 = vpop.permute.xlu0 %1478
    %1480 = vset.pattern.permute.xlu0 0
    %1481 = vperm.xlu0 %1480, %v1436
    %v1482 = vpop.permute.xlu0 %1481
    %1483 = vset.pattern.permute.xlu0 0
    %1484 = vperm.xlu0 %1483, %v1437
    %v1485 = vpop.permute.xlu0 %1484
    %1486 = vset.pattern.permute.xlu0 0
    %1487 = vperm.xlu0 %1486, %v1438
    %v1488 = vpop.permute.xlu0 %1487
    %1489 = vset.pattern.permute.xlu0 0
    %1490 = vperm.xlu0 %1489, %v1439
    %v1491 = vpop.permute.xlu0 %1490
    %1492 = vset.pattern.permute.xlu0 0
    %1493 = vperm.xlu0 %1492, %v1440
    %v1494 = vpop.permute.xlu0 %1493
    %1495 = vset.pattern.permute.xlu0 0
    %1496 = vperm.xlu0 %1495, %v1441
    %v1497 = vpop.permute.xlu0 %1496
    %1498 = vset.pattern.permute.xlu0 0
    %1499 = vperm.xlu0 %1498, %v1442
    %v1500 = vpop.permute.xlu0 %1499
    %1501 = vset.pattern.permute.xlu0 0
    %1502 = vperm.xlu0 %1501, %v1443
    %v1503 = vpop.permute.xlu0 %1502
    %1504 = vset.pattern.permute.xlu0 0
    %1505 = vperm.xlu0 %1504, %v1444
    %v1506 = vpop.permute.xlu0 %1505
    %1507 = vset.pattern.permute.xlu0 0
    %1508 = vperm.xlu0 %1507, %v1445
    %v1509 = vpop.permute.xlu0 %1508
    %1510 = vset.pattern.permute.xlu0 0
    %1511 = vperm.xlu0 %1510, %v1446
    %v1512 = vpop.permute.xlu0 %1511
    %1513 = vset.pattern.permute.xlu0 0
    %1514 = vperm.xlu0 %1513, %v1447
    %v1515 = vpop.permute.xlu0 %1514
    %1516 = vset.pattern.permute.xlu0 0
    %1517 = vperm.xlu0 %1516, %v1448
    %v1518 = vpop.permute.xlu0 %1517
    %1519 = vset.pattern.permute.xlu0 0
    %1520 = vperm.xlu0 %1519, %v1449
    %v1521 = vpop.permute.xlu0 %1520
    %1522 = vset.pattern.permute.xlu0 0
    %1523 = vperm.xlu0 %1522, %v1450
    %v1524 = vpop.permute.xlu0 %1523
    %1525 = vset.pattern.permute.xlu0 0
    %1526 = vperm.xlu0 %1525, %v1451
    %v1527 = vpop.permute.xlu0 %1526
    %1528 = vset.pattern.permute.xlu0 0
    %1529 = vperm.xlu0 %1528, %v1452
    %v1530 = vpop.permute.xlu0 %1529
    %1531 = vset.pattern.permute.xlu0 0
    %1532 = vperm.xlu0 %1531, %v1453
    %v1533 = vpop.permute.xlu0 %1532
    %1534 = vset.pattern.permute.xlu0 0
    %1535 = vperm.xlu0 %1534, %v1454
    %v1536 = vpop.permute.xlu0 %1535
    %1537 = vset.pattern.permute.xlu0 0
    %1538 = vperm.xlu0 %1537, %v1455
    %v1539 = vpop.permute.xlu0 %1538
    %1540 = vset.pattern.permute.xlu0 0
    %1541 = vperm.xlu0 %1540, %v1456
    %v1542 = vpop.permute.xlu0 %1541
    %1543 = vset.pattern.permute.xlu0 0
    %1544 = vperm.xlu0 %1543, %v1457
    %v1545 = vpop.permute.xlu0 %1544
    %1546 = vset.pattern.permute.xlu0 0
    %1547 = vperm.xlu0 %1546, %v1458
    %v1548 = vpop.permute.xlu0 %1547
    %1549 = vset.pattern.permute.xlu0 0
    %1550 = vperm.xlu0 %1549, %v1459
    %v1551 = vpop.permute.xlu0 %1550
    %1552 = vset.pattern.permute.xlu0 0
    %1553 = vperm.xlu0 %1552, %v1460
    %v1554 = vpop.permute.xlu0 %1553
    %1555 = vset.pattern.permute.xlu0 0
    %1556 = vperm.xlu0 %1555, %v1461
    %v1557 = vpop.permute.xlu0 %1556
    %vm1558 = vcmp.eq.s32.totalorder %v1464, 1
    %vm1559 = vcmp.eq.s32.totalorder %v1467, 1
    %vm1560 = vcmp.eq.s32.totalorder %v1470, 1
    %vm1561 = vcmp.eq.s32.totalorder %v1473, 1
    %vm1562 = vcmp.eq.s32.totalorder %v1476, 1
    %vm1563 = vcmp.eq.s32.totalorder %v1479, 1
    %vm1564 = vcmp.eq.s32.totalorder %v1482, 1
    %vm1565 = vcmp.eq.s32.totalorder %v1485, 1
    %vm1566 = vcmp.eq.s32.totalorder %v1488, 1
    %vm1567 = vcmp.eq.s32.totalorder %v1491, 1
    %vm1568 = vcmp.eq.s32.totalorder %v1494, 1
    %vm1569 = vcmp.eq.s32.totalorder %v1497, 1
    %vm1570 = vcmp.eq.s32.totalorder %v1500, 1
    %vm1571 = vcmp.eq.s32.totalorder %v1503, 1
    %vm1572 = vcmp.eq.s32.totalorder %v1506, 1
    %vm1573 = vcmp.eq.s32.totalorder %v1509, 1
    %vm1574 = vcmp.eq.s32.totalorder %v1512, 1
    %vm1575 = vcmp.eq.s32.totalorder %v1515, 1
    %vm1576 = vcmp.eq.s32.totalorder %v1518, 1
    %vm1577 = vcmp.eq.s32.totalorder %v1521, 1
    %vm1578 = vcmp.eq.s32.totalorder %v1524, 1
    %vm1579 = vcmp.eq.s32.totalorder %v1527, 1
    %vm1580 = vcmp.eq.s32.totalorder %v1530, 1
    %vm1581 = vcmp.eq.s32.totalorder %v1533, 1
    %vm1582 = vcmp.eq.s32.totalorder %v1536, 1
    %vm1583 = vcmp.eq.s32.totalorder %v1539, 1
    %vm1584 = vcmp.eq.s32.totalorder %v1542, 1
    %vm1585 = vcmp.eq.s32.totalorder %v1545, 1
    %vm1586 = vcmp.eq.s32.totalorder %v1548, 1
    %vm1587 = vcmp.eq.s32.totalorder %v1551, 1
    %vm1588 = vcmp.eq.s32.totalorder %v1554, 1
    %vm1589 = vcmp.eq.s32.totalorder %v1557, 1
    %v1590 = vsel %vm1558, %v1366, -1e+09
    %v1591 = vsel %vm1559, %v1367, -1e+09
    %v1592 = vsel %vm1560, %v1368, -1e+09
    %v1593 = vsel %vm1561, %v1369, -1e+09
    %v1594 = vsel %vm1562, %v1370, -1e+09
    %v1595 = vsel %vm1563, %v1371, -1e+09
    %v1596 = vsel %vm1564, %v1372, -1e+09
    %v1597 = vsel %vm1565, %v1373, -1e+09
    %v1598 = vsel %vm1566, %v1374, -1e+09
    %v1599 = vsel %vm1567, %v1375, -1e+09
    %v1600 = vsel %vm1568, %v1376, -1e+09
    %v1601 = vsel %vm1569, %v1377, -1e+09
    %v1602 = vsel %vm1570, %v1378, -1e+09
    %v1603 = vsel %vm1571, %v1379, -1e+09
    %v1604 = vsel %vm1572, %v1380, -1e+09
    %v1605 = vsel %vm1573, %v1381, -1e+09
    %v1606 = vsel %vm1574, %v1382, -1e+09
    %v1607 = vsel %vm1575, %v1383, -1e+09
    %v1608 = vsel %vm1576, %v1384, -1e+09
    %v1609 = vsel %vm1577, %v1385, -1e+09
    %v1610 = vsel %vm1578, %v1386, -1e+09
    %v1611 = vsel %vm1579, %v1387, -1e+09
    %v1612 = vsel %vm1580, %v1388, -1e+09
    %v1613 = vsel %vm1581, %v1389, -1e+09
    %v1614 = vsel %vm1582, %v1390, -1e+09
    %v1615 = vsel %vm1583, %v1391, -1e+09
    %v1616 = vsel %vm1584, %v1392, -1e+09
    %v1617 = vsel %vm1585, %v1393, -1e+09
    %v1618 = vsel %vm1586, %v1394, -1e+09
    %v1619 = vsel %vm1587, %v1395, -1e+09
    %v1620 = vsel %vm1588, %v1396, -1e+09
    %v1621 = vsel %vm1589, %v1397, -1e+09
    %v1622 = vmax.f32 %v1590, %v1594
    %v1623 = vmax.f32 %v1592, %v1596
    %v1624 = vmax.f32 %v1622, %v1598
    %v1625 = vmax.f32 %v1623, %v1600
    %v1626 = vmax.f32 %v1624, %v1602
    %v1627 = vmax.f32 %v1625, %v1604
    %v1628 = vmax.f32 %v1626, %v1606
    %v1629 = vmax.f32 %v1627, %v1608
    %v1630 = vmax.f32 %v1628, %v1610
    %v1631 = vmax.f32 %v1629, %v1612
    %v1632 = vmax.f32 %v1630, %v1614
    %v1633 = vmax.f32 %v1631, %v1616
    %v1634 = vmax.f32 %v1632, %v1618
    %v1635 = vmax.f32 %v1633, %v1620
    %v1636 = vmax.f32 %v1634, %v1635
    %v1637 = vmax.f32 %v1591, %v1595
    %v1638 = vmax.f32 %v1593, %v1597
    %v1639 = vmax.f32 %v1637, %v1599
    %v1640 = vmax.f32 %v1638, %v1601
    %v1641 = vmax.f32 %v1639, %v1603
    %v1642 = vmax.f32 %v1640, %v1605
    %v1643 = vmax.f32 %v1641, %v1607
    %v1644 = vmax.f32 %v1642, %v1609
    %v1645 = vmax.f32 %v1643, %v1611
    %v1646 = vmax.f32 %v1644, %v1613
    %v1647 = vmax.f32 %v1645, %v1615
    %v1648 = vmax.f32 %v1646, %v1617
    %v1649 = vmax.f32 %v1647, %v1619
    %v1650 = vmax.f32 %v1648, %v1621
    %v1651 = vmax.f32 %v1649, %v1650
    %v1652 = vsub.f32 %v1590, %v1636
    %v1653 = vsub.f32 %v1591, %v1651
    %v1654 = vsub.f32 %v1592, %v1636
    %v1655 = vsub.f32 %v1593, %v1651
    %v1656 = vsub.f32 %v1594, %v1636
    %v1657 = vsub.f32 %v1595, %v1651
    %v1658 = vsub.f32 %v1596, %v1636
    %v1659 = vsub.f32 %v1597, %v1651
    %v1660 = vsub.f32 %v1598, %v1636
    %v1661 = vsub.f32 %v1599, %v1651
    %v1662 = vsub.f32 %v1600, %v1636
    %v1663 = vsub.f32 %v1601, %v1651
    %v1664 = vsub.f32 %v1602, %v1636
    %v1665 = vsub.f32 %v1603, %v1651
    %v1666 = vsub.f32 %v1604, %v1636
    %v1667 = vsub.f32 %v1605, %v1651
    %v1668 = vsub.f32 %v1606, %v1636
    %v1669 = vsub.f32 %v1607, %v1651
    %v1670 = vsub.f32 %v1608, %v1636
    %v1671 = vsub.f32 %v1609, %v1651
    %v1672 = vsub.f32 %v1610, %v1636
    %v1673 = vsub.f32 %v1611, %v1651
    %v1674 = vsub.f32 %v1612, %v1636
    %v1675 = vsub.f32 %v1613, %v1651
    %v1676 = vsub.f32 %v1614, %v1636
    %v1677 = vsub.f32 %v1615, %v1651
    %v1678 = vsub.f32 %v1616, %v1636
    %v1679 = vsub.f32 %v1617, %v1651
    %v1680 = vsub.f32 %v1618, %v1636
    %v1681 = vsub.f32 %v1619, %v1651
    %v1682 = vsub.f32 %v1620, %v1636
    %v1683 = vsub.f32 %v1621, %v1651
    %v1684 = vmul.f32 %v1652, 1.442695
    %v1685 = vpow.pop %v1684
    %v1686 = vmul.f32 %v1653, 1.442695
    %v1687 = vpow.pop %v1686
    %v1688 = vmul.f32 %v1654, 1.442695
    %v1689 = vpow.pop %v1688
    %v1690 = vmul.f32 %v1655, 1.442695
    %v1691 = vpow.pop %v1690
    %v1692 = vmul.f32 %v1656, 1.442695
    %v1693 = vpow.pop %v1692
    %v1694 = vmul.f32 %v1657, 1.442695
    %v1695 = vpow.pop %v1694
    %v1696 = vmul.f32 %v1658, 1.442695
    %v1697 = vpow.pop %v1696
    %v1698 = vmul.f32 %v1659, 1.442695
    %v1699 = vpow.pop %v1698
    %v1700 = vmul.f32 %v1660, 1.442695
    %v1701 = vpow.pop %v1700
    %v1702 = vmul.f32 %v1661, 1.442695
    %v1703 = vpow.pop %v1702
    %v1704 = vmul.f32 %v1662, 1.442695
    %v1705 = vpow.pop %v1704
    %v1706 = vmul.f32 %v1663, 1.442695
    %v1707 = vpow.pop %v1706
    %v1708 = vmul.f32 %v1664, 1.442695
    %v1709 = vpow.pop %v1708
    %v1710 = vmul.f32 %v1665, 1.442695
    %v1711 = vpow.pop %v1710
    %v1712 = vmul.f32 %v1666, 1.442695
    %v1713 = vpow.pop %v1712
    %v1714 = vmul.f32 %v1667, 1.442695
    %v1715 = vpow.pop %v1714
    %v1716 = vmul.f32 %v1668, 1.442695
    %v1717 = vpow.pop %v1716
    %v1718 = vmul.f32 %v1669, 1.442695
    %v1719 = vpow.pop %v1718
    %v1720 = vmul.f32 %v1670, 1.442695
    %v1721 = vpow.pop %v1720
    %v1722 = vmul.f32 %v1671, 1.442695
    %v1723 = vpow.pop %v1722
    %v1724 = vmul.f32 %v1672, 1.442695
    %v1725 = vpow.pop %v1724
    %v1726 = vmul.f32 %v1673, 1.442695
    %v1727 = vpow.pop %v1726
    %v1728 = vmul.f32 %v1674, 1.442695
    %v1729 = vpow.pop %v1728
    %v1730 = vmul.f32 %v1675, 1.442695
    %v1731 = vpow.pop %v1730
    %v1732 = vmul.f32 %v1676, 1.442695
    %v1733 = vpow.pop %v1732
    %v1734 = vmul.f32 %v1677, 1.442695
    %v1735 = vpow.pop %v1734
    %v1736 = vmul.f32 %v1678, 1.442695
    %v1737 = vpow.pop %v1736
    %v1738 = vmul.f32 %v1679, 1.442695
    %v1739 = vpow.pop %v1738
    %v1740 = vmul.f32 %v1680, 1.442695
    %v1741 = vpow.pop %v1740
    %v1742 = vmul.f32 %v1681, 1.442695
    %v1743 = vpow.pop %v1742
    %v1744 = vmul.f32 %v1682, 1.442695
    %v1745 = vpow.pop %v1744
    %v1746 = vmul.f32 %v1683, 1.442695
    %v1747 = vpow.pop %v1746
    %1749 = vset.pattern.permute.xlu0 0
    %1750 = vperm.xlu0 %1749, %v78
    %v1751 = vpop.permute.xlu0 %1750
    %1754 = vset.pattern.permute.xlu0 0
    %1755 = vperm.xlu0 %1754, %v79
    %v1756 = vpop.permute.xlu0 %1755
    %1759 = vset.pattern.permute.xlu0 0
    %1760 = vperm.xlu0 %1759, %v80
    %v1761 = vpop.permute.xlu0 %1760
    %1764 = vset.pattern.permute.xlu0 0
    %1765 = vperm.xlu0 %1764, %v81
    %v1766 = vpop.permute.xlu0 %1765
    %1769 = vset.pattern.permute.xlu0 0
    %1770 = vperm.xlu0 %1769, %v82
    %v1771 = vpop.permute.xlu0 %1770
    %1774 = vset.pattern.permute.xlu0 0
    %1775 = vperm.xlu0 %1774, %v83
    %v1776 = vpop.permute.xlu0 %1775
    %1779 = vset.pattern.permute.xlu0 0
    %1780 = vperm.xlu0 %1779, %v84
    %v1781 = vpop.permute.xlu0 %1780
    %1784 = vset.pattern.permute.xlu0 0
    %1785 = vperm.xlu0 %1784, %v85
    %v1786 = vpop.permute.xlu0 %1785
    %1789 = vset.pattern.permute.xlu0 0
    %1790 = vperm.xlu0 %1789, %v86
    %v1791 = vpop.permute.xlu0 %1790
    %1794 = vset.pattern.permute.xlu0 0
    %1795 = vperm.xlu0 %1794, %v87
    %v1796 = vpop.permute.xlu0 %1795
    %1799 = vset.pattern.permute.xlu0 0
    %1800 = vperm.xlu0 %1799, %v88
    %v1801 = vpop.permute.xlu0 %1800
    %1804 = vset.pattern.permute.xlu0 0
    %1805 = vperm.xlu0 %1804, %v89
    %v1806 = vpop.permute.xlu0 %1805
    %1809 = vset.pattern.permute.xlu0 0
    %1810 = vperm.xlu0 %1809, %v90
    %v1811 = vpop.permute.xlu0 %1810
    %1814 = vset.pattern.permute.xlu0 0
    %1815 = vperm.xlu0 %1814, %v91
    %v1816 = vpop.permute.xlu0 %1815
    %1819 = vset.pattern.permute.xlu0 0
    %1820 = vperm.xlu0 %1819, %v92
    %v1821 = vpop.permute.xlu0 %1820
    %1824 = vset.pattern.permute.xlu0 0
    %1825 = vperm.xlu0 %1824, %v93
    %v1826 = vpop.permute.xlu0 %1825
    %1829 = vset.pattern.permute.xlu0 0
    %1830 = vperm.xlu0 %1829, %v94
    %v1831 = vpop.permute.xlu0 %1830
    %1834 = vset.pattern.permute.xlu0 0
    %1835 = vperm.xlu0 %1834, %v95
    %v1836 = vpop.permute.xlu0 %1835
    %1839 = vset.pattern.permute.xlu0 0
    %1840 = vperm.xlu0 %1839, %v96
    %v1841 = vpop.permute.xlu0 %1840
    %1844 = vset.pattern.permute.xlu0 0
    %1845 = vperm.xlu0 %1844, %v97
    %v1846 = vpop.permute.xlu0 %1845
    %1849 = vset.pattern.permute.xlu0 0
    %1850 = vperm.xlu0 %1849, %v98
    %v1851 = vpop.permute.xlu0 %1850
    %1854 = vset.pattern.permute.xlu0 0
    %1855 = vperm.xlu0 %1854, %v99
    %v1856 = vpop.permute.xlu0 %1855
    %1859 = vset.pattern.permute.xlu0 0
    %1860 = vperm.xlu0 %1859, %v100
    %v1861 = vpop.permute.xlu0 %1860
    %1864 = vset.pattern.permute.xlu0 0
    %1865 = vperm.xlu0 %1864, %v101
    %v1866 = vpop.permute.xlu0 %1865
    %1869 = vset.pattern.permute.xlu0 0
    %1870 = vperm.xlu0 %1869, %v102
    %v1871 = vpop.permute.xlu0 %1870
    %1874 = vset.pattern.permute.xlu0 0
    %1875 = vperm.xlu0 %1874, %v103
    %v1876 = vpop.permute.xlu0 %1875
    %1879 = vset.pattern.permute.xlu0 0
    %1880 = vperm.xlu0 %1879, %v104
    %v1881 = vpop.permute.xlu0 %1880
    %1884 = vset.pattern.permute.xlu0 0
    %1885 = vperm.xlu0 %1884, %v105
    %v1886 = vpop.permute.xlu0 %1885
    %1889 = vset.pattern.permute.xlu0 0
    %1890 = vperm.xlu0 %1889, %v106
    %v1891 = vpop.permute.xlu0 %1890
    %1894 = vset.pattern.permute.xlu0 0
    %1895 = vperm.xlu0 %1894, %v107
    %v1896 = vpop.permute.xlu0 %1895
    %1899 = vset.pattern.permute.xlu0 0
    %1900 = vperm.xlu0 %1899, %v108
    %v1901 = vpop.permute.xlu0 %1900
    %1904 = vset.pattern.permute.xlu0 0
    %1905 = vperm.xlu0 %1904, %v109
    %v1906 = vpop.permute.xlu0 %1905
    %v1908 = vmul.f32 %v1685, %v1751
    %v1909 = vmul.f32 %v1687, %v1756
    %v1910 = vmul.f32 %v1689, %v1761
    %v1911 = vmul.f32 %v1691, %v1766
    %v1912 = vmul.f32 %v1693, %v1771
    %v1913 = vmul.f32 %v1695, %v1776
    %v1914 = vmul.f32 %v1697, %v1781
    %v1915 = vmul.f32 %v1699, %v1786
    %v1916 = vmul.f32 %v1701, %v1791
    %v1917 = vmul.f32 %v1703, %v1796
    %v1918 = vmul.f32 %v1705, %v1801
    %v1919 = vmul.f32 %v1707, %v1806
    %v1920 = vmul.f32 %v1709, %v1811
    %v1921 = vmul.f32 %v1711, %v1816
    %v1922 = vmul.f32 %v1713, %v1821
    %v1923 = vmul.f32 %v1715, %v1826
    %v1924 = vmul.f32 %v1717, %v1831
    %v1925 = vmul.f32 %v1719, %v1836
    %v1926 = vmul.f32 %v1721, %v1841
    %v1927 = vmul.f32 %v1723, %v1846
    %v1928 = vmul.f32 %v1725, %v1851
    %v1929 = vmul.f32 %v1727, %v1856
    %v1930 = vmul.f32 %v1729, %v1861
    %v1931 = vmul.f32 %v1731, %v1866
    %v1932 = vmul.f32 %v1733, %v1871
    %v1933 = vmul.f32 %v1735, %v1876
    %v1934 = vmul.f32 %v1737, %v1881
    %v1935 = vmul.f32 %v1739, %v1886
    %v1936 = vmul.f32 %v1741, %v1891
    %v1937 = vmul.f32 %v1743, %v1896
    %v1938 = vmul.f32 %v1745, %v1901
    %v1939 = vmul.f32 %v1747, %v1906
    %v1940 = vadd.f32 %v1908, %v1910
    %v1941 = vadd.f32 %v1940, %v1912
    %v1942 = vadd.f32 %v1941, %v1914
    %v1943 = vadd.f32 %v1942, %v1916
    %v1944 = vadd.f32 %v1943, %v1918
    %v1945 = vadd.f32 %v1944, %v1920
    %v1946 = vadd.f32 %v1945, %v1922
    %v1947 = vadd.f32 %v1946, %v1924
    %v1948 = vadd.f32 %v1947, %v1926
    %v1949 = vadd.f32 %v1948, %v1928
    %v1950 = vadd.f32 %v1949, %v1930
    %v1951 = vadd.f32 %v1950, %v1932
    %v1952 = vadd.f32 %v1951, %v1934
    %v1953 = vadd.f32 %v1952, %v1936
    %v1954 = vadd.f32 %v1953, %v1938
    %v1955 = vadd.f32 %v1909, %v1911
    %v1956 = vadd.f32 %v1955, %v1913
    %v1957 = vadd.f32 %v1956, %v1915
    %v1958 = vadd.f32 %v1957, %v1917
    %v1959 = vadd.f32 %v1958, %v1919
    %v1960 = vadd.f32 %v1959, %v1921
    %v1961 = vadd.f32 %v1960, %v1923
    %v1962 = vadd.f32 %v1961, %v1925
    %v1963 = vadd.f32 %v1962, %v1927
    %v1964 = vadd.f32 %v1963, %v1929
    %v1965 = vadd.f32 %v1964, %v1931
    %v1966 = vadd.f32 %v1965, %v1933
    %v1967 = vadd.f32 %v1966, %v1935
    %v1968 = vadd.f32 %v1967, %v1937
    %v1969 = vadd.f32 %v1968, %v1939
    %v1970 = vmax.f32 %v1954, 1e-09
    %v1971 = vmax.f32 %v1969, 1e-09
    %v1972 = vrcp.pop %v1970
    %v1973 = vrcp.pop %v1971
    %v1974 = vmul.f32 %v1908, %v1972
    %v1975 = vmul.f32 %v1909, %v1973
    %v1976 = vmul.f32 %v1910, %v1972
    %v1977 = vmul.f32 %v1911, %v1973
    %v1978 = vmul.f32 %v1912, %v1972
    %v1979 = vmul.f32 %v1913, %v1973
    %v1980 = vmul.f32 %v1914, %v1972
    %v1981 = vmul.f32 %v1915, %v1973
    %v1982 = vmul.f32 %v1916, %v1972
    %v1983 = vmul.f32 %v1917, %v1973
    %v1984 = vmul.f32 %v1918, %v1972
    %v1985 = vmul.f32 %v1919, %v1973
    %v1986 = vmul.f32 %v1920, %v1972
    %v1987 = vmul.f32 %v1921, %v1973
    %v1988 = vmul.f32 %v1922, %v1972
    %v1989 = vmul.f32 %v1923, %v1973
    %v1990 = vmul.f32 %v1924, %v1972
    %v1991 = vmul.f32 %v1925, %v1973
    %v1992 = vmul.f32 %v1926, %v1972
    %v1993 = vmul.f32 %v1927, %v1973
    %v1994 = vmul.f32 %v1928, %v1972
    %v1995 = vmul.f32 %v1929, %v1973
    %v1996 = vmul.f32 %v1930, %v1972
    %v1997 = vmul.f32 %v1931, %v1973
    %v1998 = vmul.f32 %v1932, %v1972
    %v1999 = vmul.f32 %v1933, %v1973
    %v2000 = vmul.f32 %v1934, %v1972
    %v2001 = vmul.f32 %v1935, %v1973
    %v2002 = vmul.f32 %v1936, %v1972
    %v2003 = vmul.f32 %v1937, %v1973
    %v2004 = vmul.f32 %v1938, %v1972
    %v2005 = vmul.f32 %v1939, %v1973
    %v2006 = vmul.f32 %v1974, %v991
    %v2007 = vmul.f32 %v1975, %v997
    %v2008 = vmul.f32 %v1976, %v1003
    %v2009 = vmul.f32 %v1977, %v1009
    %v2010 = vmul.f32 %v1978, %v1015
    %v2011 = vmul.f32 %v1979, %v1021
    %v2012 = vmul.f32 %v1980, %v1027
    %v2013 = vmul.f32 %v1981, %v1033
    %v2014 = vmul.f32 %v1982, %v1039
    %v2015 = vmul.f32 %v1983, %v1045
    %v2016 = vmul.f32 %v1984, %v1051
    %v2017 = vmul.f32 %v1985, %v1057
    %v2018 = vmul.f32 %v1986, %v1063
    %v2019 = vmul.f32 %v1987, %v1069
    %v2020 = vmul.f32 %v1988, %v1075
    %v2021 = vmul.f32 %v1989, %v1081
    %v2022 = vmul.f32 %v1990, %v1087
    %v2023 = vmul.f32 %v1991, %v1093
    %v2024 = vmul.f32 %v1992, %v1099
    %v2025 = vmul.f32 %v1993, %v1105
    %v2026 = vmul.f32 %v1994, %v1111
    %v2027 = vmul.f32 %v1995, %v1117
    %v2028 = vmul.f32 %v1996, %v1123
    %v2029 = vmul.f32 %v1997, %v1129
    %v2030 = vmul.f32 %v1998, %v1135
    %v2031 = vmul.f32 %v1999, %v1141
    %v2032 = vmul.f32 %v2000, %v1147
    %v2033 = vmul.f32 %v2001, %v1153
    %v2034 = vmul.f32 %v2002, %v1159
    %v2035 = vmul.f32 %v2003, %v1165
    %v2036 = vmul.f32 %v2004, %v1171
    %v2037 = vmul.f32 %v2005, %v1177
    %v2038 = vadd.f32 %v2006, %v2008
    %v2039 = vadd.f32 %v2038, %v2010
    %v2040 = vadd.f32 %v2039, %v2012
    %v2041 = vadd.f32 %v2040, %v2014
    %v2042 = vadd.f32 %v2041, %v2016
    %v2043 = vadd.f32 %v2042, %v2018
    %v2044 = vadd.f32 %v2043, %v2020
    %v2045 = vadd.f32 %v2044, %v2022
    %v2046 = vadd.f32 %v2045, %v2024
    %v2047 = vadd.f32 %v2046, %v2026
    %v2048 = vadd.f32 %v2047, %v2028
    %v2049 = vadd.f32 %v2048, %v2030
    %v2050 = vadd.f32 %v2049, %v2032
    %v2051 = vadd.f32 %v2050, %v2034
    %v2052 = vadd.f32 %v2051, %v2036
    %v2053 = vadd.f32 %v2007, %v2009
    %v2054 = vadd.f32 %v2053, %v2011
    %v2055 = vadd.f32 %v2054, %v2013
    %v2056 = vadd.f32 %v2055, %v2015
    %v2057 = vadd.f32 %v2056, %v2017
    %v2058 = vadd.f32 %v2057, %v2019
    %v2059 = vadd.f32 %v2058, %v2021
    %v2060 = vadd.f32 %v2059, %v2023
    %v2061 = vadd.f32 %v2060, %v2025
    %v2062 = vadd.f32 %v2061, %v2027
    %v2063 = vadd.f32 %v2062, %v2029
    %v2064 = vadd.f32 %v2063, %v2031
    %v2065 = vadd.f32 %v2064, %v2033
    %v2066 = vadd.f32 %v2065, %v2035
    %v2067 = vadd.f32 %v2066, %v2037
    %vm2068 = vcmp.gt.f32.partialorder %v2052, 0.0
    %vm2069 = vcmp.gt.f32.partialorder %v2067, 0.0
    %v2070 = vmin.f32 %v2052, 0.0
    %v2071 = vmin.f32 %v2067, 0.0
    %v2072 = vmul.f32 %v2070, 1.442695
    %v2073 = vpow.pop %v2072
    %v2074 = vmul.f32 %v2071, 1.442695
    %v2075 = vpow.pop %v2074
    %v2076 = vsub.f32 %v2073, 1.0
    %v2077 = vsub.f32 %v2075, 1.0
    %v2078 = vsel %vm2068, %v2052, %v2076
    %v2079 = vsel %vm2069, %v2067, %v2077
    %v2080 = vld [vmem:[#allocation7] sm:$0xff]
    %v2081 = vld [vmem:[#allocation7 + $0x8] sm:$0xff]
    %v2082 = vld [vmem:[#allocation7 + $0x10] sm:$0xff]
    %v2083 = vld [vmem:[#allocation7 + $0x18] sm:$0xff]
    %v2084 = vld [vmem:[#allocation7 + $0x80] sm:$0xff]
    %v2085 = vld [vmem:[#allocation7 + $0x88] sm:$0xff]
    %v2086 = vld [vmem:[#allocation7 + $0x90] sm:$0xff]
    %v2087 = vld [vmem:[#allocation7 + $0x98] sm:$0xff]
    %v2088 = vld [vmem:[#allocation7 + $0x100] sm:$0xff]
    %v2089 = vld [vmem:[#allocation7 + $0x108] sm:$0xff]
    %v2090 = vld [vmem:[#allocation7 + $0x110] sm:$0xff]
    %v2091 = vld [vmem:[#allocation7 + $0x118] sm:$0xff]
    %v2092 = vld [vmem:[#allocation7 + $0x180] sm:$0xff]
    %v2093 = vld [vmem:[#allocation7 + $0x188] sm:$0xff]
    %v2094 = vld [vmem:[#allocation7 + $0x190] sm:$0xff]
    %v2095 = vld [vmem:[#allocation7 + $0x198] sm:$0xff]
    %v2096 = vld [vmem:[#allocation7 + $0x200] sm:$0xff]
    %v2097 = vld [vmem:[#allocation7 + $0x208] sm:$0xff]
    %v2098 = vld [vmem:[#allocation7 + $0x210] sm:$0xff]
    %v2099 = vld [vmem:[#allocation7 + $0x218] sm:$0xff]
    %v2100 = vld [vmem:[#allocation7 + $0x280] sm:$0xff]
    %v2101 = vld [vmem:[#allocation7 + $0x288] sm:$0xff]
    %v2102 = vld [vmem:[#allocation7 + $0x290] sm:$0xff]
    %v2103 = vld [vmem:[#allocation7 + $0x298] sm:$0xff]
    %v2104 = vld [vmem:[#allocation7 + $0x300] sm:$0xff]
    %v2105 = vld [vmem:[#allocation7 + $0x308] sm:$0xff]
    %v2106 = vld [vmem:[#allocation7 + $0x310] sm:$0xff]
    %v2107 = vld [vmem:[#allocation7 + $0x318] sm:$0xff]
    %v2108 = vld [vmem:[#allocation7 + $0x380] sm:$0xff]
    %v2109 = vld [vmem:[#allocation7 + $0x388] sm:$0xff]
    %v2110 = vld [vmem:[#allocation7 + $0x390] sm:$0xff]
    %v2111 = vld [vmem:[#allocation7 + $0x398] sm:$0xff]
    %v2112 = vld [vmem:[#allocation7 + $0x400] sm:$0xff]
    %v2113 = vld [vmem:[#allocation7 + $0x408] sm:$0xff]
    %v2114 = vld [vmem:[#allocation7 + $0x410] sm:$0xff]
    %v2115 = vld [vmem:[#allocation7 + $0x418] sm:$0xff]
    %v2116 = vld [vmem:[#allocation7 + $0x480] sm:$0xff]
    %v2117 = vld [vmem:[#allocation7 + $0x488] sm:$0xff]
    %v2118 = vld [vmem:[#allocation7 + $0x490] sm:$0xff]
    %v2119 = vld [vmem:[#allocation7 + $0x498] sm:$0xff]
    %v2120 = vld [vmem:[#allocation7 + $0x500] sm:$0xff]
    %v2121 = vld [vmem:[#allocation7 + $0x508] sm:$0xff]
    %v2122 = vld [vmem:[#allocation7 + $0x510] sm:$0xff]
    %v2123 = vld [vmem:[#allocation7 + $0x518] sm:$0xff]
    %v2124 = vld [vmem:[#allocation7 + $0x580] sm:$0xff]
    %v2125 = vld [vmem:[#allocation7 + $0x588] sm:$0xff]
    %v2126 = vld [vmem:[#allocation7 + $0x590] sm:$0xff]
    %v2127 = vld [vmem:[#allocation7 + $0x598] sm:$0xff]
    %v2128 = vld [vmem:[#allocation7 + $0x600] sm:$0xff]
    %v2129 = vld [vmem:[#allocation7 + $0x608] sm:$0xff]
    %v2130 = vld [vmem:[#allocation7 + $0x610] sm:$0xff]
    %v2131 = vld [vmem:[#allocation7 + $0x618] sm:$0xff]
    %v2132 = vld [vmem:[#allocation7 + $0x680] sm:$0xff]
    %v2133 = vld [vmem:[#allocation7 + $0x688] sm:$0xff]
    %v2134 = vld [vmem:[#allocation7 + $0x690] sm:$0xff]
    %v2135 = vld [vmem:[#allocation7 + $0x698] sm:$0xff]
    %v2136 = vld [vmem:[#allocation7 + $0x700] sm:$0xff]
    %v2137 = vld [vmem:[#allocation7 + $0x708] sm:$0xff]
    %v2138 = vld [vmem:[#allocation7 + $0x710] sm:$0xff]
    %v2139 = vld [vmem:[#allocation7 + $0x718] sm:$0xff]
    %v2140 = vld [vmem:[#allocation7 + $0x780] sm:$0xff]
    %v2141 = vld [vmem:[#allocation7 + $0x788] sm:$0xff]
    %v2142 = vld [vmem:[#allocation7 + $0x790] sm:$0xff]
    %v2143 = vld [vmem:[#allocation7 + $0x798] sm:$0xff]
    %v2144 = vld [vmem:[#allocation7 + $0x800] sm:$0xff]
    %v2145 = vld [vmem:[#allocation7 + $0x808] sm:$0xff]
    %v2146 = vld [vmem:[#allocation7 + $0x810] sm:$0xff]
    %v2147 = vld [vmem:[#allocation7 + $0x818] sm:$0xff]
    %v2148 = vld [vmem:[#allocation7 + $0x880] sm:$0xff]
    %v2149 = vld [vmem:[#allocation7 + $0x888] sm:$0xff]
    %v2150 = vld [vmem:[#allocation7 + $0x890] sm:$0xff]
    %v2151 = vld [vmem:[#allocation7 + $0x898] sm:$0xff]
    %v2152 = vld [vmem:[#allocation7 + $0x900] sm:$0xff]
    %v2153 = vld [vmem:[#allocation7 + $0x908] sm:$0xff]
    %v2154 = vld [vmem:[#allocation7 + $0x910] sm:$0xff]
    %v2155 = vld [vmem:[#allocation7 + $0x918] sm:$0xff]
    %v2156 = vld [vmem:[#allocation7 + $0x980] sm:$0xff]
    %v2157 = vld [vmem:[#allocation7 + $0x988] sm:$0xff]
    %v2158 = vld [vmem:[#allocation7 + $0x990] sm:$0xff]
    %v2159 = vld [vmem:[#allocation7 + $0x998] sm:$0xff]
    %v2160 = vld [vmem:[#allocation7 + $0xa00] sm:$0xff]
    %v2161 = vld [vmem:[#allocation7 + $0xa08] sm:$0xff]
    %v2162 = vld [vmem:[#allocation7 + $0xa10] sm:$0xff]
    %v2163 = vld [vmem:[#allocation7 + $0xa18] sm:$0xff]
    %v2164 = vld [vmem:[#allocation7 + $0xa80] sm:$0xff]
    %v2165 = vld [vmem:[#allocation7 + $0xa88] sm:$0xff]
    %v2166 = vld [vmem:[#allocation7 + $0xa90] sm:$0xff]
    %v2167 = vld [vmem:[#allocation7 + $0xa98] sm:$0xff]
    %v2168 = vld [vmem:[#allocation7 + $0xb00] sm:$0xff]
    %v2169 = vld [vmem:[#allocation7 + $0xb08] sm:$0xff]
    %v2170 = vld [vmem:[#allocation7 + $0xb10] sm:$0xff]
    %v2171 = vld [vmem:[#allocation7 + $0xb18] sm:$0xff]
    %v2172 = vld [vmem:[#allocation7 + $0xb80] sm:$0xff]
    %v2173 = vld [vmem:[#allocation7 + $0xb88] sm:$0xff]
    %v2174 = vld [vmem:[#allocation7 + $0xb90] sm:$0xff]
    %v2175 = vld [vmem:[#allocation7 + $0xb98] sm:$0xff]
    %v2176 = vld [vmem:[#allocation7 + $0xc00] sm:$0xff]
    %v2177 = vld [vmem:[#allocation7 + $0xc08] sm:$0xff]
    %v2178 = vld [vmem:[#allocation7 + $0xc10] sm:$0xff]
    %v2179 = vld [vmem:[#allocation7 + $0xc18] sm:$0xff]
    %v2180 = vld [vmem:[#allocation7 + $0xc80] sm:$0xff]
    %v2181 = vld [vmem:[#allocation7 + $0xc88] sm:$0xff]
    %v2182 = vld [vmem:[#allocation7 + $0xc90] sm:$0xff]
    %v2183 = vld [vmem:[#allocation7 + $0xc98] sm:$0xff]
    %v2184 = vld [vmem:[#allocation7 + $0xd00] sm:$0xff]
    %v2185 = vld [vmem:[#allocation7 + $0xd08] sm:$0xff]
    %v2186 = vld [vmem:[#allocation7 + $0xd10] sm:$0xff]
    %v2187 = vld [vmem:[#allocation7 + $0xd18] sm:$0xff]
    %v2188 = vld [vmem:[#allocation7 + $0xd80] sm:$0xff]
    %v2189 = vld [vmem:[#allocation7 + $0xd88] sm:$0xff]
    %v2190 = vld [vmem:[#allocation7 + $0xd90] sm:$0xff]
    %v2191 = vld [vmem:[#allocation7 + $0xd98] sm:$0xff]
    %v2192 = vld [vmem:[#allocation7 + $0xe00] sm:$0xff]
    %v2193 = vld [vmem:[#allocation7 + $0xe08] sm:$0xff]
    %v2194 = vld [vmem:[#allocation7 + $0xe10] sm:$0xff]
    %v2195 = vld [vmem:[#allocation7 + $0xe18] sm:$0xff]
    %v2196 = vld [vmem:[#allocation7 + $0xe80] sm:$0xff]
    %v2197 = vld [vmem:[#allocation7 + $0xe88] sm:$0xff]
    %v2198 = vld [vmem:[#allocation7 + $0xe90] sm:$0xff]
    %v2199 = vld [vmem:[#allocation7 + $0xe98] sm:$0xff]
    %v2200 = vld [vmem:[#allocation7 + $0xf00] sm:$0xff]
    %v2201 = vld [vmem:[#allocation7 + $0xf08] sm:$0xff]
    %v2202 = vld [vmem:[#allocation7 + $0xf10] sm:$0xff]
    %v2203 = vld [vmem:[#allocation7 + $0xf18] sm:$0xff]
    %v2204 = vld [vmem:[#allocation7 + $0xf80] sm:$0xff]
    %v2205 = vld [vmem:[#allocation7 + $0xf88] sm:$0xff]
    %v2206 = vld [vmem:[#allocation7 + $0xf90] sm:$0xff]
    %v2207 = vld [vmem:[#allocation7 + $0xf98] sm:$0xff]
    %v2208 = vld [vmem:[#allocation8 + $0x4] sm:$0xf]
    %v2210 = vlaneseq
    %v2211 = vshrl.u32 %v2210, 7
    %v2212 = vsub.s32 0, %v2211
    %v2213 = vrot.slane %v2208, %v2212
    %v2214 = vlaneseq
    %v2215 = vshrl.u32 %v2214, 7
    %v2216 = vsub.s32 1, %v2215
    %v2217 = vrot.slane %v2208, %v2216
    %v2218 = vlaneseq
    %v2219 = vshrl.u32 %v2218, 7
    %v2220 = vsub.s32 2, %v2219
    %v2221 = vrot.slane %v2208, %v2220
    %v2222 = vlaneseq
    %v2223 = vshrl.u32 %v2222, 7
    %v2224 = vsub.s32 3, %v2223
    %v2225 = vrot.slane %v2208, %v2224
    %2230 = vmatprep.subr.mxu0 %v2081
    %2231 = vmatpush1.msra.mxu0 %v2080
    %2232 = vmatprep.subr.mxu0 %v2085
    %2233 = vmatpush1.msra.mxu0 %v2084
    %2234 = vmatprep.subr.mxu0 %v2089
    %2235 = vmatpush1.msra.mxu0 %v2088
    %2236 = vmatprep.subr.mxu0 %v2093
    %2237 = vmatpush1.msra.mxu0 %v2092
    %2238 = vmatprep.subr.mxu0 %v2097
    %2239 = vmatpush1.msra.mxu0 %v2096
    %2240 = vmatprep.subr.mxu0 %v2101
    %2241 = vmatpush1.msra.mxu0 %v2100
    %2242 = vmatprep.subr.mxu0 %v2105
    %2243 = vmatpush1.msra.mxu0 %v2104
    %2244 = vmatprep.subr.mxu0 %v2109
    %2245 = vmatpush1.msra.mxu0 %v2108
    %2246 = vmatprep.subr.mxu0 %v2113
    %2247 = vmatpush1.msra.mxu0 %v2112
    %2248 = vmatprep.subr.mxu0 %v2117
    %2249 = vmatpush1.msra.mxu0 %v2116
    %2250 = vmatprep.subr.mxu0 %v2121
    %2251 = vmatpush1.msra.mxu0 %v2120
    %2252 = vmatprep.subr.mxu0 %v2125
    %2253 = vmatpush1.msra.mxu0 %v2124
    %2254 = vmatprep.subr.mxu0 %v2129
    %2255 = vmatpush1.msra.mxu0 %v2128
    %2256 = vmatprep.subr.mxu0 %v2133
    %2257 = vmatpush1.msra.mxu0 %v2132
    %2258 = vmatprep.subr.mxu0 %v2137
    %2259 = vmatpush1.msra.mxu0 %v2136
    %2260 = vmatprep.subr.mxu0 %v2141
    %2261 = vmatpush1.msra.mxu0 %v2140
    %2262 = vmatprep.subr.mxu0 %v2145
    %2263 = vmatpush1.msra.mxu0 %v2144
    %2264 = vmatprep.subr.mxu0 %v2149
    %2265 = vmatpush1.msra.mxu0 %v2148
    %2266 = vmatprep.subr.mxu0 %v2153
    %2267 = vmatpush1.msra.mxu0 %v2152
    %2268 = vmatprep.subr.mxu0 %v2157
    %2269 = vmatpush1.msra.mxu0 %v2156
    %2270 = vmatprep.subr.mxu0 %v2161
    %2271 = vmatpush1.msra.mxu0 %v2160
    %2272 = vmatprep.subr.mxu0 %v2165
    %2273 = vmatpush1.msra.mxu0 %v2164
    %2274 = vmatprep.subr.mxu0 %v2169
    %2275 = vmatpush1.msra.mxu0 %v2168
    %2276 = vmatprep.subr.mxu0 %v2173
    %2277 = vmatpush1.msra.mxu0 %v2172
    %2278 = vmatprep.subr.mxu0 %v2177
    %2279 = vmatpush1.msra.mxu0 %v2176
    %2280 = vmatprep.subr.mxu0 %v2181
    %2281 = vmatpush1.msra.mxu0 %v2180
    %2282 = vmatprep.subr.mxu0 %v2185
    %2283 = vmatpush1.msra.mxu0 %v2184
    %2284 = vmatprep.subr.mxu0 %v2189
    %2285 = vmatpush1.msra.mxu0 %v2188
    %2286 = vmatprep.subr.mxu0 %v2193
    %2287 = vmatpush1.msra.mxu0 %v2192
    %2288 = vmatprep.subr.mxu0 %v2197
    %2289 = vmatpush1.msra.mxu0 %v2196
    %2290 = vmatprep.subr.mxu0 %v2201
    %2291 = vmatpush1.msra.mxu0 %v2200
    %2292 = vmatprep.subr.mxu0 %v2205
    %2293 = vmatpush1.msra.mxu0 %v2204
    %2294 = vmatprep.mubr.f32.mxu0 %v214
    %2295 = vmatmul.mubr.f32.gmra.mrb[0].mxu0 %v2078
    %v2296 = vpop.f32.mrb[0].mxu0
    %v2297 = vadd.f32 %v2213, %v2296
    %v2298 = vpop.f32.mrb[0].mxu0
    %v2299 = vadd.f32 %v2217, %v2298
    %2300 = vmatprep.mubr.f32.mxu0 %v215
    %2301 = vmatmul.mubr.f32.gmra.mrb[0].mxu0 %v2079
    %v2302 = vpop.f32.mrb[0].mxu0
    %v2303 = vadd.f32 %v2213, %v2302
    %v2304 = vpop.f32.mrb[0].mxu0
    %v2305 = vadd.f32 %v2217, %v2304
    %2306 = vdwg.mxu0
    %2307 = vmatprep.subr.mxu0 %v2083
    %2308 = vmatpush1.msra.mxu0 %v2082
    %2309 = vmatprep.subr.mxu0 %v2087
    %2310 = vmatpush1.msra.mxu0 %v2086
    %2311 = vmatprep.subr.mxu0 %v2091
    %2312 = vmatpush1.msra.mxu0 %v2090
    %2313 = vmatprep.subr.mxu0 %v2095
    %2314 = vmatpush1.msra.mxu0 %v2094
    %2315 = vmatprep.subr.mxu0 %v2099
    %2316 = vmatpush1.msra.mxu0 %v2098
    %2317 = vmatprep.subr.mxu0 %v2103
    %2318 = vmatpush1.msra.mxu0 %v2102
    %2319 = vmatprep.subr.mxu0 %v2107
    %2320 = vmatpush1.msra.mxu0 %v2106
    %2321 = vmatprep.subr.mxu0 %v2111
    %2322 = vmatpush1.msra.mxu0 %v2110
    %2323 = vmatprep.subr.mxu0 %v2115
    %2324 = vmatpush1.msra.mxu0 %v2114
    %2325 = vmatprep.subr.mxu0 %v2119
    %2326 = vmatpush1.msra.mxu0 %v2118
    %2327 = vmatprep.subr.mxu0 %v2123
    %2328 = vmatpush1.msra.mxu0 %v2122
    %2329 = vmatprep.subr.mxu0 %v2127
    %2330 = vmatpush1.msra.mxu0 %v2126
    %2331 = vmatprep.subr.mxu0 %v2131
    %2332 = vmatpush1.msra.mxu0 %v2130
    %2333 = vmatprep.subr.mxu0 %v2135
    %2334 = vmatpush1.msra.mxu0 %v2134
    %2335 = vmatprep.subr.mxu0 %v2139
    %2336 = vmatpush1.msra.mxu0 %v2138
    %2337 = vmatprep.subr.mxu0 %v2143
    %2338 = vmatpush1.msra.mxu0 %v2142
    %2339 = vmatprep.subr.mxu0 %v2147
    %2340 = vmatpush1.msra.mxu0 %v2146
    %2341 = vmatprep.subr.mxu0 %v2151
    %2342 = vmatpush1.msra.mxu0 %v2150
    %2343 = vmatprep.subr.mxu0 %v2155
    %2344 = vmatpush1.msra.mxu0 %v2154
    %2345 = vmatprep.subr.mxu0 %v2159
    %2346 = vmatpush1.msra.mxu0 %v2158
    %2347 = vmatprep.subr.mxu0 %v2163
    %2348 = vmatpush1.msra.mxu0 %v2162
    %2349 = vmatprep.subr.mxu0 %v2167
    %2350 = vmatpush1.msra.mxu0 %v2166
    %2351 = vmatprep.subr.mxu0 %v2171
    %2352 = vmatpush1.msra.mxu0 %v2170
    %2353 = vmatprep.subr.mxu0 %v2175
    %2354 = vmatpush1.msra.mxu0 %v2174
    %2355 = vmatprep.subr.mxu0 %v2179
    %2356 = vmatpush1.msra.mxu0 %v2178
    %2357 = vmatprep.subr.mxu0 %v2183
    %2358 = vmatpush1.msra.mxu0 %v2182
    %2359 = vmatprep.subr.mxu0 %v2187
    %2360 = vmatpush1.msra.mxu0 %v2186
    %2361 = vmatprep.subr.mxu0 %v2191
    %2362 = vmatpush1.msra.mxu0 %v2190
    %2363 = vmatprep.subr.mxu0 %v2195
    %2364 = vmatpush1.msra.mxu0 %v2194
    %2365 = vmatprep.subr.mxu0 %v2199
    %2366 = vmatpush1.msra.mxu0 %v2198
    %2367 = vmatprep.subr.mxu0 %v2203
    %2368 = vmatpush1.msra.mxu0 %v2202
    %2369 = vmatprep.subr.mxu0 %v2207
    %2370 = vmatpush1.msra.mxu0 %v2206
    %2371 = vmatprep.mubr.f32.mxu0 %v214
    %2372 = vmatmul.mubr.f32.gmra.mrb[0].mxu0 %v2078
    %v2373 = vpop.f32.mrb[0].mxu0
    %v2374 = vadd.f32 %v2221, %v2373
    %v2375 = vpop.f32.mrb[0].mxu0
    %v2376 = vadd.f32 %v2225, %v2375
    %2377 = vmatprep.mubr.f32.mxu0 %v215
    %2378 = vmatmul.mubr.f32.gmra.mrb[0].mxu0 %v2079
    %v2379 = vpop.f32.mrb[0].mxu0
    %v2380 = vadd.f32 %v2221, %v2379
    %v2381 = vpop.f32.mrb[0].mxu0
    %v2382 = vadd.f32 %v2225, %v2381
    %2383 = vdwg.mxu0
    %v2384 = vmul.f32 %v2297, 0.5
    %v2385 = vmul.f32 %v2303, 0.5
    %v2386 = vtanh.pop %v2384
    %v2387 = vtanh.pop %v2385
    %v2388 = vadd.f32 %v2386, 1.0
    %v2389 = vadd.f32 %v2387, 1.0
    %v2390 = vmul.f32 %v2388, 0.5
    %v2391 = vmul.f32 %v2389, 0.5
    %v2392 = vmul.f32 %v2299, 0.5
    %v2393 = vmul.f32 %v2305, 0.5
    %v2394 = vtanh.pop %v2392
    %v2395 = vtanh.pop %v2393
    %v2396 = vadd.f32 %v2394, 1.0
    %v2397 = vadd.f32 %v2395, 1.0
    %v2398 = vmul.f32 %v2396, 0.5
    %v2399 = vmul.f32 %v2397, 0.5
    %v2400 = vmul.f32 %v2390, %v2376
    %v2401 = vmul.f32 %v2391, %v2382
    %v2402 = vadd.f32 %v2374, %v2400
    %v2403 = vadd.f32 %v2380, %v2401
    %v2404 = vtanh.pop %v2402
    %v2405 = vtanh.pop %v2403
    %v2406 = vsub.f32 1.0, %v2398
    %v2407 = vsub.f32 1.0, %v2399
    %v2408 = vmul.f32 %v2406, %v2404
    %v2409 = vmul.f32 %v2407, %v2405
    %v2410 = vmul.f32 %v2398, %v214
    %v2411 = vmul.f32 %v2399, %v215
    %v2412 = vadd.f32 %v2408, %v2410
    %v2413 = vadd.f32 %v2409, %v2411
    %v2414 = vmax.f32 %v2412, 0.0
    %v2415 = vmax.f32 %v2413, 0.0
    %v2416 = vld [vmem:[#allocation5 + $0x18] sm:$0xff]
    %v2417 = vld [vmem:[#allocation5 + $0x20] sm:$0xff]
    %v2418 = vld [vmem:[#allocation5 + $0x28] sm:$0xff]
    %v2419 = vld [vmem:[#allocation5 + $0x80] sm:$0xff]
    %v2420 = vld [vmem:[#allocation5 + $0x88] sm:$0xff]
    %v2421 = vld [vmem:[#allocation5 + $0x90] sm:$0xff]
    %v2422 = vld [vmem:[#allocation5 + $0xe8] sm:$0xff]
    %v2423 = vld [vmem:[#allocation5 + $0xf0] sm:$0xff]
    %v2424 = vld [vmem:[#allocation5 + $0xf8] sm:$0xff]
    %v2425 = vld [vmem:[#allocation5 + $0x150] sm:$0xff]
    %v2426 = vld [vmem:[#allocation5 + $0x158] sm:$0xff]
    %v2427 = vld [vmem:[#allocation5 + $0x160] sm:$0xff]
    %v2428 = vld [vmem:[#allocation5 + $0x1b8] sm:$0xff]
    %v2429 = vld [vmem:[#allocation5 + $0x1c0] sm:$0xff]
    %v2430 = vld [vmem:[#allocation5 + $0x1c8] sm:$0xff]
    %v2431 = vld [vmem:[#allocation5 + $0x220] sm:$0xff]
    %v2432 = vld [vmem:[#allocation5 + $0x228] sm:$0xff]
    %v2433 = vld [vmem:[#allocation5 + $0x230] sm:$0xff]
    %v2434 = vld [vmem:[#allocation5 + $0x288] sm:$0xff]
    %v2435 = vld [vmem:[#allocation5 + $0x290] sm:$0xff]
    %v2436 = vld [vmem:[#allocation5 + $0x298] sm:$0xff]
    %v2437 = vld [vmem:[#allocation5 + $0x2f0] sm:$0xff]
    %v2438 = vld [vmem:[#allocation5 + $0x2f8] sm:$0xff]
    %v2439 = vld [vmem:[#allocation5 + $0x300] sm:$0xff]
    %v2440 = vld [vmem:[#allocation5 + $0x358] sm:$0xff]
    %v2441 = vld [vmem:[#allocation5 + $0x360] sm:$0xff]
    %v2442 = vld [vmem:[#allocation5 + $0x368] sm:$0xff]
    %v2443 = vld [vmem:[#allocation5 + $0x3c0] sm:$0xff]
    %v2444 = vld [vmem:[#allocation5 + $0x3c8] sm:$0xff]
    %v2445 = vld [vmem:[#allocation5 + $0x3d0] sm:$0xff]
    %v2446 = vld [vmem:[#allocation5 + $0x428] sm:$0xff]
    %v2447 = vld [vmem:[#allocation5 + $0x430] sm:$0xff]
    %v2448 = vld [vmem:[#allocation5 + $0x438] sm:$0xff]
    %v2449 = vld [vmem:[#allocation5 + $0x490] sm:$0xff]
    %v2450 = vld [vmem:[#allocation5 + $0x498] sm:$0xff]
    %v2451 = vld [vmem:[#allocation5 + $0x4a0] sm:$0xff]
    %v2452 = vld [vmem:[#allocation5 + $0x4f8] sm:$0xff]
    %v2453 = vld [vmem:[#allocation5 + $0x500] sm:$0xff]
    %v2454 = vld [vmem:[#allocation5 + $0x508] sm:$0xff]
    %v2455 = vld [vmem:[#allocation5 + $0x560] sm:$0xff]
    %v2456 = vld [vmem:[#allocation5 + $0x568] sm:$0xff]
    %v2457 = vld [vmem:[#allocation5 + $0x570] sm:$0xff]
    %v2458 = vld [vmem:[#allocation5 + $0x5c8] sm:$0xff]
    %v2459 = vld [vmem:[#allocation5 + $0x5d0] sm:$0xff]
    %v2460 = vld [vmem:[#allocation5 + $0x5d8] sm:$0xff]
    %v2461 = vld [vmem:[#allocation5 + $0x630] sm:$0xff]
    %v2462 = vld [vmem:[#allocation5 + $0x638] sm:$0xff]
    %v2463 = vld [vmem:[#allocation5 + $0x640] sm:$0xff]
    %v2464 = vld [vmem:[#allocation8 + $0x8] sm:$0x7]
    %v2466 = vlaneseq
    %v2467 = vshrl.u32 %v2466, 7
    %v2468 = vsub.s32 0, %v2467
    %v2469 = vrot.slane %v2464, %v2468
    %v2470 = vlaneseq
    %v2471 = vshrl.u32 %v2470, 7
    %v2472 = vsub.s32 1, %v2471
    %v2473 = vrot.slane %v2464, %v2472
    %v2474 = vlaneseq
    %v2475 = vshrl.u32 %v2474, 7
    %v2476 = vsub.s32 2, %v2475
    %v2477 = vrot.slane %v2464, %v2476
    %2481 = vmatprep.subr.mxu0 %v2417
    %2482 = vmatpush1.msra.mxu0 %v2416
    %2483 = vmatprep.subr.mxu0 %v2420
    %2484 = vmatpush1.msra.mxu0 %v2419
    %2485 = vmatprep.subr.mxu0 %v2423
    %2486 = vmatpush1.msra.mxu0 %v2422
    %2487 = vmatprep.subr.mxu0 %v2426
    %2488 = vmatpush1.msra.mxu0 %v2425
    %2489 = vmatprep.subr.mxu0 %v2429
    %2490 = vmatpush1.msra.mxu0 %v2428
    %2491 = vmatprep.subr.mxu0 %v2432
    %2492 = vmatpush1.msra.mxu0 %v2431
    %2493 = vmatprep.subr.mxu0 %v2435
    %2494 = vmatpush1.msra.mxu0 %v2434
    %2495 = vmatprep.subr.mxu0 %v2438
    %2496 = vmatpush1.msra.mxu0 %v2437
    %2497 = vmatprep.subr.mxu0 %v2441
    %2498 = vmatpush1.msra.mxu0 %v2440
    %2499 = vmatprep.subr.mxu0 %v2444
    %2500 = vmatpush1.msra.mxu0 %v2443
    %2501 = vmatprep.subr.mxu0 %v2447
    %2502 = vmatpush1.msra.mxu0 %v2446
    %2503 = vmatprep.subr.mxu0 %v2450
    %2504 = vmatpush1.msra.mxu0 %v2449
    %2505 = vmatprep.subr.mxu0 %v2453
    %2506 = vmatpush1.msra.mxu0 %v2452
    %2507 = vmatprep.subr.mxu0 %v2456
    %2508 = vmatpush1.msra.mxu0 %v2455
    %2509 = vmatprep.subr.mxu0 %v2459
    %2510 = vmatpush1.msra.mxu0 %v2458
    %2511 = vmatprep.subr.mxu0 %v2462
    %2512 = vmatpush1.msra.mxu0 %v2461
    %2513 = vmatprep.subr.mxu0 0.0
    %2514 = vmatpush1.msra.mxu0 0.0
    %2515 = vmatprep.subr.mxu0 0.0
    %2516 = vmatpush1.msra.mxu0 0.0
    %2517 = vmatprep.subr.mxu0 0.0
    %2518 = vmatpush1.msra.mxu0 0.0
    %2519 = vmatprep.subr.mxu0 0.0
    %2520 = vmatpush1.msra.mxu0 0.0
    %2521 = vmatprep.subr.mxu0 0.0
    %2522 = vmatpush1.msra.mxu0 0.0
    %2523 = vmatprep.subr.mxu0 0.0
    %2524 = vmatpush1.msra.mxu0 0.0
    %2525 = vmatprep.subr.mxu0 0.0
    %2526 = vmatpush1.msra.mxu0 0.0
    %2527 = vmatprep.subr.mxu0 0.0
    %2528 = vmatpush1.msra.mxu0 0.0
    %2529 = vmatprep.subr.mxu0 0.0
    %2530 = vmatpush1.msra.mxu0 0.0
    %2531 = vmatprep.subr.mxu0 0.0
    %2532 = vmatpush1.msra.mxu0 0.0
    %2533 = vmatprep.subr.mxu0 0.0
    %2534 = vmatpush1.msra.mxu0 0.0
    %2535 = vmatprep.subr.mxu0 0.0
    %2536 = vmatpush1.msra.mxu0 0.0
    %2537 = vmatprep.subr.mxu0 0.0
    %2538 = vmatpush1.msra.mxu0 0.0
    %2539 = vmatprep.subr.mxu0 0.0
    %2540 = vmatpush1.msra.mxu0 0.0
    %2541 = vmatprep.subr.mxu0 0.0
    %2542 = vmatpush1.msra.mxu0 0.0
    %2543 = vmatprep.subr.mxu0 0.0
    %2544 = vmatpush1.msra.mxu0 0.0
    %2545 = vmatprep.mubr.f32.mxu0 0.0
    %2546 = vmatmul.mubr.f32.gmra.mrb[0].mxu0 %v2414
    %v2547 = vpop.f32.mrb[0].mxu0
    %v2548 = vadd.f32 %v2469, %v2547
    %v2549 = vpop.f32.mrb[0].mxu0
    %v2550 = vadd.f32 %v2473, %v2549
    %2551 = vmatprep.mubr.f32.mxu0 0.0
    %2552 = vmatmul.mubr.f32.gmra.mrb[0].mxu0 %v2415
    %v2553 = vpop.f32.mrb[0].mxu0
    %v2554 = vadd.f32 %v2469, %v2553
    %v2555 = vpop.f32.mrb[0].mxu0
    %v2556 = vadd.f32 %v2473, %v2555
    %2557 = vdwg.mxu0
    %2558 = vmatprep.subr.mxu0 0.0
    %2559 = vmatpush1.msra.mxu0 %v2418
    %2560 = vmatprep.subr.mxu0 0.0
    %2561 = vmatpush1.msra.mxu0 %v2421
    %2562 = vmatprep.subr.mxu0 0.0
    %2563 = vmatpush1.msra.mxu0 %v2424
    %2564 = vmatprep.subr.mxu0 0.0
    %2565 = vmatpush1.msra.mxu0 %v2427
    %2566 = vmatprep.subr.mxu0 0.0
    %2567 = vmatpush1.msra.mxu0 %v2430
    %2568 = vmatprep.subr.mxu0 0.0
    %2569 = vmatpush1.msra.mxu0 %v2433
    %2570 = vmatprep.subr.mxu0 0.0
    %2571 = vmatpush1.msra.mxu0 %v2436
    %2572 = vmatprep.subr.mxu0 0.0
    %2573 = vmatpush1.msra.mxu0 %v2439
    %2574 = vmatprep.subr.mxu0 0.0
    %2575 = vmatpush1.msra.mxu0 %v2442
    %2576 = vmatprep.subr.mxu0 0.0
    %2577 = vmatpush1.msra.mxu0 %v2445
    %2578 = vmatprep.subr.mxu0 0.0
    %2579 = vmatpush1.msra.mxu0 %v2448
    %2580 = vmatprep.subr.mxu0 0.0
    %2581 = vmatpush1.msra.mxu0 %v2451
    %2582 = vmatprep.subr.mxu0 0.0
    %2583 = vmatpush1.msra.mxu0 %v2454
    %2584 = vmatprep.subr.mxu0 0.0
    %2585 = vmatpush1.msra.mxu0 %v2457
    %2586 = vmatprep.subr.mxu0 0.0
    %2587 = vmatpush1.msra.mxu0 %v2460
    %2588 = vmatprep.subr.mxu0 0.0
    %2589 = vmatpush1.msra.mxu0 %v2463
    %2590 = vmatprep.subr.mxu0 0.0
    %2591 = vmatpush1.msra.mxu0 0.0
    %2592 = vmatprep.subr.mxu0 0.0
    %2593 = vmatpush1.msra.mxu0 0.0
    %2594 = vmatprep.subr.mxu0 0.0
    %2595 = vmatpush1.msra.mxu0 0.0
    %2596 = vmatprep.subr.mxu0 0.0
    %2597 = vmatpush1.msra.mxu0 0.0
    %2598 = vmatprep.subr.mxu0 0.0
    %2599 = vmatpush1.msra.mxu0 0.0
    %2600 = vmatprep.subr.mxu0 0.0
    %2601 = vmatpush1.msra.mxu0 0.0
    %2602 = vmatprep.subr.mxu0 0.0
    %2603 = vmatpush1.msra.mxu0 0.0
    %2604 = vmatprep.subr.mxu0 0.0
    %2605 = vmatpush1.msra.mxu0 0.0
    %2606 = vmatprep.subr.mxu0 0.0
    %2607 = vmatpush1.msra.mxu0 0.0
    %2608 = vmatprep.subr.mxu0 0.0
    %2609 = vmatpush1.msra.mxu0 0.0
    %2610 = vmatprep.subr.mxu0 0.0
    %2611 = vmatpush1.msra.mxu0 0.0
    %2612 = vmatprep.subr.mxu0 0.0
    %2613 = vmatpush1.msra.mxu0 0.0
    %2614 = vmatprep.subr.mxu0 0.0
    %2615 = vmatpush1.msra.mxu0 0.0
    %2616 = vmatprep.subr.mxu0 0.0
    %2617 = vmatpush1.msra.mxu0 0.0
    %2618 = vmatprep.subr.mxu0 0.0
    %2619 = vmatpush1.msra.mxu0 0.0
    %2620 = vmatprep.subr.mxu0 0.0
    %2621 = vmatpush1.msra.mxu0 0.0
    %2622 = vmatprep.mubr.f32.mxu0 0.0
    %2623 = vmatmul.mubr.f32.gmra.mrb[0].mxu0 %v2414
    %v2624 = vpop.f32.mrb[0].mxu0
    %v2625 = vadd.f32 %v2477, %v2624
    %v2626 = vpop.f32.mrb[0].mxu0
    %2627 = vmatprep.mubr.f32.mxu0 0.0
    %2628 = vmatmul.mubr.f32.gmra.mrb[0].mxu0 %v2415
    %v2629 = vpop.f32.mrb[0].mxu0
    %v2630 = vadd.f32 %v2477, %v2629
    %v2631 = vpop.f32.mrb[0].mxu0
    %2632 = vdwg.mxu0
    %v2635 = vcombine.high %v2550, %v2550
    %v2637 = vunpack.c.l.s4 1966171168
    %v2638 = vunpack.c.0.s8 %v2637
    %v2639 = vlaneseq
    %v2640 = vshrl.u32 %v2639, 7
    %v2641 = vsub.s32 %v2638, %v2640
    %v2642 = vrot.slane %v2550, %v2641
    %v2644 = vunpack.c.l.s4 1966171168
    %v2645 = vunpack.c.0.s8 %v2644
    %v2646 = vlaneseq
    %v2647 = vshrl.u32 %v2646, 7
    %v2648 = vsub.s32 %v2645, %v2647
    %v2649 = vrot.slane %v2635, %v2648
    %v2650 = vcombine.high %v2642, %v2642
    %v2651 = vcombine.high %v2649, %v2649
    %v2653 = vunpack.c.l.s4 1966171168
    %v2654 = vunpack.c.0.s8 %v2653
    %v2655 = vlaneseq
    %v2656 = vshrl.u32 %v2655, 7
    %v2657 = vsub.s32 %v2654, %v2656
    %v2658 = vrot.slane %v2642, %v2657
    %v2660 = vunpack.c.l.s4 1966171168
    %v2661 = vunpack.c.0.s8 %v2660
    %v2662 = vlaneseq
    %v2663 = vshrl.u32 %v2662, 7
    %v2664 = vsub.s32 %v2661, %v2663
    %v2665 = vrot.slane %v2649, %v2664
    %v2667 = vunpack.c.l.s4 1966171168
    %v2668 = vunpack.c.0.s8 %v2667
    %v2669 = vlaneseq
    %v2670 = vshrl.u32 %v2669, 7
    %v2671 = vsub.s32 %v2668, %v2670
    %v2672 = vrot.slane %v2650, %v2671
    %v2674 = vunpack.c.l.s4 1966171168
    %v2675 = vunpack.c.0.s8 %v2674
    %v2676 = vlaneseq
    %v2677 = vshrl.u32 %v2676, 7
    %v2678 = vsub.s32 %v2675, %v2677
    %v2679 = vrot.slane %v2651, %v2678
    %v2680 = vcombine.high %v2658, %v2658
    %v2681 = vcombine.high %v2665, %v2665
    %v2682 = vcombine.high %v2672, %v2672
    %v2683 = vcombine.high %v2679, %v2679
    %v2684 = vcombine.high %v2556, %v2556
    %v2686 = vunpack.c.l.s4 1966171168
    %v2687 = vunpack.c.0.s8 %v2686
    %v2688 = vlaneseq
    %v2689 = vshrl.u32 %v2688, 7
    %v2690 = vsub.s32 %v2687, %v2689
    %v2691 = vrot.slane %v2556, %v2690
    %v2693 = vunpack.c.l.s4 1966171168
    %v2694 = vunpack.c.0.s8 %v2693
    %v2695 = vlaneseq
    %v2696 = vshrl.u32 %v2695, 7
    %v2697 = vsub.s32 %v2694, %v2696
    %v2698 = vrot.slane %v2684, %v2697
    %v2699 = vcombine.high %v2691, %v2691
    %v2700 = vcombine.high %v2698, %v2698
    %v2702 = vunpack.c.l.s4 1966171168
    %v2703 = vunpack.c.0.s8 %v2702
    %v2704 = vlaneseq
    %v2705 = vshrl.u32 %v2704, 7
    %v2706 = vsub.s32 %v2703, %v2705
    %v2707 = vrot.slane %v2691, %v2706
    %v2709 = vunpack.c.l.s4 1966171168
    %v2710 = vunpack.c.0.s8 %v2709
    %v2711 = vlaneseq
    %v2712 = vshrl.u32 %v2711, 7
    %v2713 = vsub.s32 %v2710, %v2712
    %v2714 = vrot.slane %v2698, %v2713
    %v2716 = vunpack.c.l.s4 1966171168
    %v2717 = vunpack.c.0.s8 %v2716
    %v2718 = vlaneseq
    %v2719 = vshrl.u32 %v2718, 7
    %v2720 = vsub.s32 %v2717, %v2719
    %v2721 = vrot.slane %v2699, %v2720
    %v2723 = vunpack.c.l.s4 1966171168
    %v2724 = vunpack.c.0.s8 %v2723
    %v2725 = vlaneseq
    %v2726 = vshrl.u32 %v2725, 7
    %v2727 = vsub.s32 %v2724, %v2726
    %v2728 = vrot.slane %v2700, %v2727
    %v2729 = vcombine.high %v2707, %v2707
    %v2730 = vcombine.high %v2714, %v2714
    %v2731 = vcombine.high %v2721, %v2721
    %v2732 = vcombine.high %v2728, %v2728
    %v2733 = vlaneseq
    %v2734 = vshrl.u32 %v2733, 7
    %v2735 = vsub.s32 0, %v2734
    %v2736 = vrot.slane %v2658, %v2735
    %v2737 = vlaneseq
    %v2738 = vshrl.u32 %v2737, 7
    %v2739 = vsub.s32 0, %v2738
    %v2740 = vrot.slane %v2672, %v2739
    %v2741 = vlaneseq
    %v2742 = vshrl.u32 %v2741, 7
    %v2743 = vsub.s32 0, %v2742
    %v2744 = vrot.slane %v2680, %v2743
    %v2745 = vlaneseq
    %v2746 = vshrl.u32 %v2745, 7
    %v2747 = vsub.s32 0, %v2746
    %v2748 = vrot.slane %v2682, %v2747
    %v2749 = vlaneseq
    %v2750 = vshrl.u32 %v2749, 7
    %v2751 = vsub.s32 0, %v2750
    %v2752 = vrot.slane %v2665, %v2751
    %v2753 = vlaneseq
    %v2754 = vshrl.u32 %v2753, 7
    %v2755 = vsub.s32 0, %v2754
    %v2756 = vrot.slane %v2679, %v2755
    %v2757 = vlaneseq
    %v2758 = vshrl.u32 %v2757, 7
    %v2759 = vsub.s32 0, %v2758
    %v2760 = vrot.slane %v2681, %v2759
    %v2761 = vlaneseq
    %v2762 = vshrl.u32 %v2761, 7
    %v2763 = vsub.s32 0, %v2762
    %v2764 = vrot.slane %v2683, %v2763
    %v2765 = vlaneseq
    %v2766 = vshrl.u32 %v2765, 7
    %v2767 = vsub.s32 0, %v2766
    %v2768 = vrot.slane %v2707, %v2767
    %v2769 = vlaneseq
    %v2770 = vshrl.u32 %v2769, 7
    %v2771 = vsub.s32 0, %v2770
    %v2772 = vrot.slane %v2721, %v2771
    %v2773 = vlaneseq
    %v2774 = vshrl.u32 %v2773, 7
    %v2775 = vsub.s32 0, %v2774
    %v2776 = vrot.slane %v2729, %v2775
    %v2777 = vlaneseq
    %v2778 = vshrl.u32 %v2777, 7
    %v2779 = vsub.s32 0, %v2778
    %v2780 = vrot.slane %v2731, %v2779
    %v2781 = vlaneseq
    %v2782 = vshrl.u32 %v2781, 7
    %v2783 = vsub.s32 0, %v2782
    %v2784 = vrot.slane %v2714, %v2783
    %v2785 = vlaneseq
    %v2786 = vshrl.u32 %v2785, 7
    %v2787 = vsub.s32 0, %v2786
    %v2788 = vrot.slane %v2728, %v2787
    %v2789 = vlaneseq
    %v2790 = vshrl.u32 %v2789, 7
    %v2791 = vsub.s32 0, %v2790
    %v2792 = vrot.slane %v2730, %v2791
    %v2793 = vlaneseq
    %v2794 = vshrl.u32 %v2793, 7
    %v2795 = vsub.s32 0, %v2794
    %v2796 = vrot.slane %v2732, %v2795
    %v2813 = vadd.f32 %v2548, %v2736
    %v2814 = vadd.f32 %v2554, %v2736
    %v2815 = vadd.f32 %v2548, %v2740
    %v2816 = vadd.f32 %v2554, %v2740
    %v2817 = vadd.f32 %v2548, %v2744
    %v2818 = vadd.f32 %v2554, %v2744
    %v2819 = vadd.f32 %v2548, %v2748
    %v2820 = vadd.f32 %v2554, %v2748
    %v2821 = vadd.f32 %v2548, %v2752
    %v2822 = vadd.f32 %v2554, %v2752
    %v2823 = vadd.f32 %v2548, %v2756
    %v2824 = vadd.f32 %v2554, %v2756
    %v2825 = vadd.f32 %v2548, %v2760
    %v2826 = vadd.f32 %v2554, %v2760
    %v2827 = vadd.f32 %v2548, %v2764
    %v2828 = vadd.f32 %v2554, %v2764
    %v2829 = vadd.f32 %v2548, %v2768
    %v2830 = vadd.f32 %v2554, %v2768
    %v2831 = vadd.f32 %v2548, %v2772
    %v2832 = vadd.f32 %v2554, %v2772
    %v2833 = vadd.f32 %v2548, %v2776
    %v2834 = vadd.f32 %v2554, %v2776
    %v2835 = vadd.f32 %v2548, %v2780
    %v2836 = vadd.f32 %v2554, %v2780
    %v2837 = vadd.f32 %v2548, %v2784
    %v2838 = vadd.f32 %v2554, %v2784
    %v2839 = vadd.f32 %v2548, %v2788
    %v2840 = vadd.f32 %v2554, %v2788
    %v2841 = vadd.f32 %v2548, %v2792
    %v2842 = vadd.f32 %v2554, %v2792
    %v2843 = vadd.f32 %v2548, %v2796
    %v2844 = vadd.f32 %v2554, %v2796
    %vm2845 = vcmp.gt.f32.partialorder %v2813, 0.0
    %vm2846 = vcmp.gt.f32.partialorder %v2814, 0.0
    %vm2847 = vcmp.gt.f32.partialorder %v2815, 0.0
    %vm2848 = vcmp.gt.f32.partialorder %v2816, 0.0
    %vm2849 = vcmp.gt.f32.partialorder %v2817, 0.0
    %vm2850 = vcmp.gt.f32.partialorder %v2818, 0.0
    %vm2851 = vcmp.gt.f32.partialorder %v2819, 0.0
    %vm2852 = vcmp.gt.f32.partialorder %v2820, 0.0
    %vm2853 = vcmp.gt.f32.partialorder %v2821, 0.0
    %vm2854 = vcmp.gt.f32.partialorder %v2822, 0.0
    %vm2855 = vcmp.gt.f32.partialorder %v2823, 0.0
    %vm2856 = vcmp.gt.f32.partialorder %v2824, 0.0
    %vm2857 = vcmp.gt.f32.partialorder %v2825, 0.0
    %vm2858 = vcmp.gt.f32.partialorder %v2826, 0.0
    %vm2859 = vcmp.gt.f32.partialorder %v2827, 0.0
    %vm2860 = vcmp.gt.f32.partialorder %v2828, 0.0
    %vm2861 = vcmp.gt.f32.partialorder %v2829, 0.0
    %vm2862 = vcmp.gt.f32.partialorder %v2830, 0.0
    %vm2863 = vcmp.gt.f32.partialorder %v2831, 0.0
    %vm2864 = vcmp.gt.f32.partialorder %v2832, 0.0
    %vm2865 = vcmp.gt.f32.partialorder %v2833, 0.0
    %vm2866 = vcmp.gt.f32.partialorder %v2834, 0.0
    %vm2867 = vcmp.gt.f32.partialorder %v2835, 0.0
    %vm2868 = vcmp.gt.f32.partialorder %v2836, 0.0
    %vm2869 = vcmp.gt.f32.partialorder %v2837, 0.0
    %vm2870 = vcmp.gt.f32.partialorder %v2838, 0.0
    %vm2871 = vcmp.gt.f32.partialorder %v2839, 0.0
    %vm2872 = vcmp.gt.f32.partialorder %v2840, 0.0
    %vm2873 = vcmp.gt.f32.partialorder %v2841, 0.0
    %vm2874 = vcmp.gt.f32.partialorder %v2842, 0.0
    %vm2875 = vcmp.gt.f32.partialorder %v2843, 0.0
    %vm2876 = vcmp.gt.f32.partialorder %v2844, 0.0
    %v2877 = vmul.f32 %v2813, 0.01
    %v2878 = vmul.f32 %v2814, 0.01
    %v2879 = vmul.f32 %v2815, 0.01
    %v2880 = vmul.f32 %v2816, 0.01
    %v2881 = vmul.f32 %v2817, 0.01
    %v2882 = vmul.f32 %v2818, 0.01
    %v2883 = vmul.f32 %v2819, 0.01
    %v2884 = vmul.f32 %v2820, 0.01
    %v2885 = vmul.f32 %v2821, 0.01
    %v2886 = vmul.f32 %v2822, 0.01
    %v2887 = vmul.f32 %v2823, 0.01
    %v2888 = vmul.f32 %v2824, 0.01
    %v2889 = vmul.f32 %v2825, 0.01
    %v2890 = vmul.f32 %v2826, 0.01
    %v2891 = vmul.f32 %v2827, 0.01
    %v2892 = vmul.f32 %v2828, 0.01
    %v2893 = vmul.f32 %v2829, 0.01
    %v2894 = vmul.f32 %v2830, 0.01
    %v2895 = vmul.f32 %v2831, 0.01
    %v2896 = vmul.f32 %v2832, 0.01
    %v2897 = vmul.f32 %v2833, 0.01
    %v2898 = vmul.f32 %v2834, 0.01
    %v2899 = vmul.f32 %v2835, 0.01
    %v2900 = vmul.f32 %v2836, 0.01
    %v2901 = vmul.f32 %v2837, 0.01
    %v2902 = vmul.f32 %v2838, 0.01
    %v2903 = vmul.f32 %v2839, 0.01
    %v2904 = vmul.f32 %v2840, 0.01
    %v2905 = vmul.f32 %v2841, 0.01
    %v2906 = vmul.f32 %v2842, 0.01
    %v2907 = vmul.f32 %v2843, 0.01
    %v2908 = vmul.f32 %v2844, 0.01
    %v2909 = vsel %vm2845, %v2813, %v2877
    %v2910 = vsel %vm2846, %v2814, %v2878
    %v2911 = vsel %vm2847, %v2815, %v2879
    %v2912 = vsel %vm2848, %v2816, %v2880
    %v2913 = vsel %vm2849, %v2817, %v2881
    %v2914 = vsel %vm2850, %v2818, %v2882
    %v2915 = vsel %vm2851, %v2819, %v2883
    %v2916 = vsel %vm2852, %v2820, %v2884
    %v2917 = vsel %vm2853, %v2821, %v2885
    %v2918 = vsel %vm2854, %v2822, %v2886
    %v2919 = vsel %vm2855, %v2823, %v2887
    %v2920 = vsel %vm2856, %v2824, %v2888
    %v2921 = vsel %vm2857, %v2825, %v2889
    %v2922 = vsel %vm2858, %v2826, %v2890
    %v2923 = vsel %vm2859, %v2827, %v2891
    %v2924 = vsel %vm2860, %v2828, %v2892
    %v2925 = vsel %vm2861, %v2829, %v2893
    %v2926 = vsel %vm2862, %v2830, %v2894
    %v2927 = vsel %vm2863, %v2831, %v2895
    %v2928 = vsel %vm2864, %v2832, %v2896
    %v2929 = vsel %vm2865, %v2833, %v2897
    %v2930 = vsel %vm2866, %v2834, %v2898
    %v2931 = vsel %vm2867, %v2835, %v2899
    %v2932 = vsel %vm2868, %v2836, %v2900
    %v2933 = vsel %vm2869, %v2837, %v2901
    %v2934 = vsel %vm2870, %v2838, %v2902
    %v2935 = vsel %vm2871, %v2839, %v2903
    %v2936 = vsel %vm2872, %v2840, %v2904
    %v2937 = vsel %vm2873, %v2841, %v2905
    %v2938 = vsel %vm2874, %v2842, %v2906
    %v2939 = vsel %vm2875, %v2843, %v2907
    %v2940 = vsel %vm2876, %v2844, %v2908
    %v2941 = vsel %vm1558, %v2909, -1e+09
    %v2942 = vsel %vm1559, %v2910, -1e+09
    %v2943 = vsel %vm1560, %v2911, -1e+09
    %v2944 = vsel %vm1561, %v2912, -1e+09
    %v2945 = vsel %vm1562, %v2913, -1e+09
    %v2946 = vsel %vm1563, %v2914, -1e+09
    %v2947 = vsel %vm1564, %v2915, -1e+09
    %v2948 = vsel %vm1565, %v2916, -1e+09
    %v2949 = vsel %vm1566, %v2917, -1e+09
    %v2950 = vsel %vm1567, %v2918, -1e+09
    %v2951 = vsel %vm1568, %v2919, -1e+09
    %v2952 = vsel %vm1569, %v2920, -1e+09
    %v2953 = vsel %vm1570, %v2921, -1e+09
    %v2954 = vsel %vm1571, %v2922, -1e+09
    %v2955 = vsel %vm1572, %v2923, -1e+09
    %v2956 = vsel %vm1573, %v2924, -1e+09
    %v2957 = vsel %vm1574, %v2925, -1e+09
    %v2958 = vsel %vm1575, %v2926, -1e+09
    %v2959 = vsel %vm1576, %v2927, -1e+09
    %v2960 = vsel %vm1577, %v2928, -1e+09
    %v2961 = vsel %vm1578, %v2929, -1e+09
    %v2962 = vsel %vm1579, %v2930, -1e+09
    %v2963 = vsel %vm1580, %v2931, -1e+09
    %v2964 = vsel %vm1581, %v2932, -1e+09
    %v2965 = vsel %vm1582, %v2933, -1e+09
    %v2966 = vsel %vm1583, %v2934, -1e+09
    %v2967 = vsel %vm1584, %v2935, -1e+09
    %v2968 = vsel %vm1585, %v2936, -1e+09
    %v2969 = vsel %vm1586, %v2937, -1e+09
    %v2970 = vsel %vm1587, %v2938, -1e+09
    %v2971 = vsel %vm1588, %v2939, -1e+09
    %v2972 = vsel %vm1589, %v2940, -1e+09
    %v2973 = vmax.f32 %v2941, %v2945
    %v2974 = vmax.f32 %v2943, %v2947
    %v2975 = vmax.f32 %v2973, %v2949
    %v2976 = vmax.f32 %v2974, %v2951
    %v2977 = vmax.f32 %v2975, %v2953
    %v2978 = vmax.f32 %v2976, %v2955
    %v2979 = vmax.f32 %v2977, %v2957
    %v2980 = vmax.f32 %v2978, %v2959
    %v2981 = vmax.f32 %v2979, %v2961
    %v2982 = vmax.f32 %v2980, %v2963
    %v2983 = vmax.f32 %v2981, %v2965
    %v2984 = vmax.f32 %v2982, %v2967
    %v2985 = vmax.f32 %v2983, %v2969
    %v2986 = vmax.f32 %v2984, %v2971
    %v2987 = vmax.f32 %v2985, %v2986
    %v2988 = vmax.f32 %v2942, %v2946
    %v2989 = vmax.f32 %v2944, %v2948
    %v2990 = vmax.f32 %v2988, %v2950
    %v2991 = vmax.f32 %v2989, %v2952
    %v2992 = vmax.f32 %v2990, %v2954
    %v2993 = vmax.f32 %v2991, %v2956
    %v2994 = vmax.f32 %v2992, %v2958
    %v2995 = vmax.f32 %v2993, %v2960
    %v2996 = vmax.f32 %v2994, %v2962
    %v2997 = vmax.f32 %v2995, %v2964
    %v2998 = vmax.f32 %v2996, %v2966
    %v2999 = vmax.f32 %v2997, %v2968
    %v3000 = vmax.f32 %v2998, %v2970
    %v3001 = vmax.f32 %v2999, %v2972
    %v3002 = vmax.f32 %v3000, %v3001
    %v3003 = vsub.f32 %v2941, %v2987
    %v3004 = vsub.f32 %v2942, %v3002
    %v3005 = vsub.f32 %v2943, %v2987
    %v3006 = vsub.f32 %v2944, %v3002
    %v3007 = vsub.f32 %v2945, %v2987
    %v3008 = vsub.f32 %v2946, %v3002
    %v3009 = vsub.f32 %v2947, %v2987
    %v3010 = vsub.f32 %v2948, %v3002
    %v3011 = vsub.f32 %v2949, %v2987
    %v3012 = vsub.f32 %v2950, %v3002
    %v3013 = vsub.f32 %v2951, %v2987
    %v3014 = vsub.f32 %v2952, %v3002
    %v3015 = vsub.f32 %v2953, %v2987
    %v3016 = vsub.f32 %v2954, %v3002
    %v3017 = vsub.f32 %v2955, %v2987
    %v3018 = vsub.f32 %v2956, %v3002
    %v3019 = vsub.f32 %v2957, %v2987
    %v3020 = vsub.f32 %v2958, %v3002
    %v3021 = vsub.f32 %v2959, %v2987
    %v3022 = vsub.f32 %v2960, %v3002
    %v3023 = vsub.f32 %v2961, %v2987
    %v3024 = vsub.f32 %v2962, %v3002
    %v3025 = vsub.f32 %v2963, %v2987
    %v3026 = vsub.f32 %v2964, %v3002
    %v3027 = vsub.f32 %v2965, %v2987
    %v3028 = vsub.f32 %v2966, %v3002
    %v3029 = vsub.f32 %v2967, %v2987
    %v3030 = vsub.f32 %v2968, %v3002
    %v3031 = vsub.f32 %v2969, %v2987
    %v3032 = vsub.f32 %v2970, %v3002
    %v3033 = vsub.f32 %v2971, %v2987
    %v3034 = vsub.f32 %v2972, %v3002
    %v3035 = vmul.f32 %v3003, 1.442695
    %v3036 = vpow.pop %v3035
    %v3037 = vmul.f32 %v3004, 1.442695
    %v3038 = vpow.pop %v3037
    %v3039 = vmul.f32 %v3005, 1.442695
    %v3040 = vpow.pop %v3039
    %v3041 = vmul.f32 %v3006, 1.442695
    %v3042 = vpow.pop %v3041
    %v3043 = vmul.f32 %v3007, 1.442695
    %v3044 = vpow.pop %v3043
    %v3045 = vmul.f32 %v3008, 1.442695
    %v3046 = vpow.pop %v3045
    %v3047 = vmul.f32 %v3009, 1.442695
    %v3048 = vpow.pop %v3047
    %v3049 = vmul.f32 %v3010, 1.442695
    %v3050 = vpow.pop %v3049
    %v3051 = vmul.f32 %v3011, 1.442695
    %v3052 = vpow.pop %v3051
    %v3053 = vmul.f32 %v3012, 1.442695
    %v3054 = vpow.pop %v3053
    %v3055 = vmul.f32 %v3013, 1.442695
    %v3056 = vpow.pop %v3055
    %v3057 = vmul.f32 %v3014, 1.442695
    %v3058 = vpow.pop %v3057
    %v3059 = vmul.f32 %v3015, 1.442695
    %v3060 = vpow.pop %v3059
    %v3061 = vmul.f32 %v3016, 1.442695
    %v3062 = vpow.pop %v3061
    %v3063 = vmul.f32 %v3017, 1.442695
    %v3064 = vpow.pop %v3063
    %v3065 = vmul.f32 %v3018, 1.442695
    %v3066 = vpow.pop %v3065
    %v3067 = vmul.f32 %v3019, 1.442695
    %v3068 = vpow.pop %v3067
    %v3069 = vmul.f32 %v3020, 1.442695
    %v3070 = vpow.pop %v3069
    %v3071 = vmul.f32 %v3021, 1.442695
    %v3072 = vpow.pop %v3071
    %v3073 = vmul.f32 %v3022, 1.442695
    %v3074 = vpow.pop %v3073
    %v3075 = vmul.f32 %v3023, 1.442695
    %v3076 = vpow.pop %v3075
    %v3077 = vmul.f32 %v3024, 1.442695
    %v3078 = vpow.pop %v3077
    %v3079 = vmul.f32 %v3025, 1.442695
    %v3080 = vpow.pop %v3079
    %v3081 = vmul.f32 %v3026, 1.442695
    %v3082 = vpow.pop %v3081
    %v3083 = vmul.f32 %v3027, 1.442695
    %v3084 = vpow.pop %v3083
    %v3085 = vmul.f32 %v3028, 1.442695
    %v3086 = vpow.pop %v3085
    %v3087 = vmul.f32 %v3029, 1.442695
    %v3088 = vpow.pop %v3087
    %v3089 = vmul.f32 %v3030, 1.442695
    %v3090 = vpow.pop %v3089
    %v3091 = vmul.f32 %v3031, 1.442695
    %v3092 = vpow.pop %v3091
    %v3093 = vmul.f32 %v3032, 1.442695
    %v3094 = vpow.pop %v3093
    %v3095 = vmul.f32 %v3033, 1.442695
    %v3096 = vpow.pop %v3095
    %v3097 = vmul.f32 %v3034, 1.442695
    %v3098 = vpow.pop %v3097
    %v3099 = vmul.f32 %v3036, %v1751
    %v3100 = vmul.f32 %v3038, %v1756
    %v3101 = vmul.f32 %v3040, %v1761
    %v3102 = vmul.f32 %v3042, %v1766
    %v3103 = vmul.f32 %v3044, %v1771
    %v3104 = vmul.f32 %v3046, %v1776
    %v3105 = vmul.f32 %v3048, %v1781
    %v3106 = vmul.f32 %v3050, %v1786
    %v3107 = vmul.f32 %v3052, %v1791
    %v3108 = vmul.f32 %v3054, %v1796
    %v3109 = vmul.f32 %v3056, %v1801
    %v3110 = vmul.f32 %v3058, %v1806
    %v3111 = vmul.f32 %v3060, %v1811
    %v3112 = vmul.f32 %v3062, %v1816
    %v3113 = vmul.f32 %v3064, %v1821
    %v3114 = vmul.f32 %v3066, %v1826
    %v3115 = vmul.f32 %v3068, %v1831
    %v3116 = vmul.f32 %v3070, %v1836
    %v3117 = vmul.f32 %v3072, %v1841
    %v3118 = vmul.f32 %v3074, %v1846
    %v3119 = vmul.f32 %v3076, %v1851
    %v3120 = vmul.f32 %v3078, %v1856
    %v3121 = vmul.f32 %v3080, %v1861
    %v3122 = vmul.f32 %v3082, %v1866
    %v3123 = vmul.f32 %v3084, %v1871
    %v3124 = vmul.f32 %v3086, %v1876
    %v3125 = vmul.f32 %v3088, %v1881
    %v3126 = vmul.f32 %v3090, %v1886
    %v3127 = vmul.f32 %v3092, %v1891
    %v3128 = vmul.f32 %v3094, %v1896
    %v3129 = vmul.f32 %v3096, %v1901
    %v3130 = vmul.f32 %v3098, %v1906
    %v3131 = vadd.f32 %v3099, %v3101
    %v3132 = vadd.f32 %v3131, %v3103
    %v3133 = vadd.f32 %v3132, %v3105
    %v3134 = vadd.f32 %v3133, %v3107
    %v3135 = vadd.f32 %v3134, %v3109
    %v3136 = vadd.f32 %v3135, %v3111
    %v3137 = vadd.f32 %v3136, %v3113
    %v3138 = vadd.f32 %v3137, %v3115
    %v3139 = vadd.f32 %v3138, %v3117
    %v3140 = vadd.f32 %v3139, %v3119
    %v3141 = vadd.f32 %v3140, %v3121
    %v3142 = vadd.f32 %v3141, %v3123
    %v3143 = vadd.f32 %v3142, %v3125
    %v3144 = vadd.f32 %v3143, %v3127
    %v3145 = vadd.f32 %v3144, %v3129
    %v3146 = vadd.f32 %v3100, %v3102
    %v3147 = vadd.f32 %v3146, %v3104
    %v3148 = vadd.f32 %v3147, %v3106
    %v3149 = vadd.f32 %v3148, %v3108
    %v3150 = vadd.f32 %v3149, %v3110
    %v3151 = vadd.f32 %v3150, %v3112
    %v3152 = vadd.f32 %v3151, %v3114
    %v3153 = vadd.f32 %v3152, %v3116
    %v3154 = vadd.f32 %v3153, %v3118
    %v3155 = vadd.f32 %v3154, %v3120
    %v3156 = vadd.f32 %v3155, %v3122
    %v3157 = vadd.f32 %v3156, %v3124
    %v3158 = vadd.f32 %v3157, %v3126
    %v3159 = vadd.f32 %v3158, %v3128
    %v3160 = vadd.f32 %v3159, %v3130
    %v3161 = vmax.f32 %v3145, 1e-09
    %v3162 = vmax.f32 %v3160, 1e-09
    %v3163 = vrcp.pop %v3161
    %v3164 = vrcp.pop %v3162
    %v3165 = vmul.f32 %v3099, %v3163
    %v3166 = vmul.f32 %v3100, %v3164
    %v3167 = vmul.f32 %v3101, %v3163
    %v3168 = vmul.f32 %v3102, %v3164
    %v3169 = vmul.f32 %v3103, %v3163
    %v3170 = vmul.f32 %v3104, %v3164
    %v3171 = vmul.f32 %v3105, %v3163
    %v3172 = vmul.f32 %v3106, %v3164
    %v3173 = vmul.f32 %v3107, %v3163
    %v3174 = vmul.f32 %v3108, %v3164
    %v3175 = vmul.f32 %v3109, %v3163
    %v3176 = vmul.f32 %v3110, %v3164
    %v3177 = vmul.f32 %v3111, %v3163
    %v3178 = vmul.f32 %v3112, %v3164
    %v3179 = vmul.f32 %v3113, %v3163
    %v3180 = vmul.f32 %v3114, %v3164
    %v3181 = vmul.f32 %v3115, %v3163
    %v3182 = vmul.f32 %v3116, %v3164
    %v3183 = vmul.f32 %v3117, %v3163
    %v3184 = vmul.f32 %v3118, %v3164
    %v3185 = vmul.f32 %v3119, %v3163
    %v3186 = vmul.f32 %v3120, %v3164
    %v3187 = vmul.f32 %v3121, %v3163
    %v3188 = vmul.f32 %v3122, %v3164
    %v3189 = vmul.f32 %v3123, %v3163
    %v3190 = vmul.f32 %v3124, %v3164
    %v3191 = vmul.f32 %v3125, %v3163
    %v3192 = vmul.f32 %v3126, %v3164
    %v3193 = vmul.f32 %v3127, %v3163
    %v3194 = vmul.f32 %v3128, %v3164
    %v3195 = vmul.f32 %v3129, %v3163
    %v3196 = vmul.f32 %v3130, %v3164
    %v3199 = vcombine.high %v2625, %v2625
    %v3201 = vunpack.c.l.s4 1966171168
    %v3202 = vunpack.c.0.s8 %v3201
    %v3203 = vlaneseq
    %v3204 = vshrl.u32 %v3203, 7
    %v3205 = vsub.s32 %v3202, %v3204
    %v3206 = vrot.slane %v2625, %v3205
    %v3208 = vunpack.c.l.s4 1966171168
    %v3209 = vunpack.c.0.s8 %v3208
    %v3210 = vlaneseq
    %v3211 = vshrl.u32 %v3210, 7
    %v3212 = vsub.s32 %v3209, %v3211
    %v3213 = vrot.slane %v3199, %v3212
    %v3214 = vcombine.high %v3206, %v3206
    %v3215 = vcombine.high %v3213, %v3213
    %v3217 = vunpack.c.l.s4 1966171168
    %v3218 = vunpack.c.0.s8 %v3217
    %v3219 = vlaneseq
    %v3220 = vshrl.u32 %v3219, 7
    %v3221 = vsub.s32 %v3218, %v3220
    %v3222 = vrot.slane %v3206, %v3221
    %v3224 = vunpack.c.l.s4 1966171168
    %v3225 = vunpack.c.0.s8 %v3224
    %v3226 = vlaneseq
    %v3227 = vshrl.u32 %v3226, 7
    %v3228 = vsub.s32 %v3225, %v3227
    %v3229 = vrot.slane %v3213, %v3228
    %v3231 = vunpack.c.l.s4 1966171168
    %v3232 = vunpack.c.0.s8 %v3231
    %v3233 = vlaneseq
    %v3234 = vshrl.u32 %v3233, 7
    %v3235 = vsub.s32 %v3232, %v3234
    %v3236 = vrot.slane %v3214, %v3235
    %v3238 = vunpack.c.l.s4 1966171168
    %v3239 = vunpack.c.0.s8 %v3238
    %v3240 = vlaneseq
    %v3241 = vshrl.u32 %v3240, 7
    %v3242 = vsub.s32 %v3239, %v3241
    %v3243 = vrot.slane %v3215, %v3242
    %v3244 = vcombine.high %v3222, %v3222
    %v3245 = vcombine.high %v3229, %v3229
    %v3246 = vcombine.high %v3236, %v3236
    %v3247 = vcombine.high %v3243, %v3243
    %v3248 = vcombine.high %v2630, %v2630
    %v3250 = vunpack.c.l.s4 1966171168
    %v3251 = vunpack.c.0.s8 %v3250
    %v3252 = vlaneseq
    %v3253 = vshrl.u32 %v3252, 7
    %v3254 = vsub.s32 %v3251, %v3253
    %v3255 = vrot.slane %v2630, %v3254
    %v3257 = vunpack.c.l.s4 1966171168
    %v3258 = vunpack.c.0.s8 %v3257
    %v3259 = vlaneseq
    %v3260 = vshrl.u32 %v3259, 7
    %v3261 = vsub.s32 %v3258, %v3260
    %v3262 = vrot.slane %v3248, %v3261
    %v3263 = vcombine.high %v3255, %v3255
    %v3264 = vcombine.high %v3262, %v3262
    %v3266 = vunpack.c.l.s4 1966171168
    %v3267 = vunpack.c.0.s8 %v3266
    %v3268 = vlaneseq
    %v3269 = vshrl.u32 %v3268, 7
    %v3270 = vsub.s32 %v3267, %v3269
    %v3271 = vrot.slane %v3255, %v3270
    %v3273 = vunpack.c.l.s4 1966171168
    %v3274 = vunpack.c.0.s8 %v3273
    %v3275 = vlaneseq
    %v3276 = vshrl.u32 %v3275, 7
    %v3277 = vsub.s32 %v3274, %v3276
    %v3278 = vrot.slane %v3262, %v3277
    %v3280 = vunpack.c.l.s4 1966171168
    %v3281 = vunpack.c.0.s8 %v3280
    %v3282 = vlaneseq
    %v3283 = vshrl.u32 %v3282, 7
    %v3284 = vsub.s32 %v3281, %v3283
    %v3285 = vrot.slane %v3263, %v3284
    %v3287 = vunpack.c.l.s4 1966171168
    %v3288 = vunpack.c.0.s8 %v3287
    %v3289 = vlaneseq
    %v3290 = vshrl.u32 %v3289, 7
    %v3291 = vsub.s32 %v3288, %v3290
    %v3292 = vrot.slane %v3264, %v3291
    %v3293 = vcombine.high %v3271, %v3271
    %v3294 = vcombine.high %v3278, %v3278
    %v3295 = vcombine.high %v3285, %v3285
    %v3296 = vcombine.high %v3292, %v3292
    %v3297 = vlaneseq
    %v3298 = vshrl.u32 %v3297, 7
    %v3299 = vsub.s32 0, %v3298
    %v3300 = vrot.slane %v3222, %v3299
    %v3301 = vlaneseq
    %v3302 = vshrl.u32 %v3301, 7
    %v3303 = vsub.s32 0, %v3302
    %v3304 = vrot.slane %v3236, %v3303
    %v3305 = vlaneseq
    %v3306 = vshrl.u32 %v3305, 7
    %v3307 = vsub.s32 0, %v3306
    %v3308 = vrot.slane %v3244, %v3307
    %v3309 = vlaneseq
    %v3310 = vshrl.u32 %v3309, 7
    %v3311 = vsub.s32 0, %v3310
    %v3312 = vrot.slane %v3246, %v3311
    %v3313 = vlaneseq
    %v3314 = vshrl.u32 %v3313, 7
    %v3315 = vsub.s32 0, %v3314
    %v3316 = vrot.slane %v3229, %v3315
    %v3317 = vlaneseq
    %v3318 = vshrl.u32 %v3317, 7
    %v3319 = vsub.s32 0, %v3318
    %v3320 = vrot.slane %v3243, %v3319
    %v3321 = vlaneseq
    %v3322 = vshrl.u32 %v3321, 7
    %v3323 = vsub.s32 0, %v3322
    %v3324 = vrot.slane %v3245, %v3323
    %v3325 = vlaneseq
    %v3326 = vshrl.u32 %v3325, 7
    %v3327 = vsub.s32 0, %v3326
    %v3328 = vrot.slane %v3247, %v3327
    %v3329 = vlaneseq
    %v3330 = vshrl.u32 %v3329, 7
    %v3331 = vsub.s32 0, %v3330
    %v3332 = vrot.slane %v3271, %v3331
    %v3333 = vlaneseq
    %v3334 = vshrl.u32 %v3333, 7
    %v3335 = vsub.s32 0, %v3334
    %v3336 = vrot.slane %v3285, %v3335
    %v3337 = vlaneseq
    %v3338 = vshrl.u32 %v3337, 7
    %v3339 = vsub.s32 0, %v3338
    %v3340 = vrot.slane %v3293, %v3339
    %v3341 = vlaneseq
    %v3342 = vshrl.u32 %v3341, 7
    %v3343 = vsub.s32 0, %v3342
    %v3344 = vrot.slane %v3295, %v3343
    %v3345 = vlaneseq
    %v3346 = vshrl.u32 %v3345, 7
    %v3347 = vsub.s32 0, %v3346
    %v3348 = vrot.slane %v3278, %v3347
    %v3349 = vlaneseq
    %v3350 = vshrl.u32 %v3349, 7
    %v3351 = vsub.s32 0, %v3350
    %v3352 = vrot.slane %v3292, %v3351
    %v3353 = vlaneseq
    %v3354 = vshrl.u32 %v3353, 7
    %v3355 = vsub.s32 0, %v3354
    %v3356 = vrot.slane %v3294, %v3355
    %v3357 = vlaneseq
    %v3358 = vshrl.u32 %v3357, 7
    %v3359 = vsub.s32 0, %v3358
    %v3360 = vrot.slane %v3296, %v3359
    %v3377 = vmul.f32 %v3165, %v3300
    %v3378 = vmul.f32 %v3166, %v3300
    %v3379 = vmul.f32 %v3167, %v3304
    %v3380 = vmul.f32 %v3168, %v3304
    %v3381 = vmul.f32 %v3169, %v3308
    %v3382 = vmul.f32 %v3170, %v3308
    %v3383 = vmul.f32 %v3171, %v3312
    %v3384 = vmul.f32 %v3172, %v3312
    %v3385 = vmul.f32 %v3173, %v3316
    %v3386 = vmul.f32 %v3174, %v3316
    %v3387 = vmul.f32 %v3175, %v3320
    %v3388 = vmul.f32 %v3176, %v3320
    %v3389 = vmul.f32 %v3177, %v3324
    %v3390 = vmul.f32 %v3178, %v3324
    %v3391 = vmul.f32 %v3179, %v3328
    %v3392 = vmul.f32 %v3180, %v3328
    %v3393 = vmul.f32 %v3181, %v3332
    %v3394 = vmul.f32 %v3182, %v3332
    %v3395 = vmul.f32 %v3183, %v3336
    %v3396 = vmul.f32 %v3184, %v3336
    %v3397 = vmul.f32 %v3185, %v3340
    %v3398 = vmul.f32 %v3186, %v3340
    %v3399 = vmul.f32 %v3187, %v3344
    %v3400 = vmul.f32 %v3188, %v3344
    %v3401 = vmul.f32 %v3189, %v3348
    %v3402 = vmul.f32 %v3190, %v3348
    %v3403 = vmul.f32 %v3191, %v3352
    %v3404 = vmul.f32 %v3192, %v3352
    %v3405 = vmul.f32 %v3193, %v3356
    %v3406 = vmul.f32 %v3194, %v3356
    %v3407 = vmul.f32 %v3195, %v3360
    %v3408 = vmul.f32 %v3196, %v3360
    %v3409 = vadd.f32 %v3377, %v3379
    %v3410 = vadd.f32 %v3409, %v3381
    %v3411 = vadd.f32 %v3410, %v3383
    %v3412 = vadd.f32 %v3411, %v3385
    %v3413 = vadd.f32 %v3412, %v3387
    %v3414 = vadd.f32 %v3413, %v3389
    %v3415 = vadd.f32 %v3414, %v3391
    %v3416 = vadd.f32 %v3415, %v3393
    %v3417 = vadd.f32 %v3416, %v3395
    %v3418 = vadd.f32 %v3417, %v3397
    %v3419 = vadd.f32 %v3418, %v3399
    %v3420 = vadd.f32 %v3419, %v3401
    %v3421 = vadd.f32 %v3420, %v3403
    %v3422 = vadd.f32 %v3421, %v3405
    %v3423 = vadd.f32 %v3422, %v3407
    %v3424 = vadd.f32 %v3378, %v3380
    %v3425 = vadd.f32 %v3424, %v3382
    %v3426 = vadd.f32 %v3425, %v3384
    %v3427 = vadd.f32 %v3426, %v3386
    %v3428 = vadd.f32 %v3427, %v3388
    %v3429 = vadd.f32 %v3428, %v3390
    %v3430 = vadd.f32 %v3429, %v3392
    %v3431 = vadd.f32 %v3430, %v3394
    %v3432 = vadd.f32 %v3431, %v3396
    %v3433 = vadd.f32 %v3432, %v3398
    %v3434 = vadd.f32 %v3433, %v3400
    %v3435 = vadd.f32 %v3434, %v3402
    %v3436 = vadd.f32 %v3435, %v3404
    %v3437 = vadd.f32 %v3436, %v3406
    %v3438 = vadd.f32 %v3437, %v3408
    %vm3439 = vcmp.gt.f32.partialorder %v3423, 0.0
    %vm3440 = vcmp.gt.f32.partialorder %v3438, 0.0
    %v3441 = vmin.f32 %v3423, 0.0
    %v3442 = vmin.f32 %v3438, 0.0
    %v3443 = vmul.f32 %v3441, 1.442695
    %v3444 = vpow.pop %v3443
    %v3445 = vmul.f32 %v3442, 1.442695
    %v3446 = vpow.pop %v3445
    %v3447 = vsub.f32 %v3444, 1.0
    %v3448 = vsub.f32 %v3446, 1.0
    %v3449 = vsel %vm3439, %v3423, %v3447
    %v3450 = vsel %vm3440, %v3438, %v3448
    %v3451 = vld [vmem:[#allocation7 + $0x20] sm:$0xff]
    %v3452 = vld [vmem:[#allocation7 + $0x28] sm:$0xff]
    %v3453 = vld [vmem:[#allocation7 + $0x30] sm:$0xff]
    %v3454 = vld [vmem:[#allocation7 + $0x38] sm:$0xff]
    %v3455 = vld [vmem:[#allocation7 + $0xa0] sm:$0xff]
    %v3456 = vld [vmem:[#allocation7 + $0xa8] sm:$0xff]
    %v3457 = vld [vmem:[#allocation7 + $0xb0] sm:$0xff]
    %v3458 = vld [vmem:[#allocation7 + $0xb8] sm:$0xff]
    %v3459 = vld [vmem:[#allocation7 + $0x120] sm:$0xff]
    %v3460 = vld [vmem:[#allocation7 + $0x128] sm:$0xff]
    %v3461 = vld [vmem:[#allocation7 + $0x130] sm:$0xff]
    %v3462 = vld [vmem:[#allocation7 + $0x138] sm:$0xff]
    %v3463 = vld [vmem:[#allocation7 + $0x1a0] sm:$0xff]
    %v3464 = vld [vmem:[#allocation7 + $0x1a8] sm:$0xff]
    %v3465 = vld [vmem:[#allocation7 + $0x1b0] sm:$0xff]
    %v3466 = vld [vmem:[#allocation7 + $0x1b8] sm:$0xff]
    %v3467 = vld [vmem:[#allocation7 + $0x220] sm:$0xff]
    %v3468 = vld [vmem:[#allocation7 + $0x228] sm:$0xff]
    %v3469 = vld [vmem:[#allocation7 + $0x230] sm:$0xff]
    %v3470 = vld [vmem:[#allocation7 + $0x238] sm:$0xff]
    %v3471 = vld [vmem:[#allocation7 + $0x2a0] sm:$0xff]
    %v3472 = vld [vmem:[#allocation7 + $0x2a8] sm:$0xff]
    %v3473 = vld [vmem:[#allocation7 + $0x2b0] sm:$0xff]
    %v3474 = vld [vmem:[#allocation7 + $0x2b8] sm:$0xff]
    %v3475 = vld [vmem:[#allocation7 + $0x320] sm:$0xff]
    %v3476 = vld [vmem:[#allocation7 + $0x328] sm:$0xff]
    %v3477 = vld [vmem:[#allocation7 + $0x330] sm:$0xff]
    %v3478 = vld [vmem:[#allocation7 + $0x338] sm:$0xff]
    %v3479 = vld [vmem:[#allocation7 + $0x3a0] sm:$0xff]
    %v3480 = vld [vmem:[#allocation7 + $0x3a8] sm:$0xff]
    %v3481 = vld [vmem:[#allocation7 + $0x3b0] sm:$0xff]
    %v3482 = vld [vmem:[#allocation7 + $0x3b8] sm:$0xff]
    %v3483 = vld [vmem:[#allocation7 + $0x420] sm:$0xff]
    %v3484 = vld [vmem:[#allocation7 + $0x428] sm:$0xff]
    %v3485 = vld [vmem:[#allocation7 + $0x430] sm:$0xff]
    %v3486 = vld [vmem:[#allocation7 + $0x438] sm:$0xff]
    %v3487 = vld [vmem:[#allocation7 + $0x4a0] sm:$0xff]
    %v3488 = vld [vmem:[#allocation7 + $0x4a8] sm:$0xff]
    %v3489 = vld [vmem:[#allocation7 + $0x4b0] sm:$0xff]
    %v3490 = vld [vmem:[#allocation7 + $0x4b8] sm:$0xff]
    %v3491 = vld [vmem:[#allocation7 + $0x520] sm:$0xff]
    %v3492 = vld [vmem:[#allocation7 + $0x528] sm:$0xff]
    %v3493 = vld [vmem:[#allocation7 + $0x530] sm:$0xff]
    %v3494 = vld [vmem:[#allocation7 + $0x538] sm:$0xff]
    %v3495 = vld [vmem:[#allocation7 + $0x5a0] sm:$0xff]
    %v3496 = vld [vmem:[#allocation7 + $0x5a8] sm:$0xff]
    %v3497 = vld [vmem:[#allocation7 + $0x5b0] sm:$0xff]
    %v3498 = vld [vmem:[#allocation7 + $0x5b8] sm:$0xff]
    %v3499 = vld [vmem:[#allocation7 + $0x620] sm:$0xff]
    %v3500 = vld [vmem:[#allocation7 + $0x628] sm:$0xff]
    %v3501 = vld [vmem:[#allocation7 + $0x630] sm:$0xff]
    %v3502 = vld [vmem:[#allocation7 + $0x638] sm:$0xff]
    %v3503 = vld [vmem:[#allocation7 + $0x6a0] sm:$0xff]
    %v3504 = vld [vmem:[#allocation7 + $0x6a8] sm:$0xff]
    %v3505 = vld [vmem:[#allocation7 + $0x6b0] sm:$0xff]
    %v3506 = vld [vmem:[#allocation7 + $0x6b8] sm:$0xff]
    %v3507 = vld [vmem:[#allocation7 + $0x720] sm:$0xff]
    %v3508 = vld [vmem:[#allocation7 + $0x728] sm:$0xff]
    %v3509 = vld [vmem:[#allocation7 + $0x730] sm:$0xff]
    %v3510 = vld [vmem:[#allocation7 + $0x738] sm:$0xff]
    %v3511 = vld [vmem:[#allocation7 + $0x7a0] sm:$0xff]
    %v3512 = vld [vmem:[#allocation7 + $0x7a8] sm:$0xff]
    %v3513 = vld [vmem:[#allocation7 + $0x7b0] sm:$0xff]
    %v3514 = vld [vmem:[#allocation7 + $0x7b8] sm:$0xff]
    %v3515 = vld [vmem:[#allocation7 + $0x820] sm:$0xff]
    %v3516 = vld [vmem:[#allocation7 + $0x828] sm:$0xff]
    %v3517 = vld [vmem:[#allocation7 + $0x830] sm:$0xff]
    %v3518 = vld [vmem:[#allocation7 + $0x838] sm:$0xff]
    %v3519 = vld [vmem:[#allocation7 + $0x8a0] sm:$0xff]
    %v3520 = vld [vmem:[#allocation7 + $0x8a8] sm:$0xff]
    %v3521 = vld [vmem:[#allocation7 + $0x8b0] sm:$0xff]
    %v3522 = vld [vmem:[#allocation7 + $0x8b8] sm:$0xff]
    %v3523 = vld [vmem:[#allocation7 + $0x920] sm:$0xff]
    %v3524 = vld [vmem:[#allocation7 + $0x928] sm:$0xff]
    %v3525 = vld [vmem:[#allocation7 + $0x930] sm:$0xff]
    %v3526 = vld [vmem:[#allocation7 + $0x938] sm:$0xff]
    %v3527 = vld [vmem:[#allocation7 + $0x9a0] sm:$0xff]
    %v3528 = vld [vmem:[#allocation7 + $0x9a8] sm:$0xff]
    %v3529 = vld [vmem:[#allocation7 + $0x9b0] sm:$0xff]
    %v3530 = vld [vmem:[#allocation7 + $0x9b8] sm:$0xff]
    %v3531 = vld [vmem:[#allocation7 + $0xa20] sm:$0xff]
    %v3532 = vld [vmem:[#allocation7 + $0xa28] sm:$0xff]
    %v3533 = vld [vmem:[#allocation7 + $0xa30] sm:$0xff]
    %v3534 = vld [vmem:[#allocation7 + $0xa38] sm:$0xff]
    %v3535 = vld [vmem:[#allocation7 + $0xaa0] sm:$0xff]
    %v3536 = vld [vmem:[#allocation7 + $0xaa8] sm:$0xff]
    %v3537 = vld [vmem:[#allocation7 + $0xab0] sm:$0xff]
    %v3538 = vld [vmem:[#allocation7 + $0xab8] sm:$0xff]
    %v3539 = vld [vmem:[#allocation7 + $0xb20] sm:$0xff]
    %v3540 = vld [vmem:[#allocation7 + $0xb28] sm:$0xff]
    %v3541 = vld [vmem:[#allocation7 + $0xb30] sm:$0xff]
    %v3542 = vld [vmem:[#allocation7 + $0xb38] sm:$0xff]
    %v3543 = vld [vmem:[#allocation7 + $0xba0] sm:$0xff]
    %v3544 = vld [vmem:[#allocation7 + $0xba8] sm:$0xff]
    %v3545 = vld [vmem:[#allocation7 + $0xbb0] sm:$0xff]
    %v3546 = vld [vmem:[#allocation7 + $0xbb8] sm:$0xff]
    %v3547 = vld [vmem:[#allocation7 + $0xc20] sm:$0xff]
    %v3548 = vld [vmem:[#allocation7 + $0xc28] sm:$0xff]
    %v3549 = vld [vmem:[#allocation7 + $0xc30] sm:$0xff]
    %v3550 = vld [vmem:[#allocation7 + $0xc38] sm:$0xff]
    %v3551 = vld [vmem:[#allocation7 + $0xca0] sm:$0xff]
    %v3552 = vld [vmem:[#allocation7 + $0xca8] sm:$0xff]
    %v3553 = vld [vmem:[#allocation7 + $0xcb0] sm:$0xff]
    %v3554 = vld [vmem:[#allocation7 + $0xcb8] sm:$0xff]
    %v3555 = vld [vmem:[#allocation7 + $0xd20] sm:$0xff]
    %v3556 = vld [vmem:[#allocation7 + $0xd28] sm:$0xff]
    %v3557 = vld [vmem:[#allocation7 + $0xd30] sm:$0xff]
    %v3558 = vld [vmem:[#allocation7 + $0xd38] sm:$0xff]
    %v3559 = vld [vmem:[#allocation7 + $0xda0] sm:$0xff]
    %v3560 = vld [vmem:[#allocation7 + $0xda8] sm:$0xff]
    %v3561 = vld [vmem:[#allocation7 + $0xdb0] sm:$0xff]
    %v3562 = vld [vmem:[#allocation7 + $0xdb8] sm:$0xff]
    %v3563 = vld [vmem:[#allocation7 + $0xe20] sm:$0xff]
    %v3564 = vld [vmem:[#allocation7 + $0xe28] sm:$0xff]
    %v3565 = vld [vmem:[#allocation7 + $0xe30] sm:$0xff]
    %v3566 = vld [vmem:[#allocation7 + $0xe38] sm:$0xff]
    %v3567 = vld [vmem:[#allocation7 + $0xea0] sm:$0xff]
    %v3568 = vld [vmem:[#allocation7 + $0xea8] sm:$0xff]
    %v3569 = vld [vmem:[#allocation7 + $0xeb0] sm:$0xff]
    %v3570 = vld [vmem:[#allocation7 + $0xeb8] sm:$0xff]
    %v3571 = vld [vmem:[#allocation7 + $0xf20] sm:$0xff]
    %v3572 = vld [vmem:[#allocation7 + $0xf28] sm:$0xff]
    %v3573 = vld [vmem:[#allocation7 + $0xf30] sm:$0xff]
    %v3574 = vld [vmem:[#allocation7 + $0xf38] sm:$0xff]
    %v3575 = vld [vmem:[#allocation7 + $0xfa0] sm:$0xff]
    %v3576 = vld [vmem:[#allocation7 + $0xfa8] sm:$0xff]
    %v3577 = vld [vmem:[#allocation7 + $0xfb0] sm:$0xff]
    %v3578 = vld [vmem:[#allocation7 + $0xfb8] sm:$0xff]
    %v3579 = vld [vmem:[#allocation8 + $0xb] sm:$0xf]
    %v3581 = vlaneseq
    %v3582 = vshrl.u32 %v3581, 7
    %v3583 = vsub.s32 0, %v3582
    %v3584 = vrot.slane %v3579, %v3583
    %v3585 = vlaneseq
    %v3586 = vshrl.u32 %v3585, 7
    %v3587 = vsub.s32 1, %v3586
    %v3588 = vrot.slane %v3579, %v3587
    %v3589 = vlaneseq
    %v3590 = vshrl.u32 %v3589, 7
    %v3591 = vsub.s32 2, %v3590
    %v3592 = vrot.slane %v3579, %v3591
    %v3593 = vlaneseq
    %v3594 = vshrl.u32 %v3593, 7
    %v3595 = vsub.s32 3, %v3594
    %v3596 = vrot.slane %v3579, %v3595
    %3601 = vmatprep.subr.mxu0 %v3452
    %3602 = vmatpush1.msra.mxu0 %v3451
    %3603 = vmatprep.subr.mxu0 %v3456
    %3604 = vmatpush1.msra.mxu0 %v3455
    %3605 = vmatprep.subr.mxu0 %v3460
    %3606 = vmatpush1.msra.mxu0 %v3459
    %3607 = vmatprep.subr.mxu0 %v3464
    %3608 = vmatpush1.msra.mxu0 %v3463
    %3609 = vmatprep.subr.mxu0 %v3468
    %3610 = vmatpush1.msra.mxu0 %v3467
    %3611 = vmatprep.subr.mxu0 %v3472
    %3612 = vmatpush1.msra.mxu0 %v3471
    %3613 = vmatprep.subr.mxu0 %v3476
    %3614 = vmatpush1.msra.mxu0 %v3475
    %3615 = vmatprep.subr.mxu0 %v3480
    %3616 = vmatpush1.msra.mxu0 %v3479
    %3617 = vmatprep.subr.mxu0 %v3484
    %3618 = vmatpush1.msra.mxu0 %v3483
    %3619 = vmatprep.subr.mxu0 %v3488
    %3620 = vmatpush1.msra.mxu0 %v3487
    %3621 = vmatprep.subr.mxu0 %v3492
    %3622 = vmatpush1.msra.mxu0 %v3491
    %3623 = vmatprep.subr.mxu0 %v3496
    %3624 = vmatpush1.msra.mxu0 %v3495
    %3625 = vmatprep.subr.mxu0 %v3500
    %3626 = vmatpush1.msra.mxu0 %v3499
    %3627 = vmatprep.subr.mxu0 %v3504
    %3628 = vmatpush1.msra.mxu0 %v3503
    %3629 = vmatprep.subr.mxu0 %v3508
    %3630 = vmatpush1.msra.mxu0 %v3507
    %3631 = vmatprep.subr.mxu0 %v3512
    %3632 = vmatpush1.msra.mxu0 %v3511
    %3633 = vmatprep.subr.mxu0 %v3516
    %3634 = vmatpush1.msra.mxu0 %v3515
    %3635 = vmatprep.subr.mxu0 %v3520
    %3636 = vmatpush1.msra.mxu0 %v3519
    %3637 = vmatprep.subr.mxu0 %v3524
    %3638 = vmatpush1.msra.mxu0 %v3523
    %3639 = vmatprep.subr.mxu0 %v3528
    %3640 = vmatpush1.msra.mxu0 %v3527
    %3641 = vmatprep.subr.mxu0 %v3532
    %3642 = vmatpush1.msra.mxu0 %v3531
    %3643 = vmatprep.subr.mxu0 %v3536
    %3644 = vmatpush1.msra.mxu0 %v3535
    %3645 = vmatprep.subr.mxu0 %v3540
    %3646 = vmatpush1.msra.mxu0 %v3539
    %3647 = vmatprep.subr.mxu0 %v3544
    %3648 = vmatpush1.msra.mxu0 %v3543
    %3649 = vmatprep.subr.mxu0 %v3548
    %3650 = vmatpush1.msra.mxu0 %v3547
    %3651 = vmatprep.subr.mxu0 %v3552
    %3652 = vmatpush1.msra.mxu0 %v3551
    %3653 = vmatprep.subr.mxu0 %v3556
    %3654 = vmatpush1.msra.mxu0 %v3555
    %3655 = vmatprep.subr.mxu0 %v3560
    %3656 = vmatpush1.msra.mxu0 %v3559
    %3657 = vmatprep.subr.mxu0 %v3564
    %3658 = vmatpush1.msra.mxu0 %v3563
    %3659 = vmatprep.subr.mxu0 %v3568
    %3660 = vmatpush1.msra.mxu0 %v3567
    %3661 = vmatprep.subr.mxu0 %v3572
    %3662 = vmatpush1.msra.mxu0 %v3571
    %3663 = vmatprep.subr.mxu0 %v3576
    %3664 = vmatpush1.msra.mxu0 %v3575
    %3665 = vmatprep.mubr.f32.mxu0 %v2414
    %3666 = vmatmul.mubr.f32.gmra.mrb[0].mxu0 %v3449
    %v3667 = vpop.f32.mrb[0].mxu0
    %v3668 = vadd.f32 %v3584, %v3667
    %v3669 = vpop.f32.mrb[0].mxu0
    %v3670 = vadd.f32 %v3588, %v3669
    %3671 = vmatprep.mubr.f32.mxu0 %v2415
    %3672 = vmatmul.mubr.f32.gmra.mrb[0].mxu0 %v3450
    %v3673 = vpop.f32.mrb[0].mxu0
    %v3674 = vadd.f32 %v3584, %v3673
    %v3675 = vpop.f32.mrb[0].mxu0
    %v3676 = vadd.f32 %v3588, %v3675
    %3677 = vdwg.mxu0
    %3678 = vmatprep.subr.mxu0 %v3454
    %3679 = vmatpush1.msra.mxu0 %v3453
    %3680 = vmatprep.subr.mxu0 %v3458
    %3681 = vmatpush1.msra.mxu0 %v3457
    %3682 = vmatprep.subr.mxu0 %v3462
    %3683 = vmatpush1.msra.mxu0 %v3461
    %3684 = vmatprep.subr.mxu0 %v3466
    %3685 = vmatpush1.msra.mxu0 %v3465
    %3686 = vmatprep.subr.mxu0 %v3470
    %3687 = vmatpush1.msra.mxu0 %v3469
    %3688 = vmatprep.subr.mxu0 %v3474
    %3689 = vmatpush1.msra.mxu0 %v3473
    %3690 = vmatprep.subr.mxu0 %v3478
    %3691 = vmatpush1.msra.mxu0 %v3477
    %3692 = vmatprep.subr.mxu0 %v3482
    %3693 = vmatpush1.msra.mxu0 %v3481
    %3694 = vmatprep.subr.mxu0 %v3486
    %3695 = vmatpush1.msra.mxu0 %v3485
    %3696 = vmatprep.subr.mxu0 %v3490
    %3697 = vmatpush1.msra.mxu0 %v3489
    %3698 = vmatprep.subr.mxu0 %v3494
    %3699 = vmatpush1.msra.mxu0 %v3493
    %3700 = vmatprep.subr.mxu0 %v3498
    %3701 = vmatpush1.msra.mxu0 %v3497
    %3702 = vmatprep.subr.mxu0 %v3502
    %3703 = vmatpush1.msra.mxu0 %v3501
    %3704 = vmatprep.subr.mxu0 %v3506
    %3705 = vmatpush1.msra.mxu0 %v3505
    %3706 = vmatprep.subr.mxu0 %v3510
    %3707 = vmatpush1.msra.mxu0 %v3509
    %3708 = vmatprep.subr.mxu0 %v3514
    %3709 = vmatpush1.msra.mxu0 %v3513
    %3710 = vmatprep.subr.mxu0 %v3518
    %3711 = vmatpush1.msra.mxu0 %v3517
    %3712 = vmatprep.subr.mxu0 %v3522
    %3713 = vmatpush1.msra.mxu0 %v3521
    %3714 = vmatprep.subr.mxu0 %v3526
    %3715 = vmatpush1.msra.mxu0 %v3525
    %3716 = vmatprep.subr.mxu0 %v3530
    %3717 = vmatpush1.msra.mxu0 %v3529
    %3718 = vmatprep.subr.mxu0 %v3534
    %3719 = vmatpush1.msra.mxu0 %v3533
    %3720 = vmatprep.subr.mxu0 %v3538
    %3721 = vmatpush1.msra.mxu0 %v3537
    %3722 = vmatprep.subr.mxu0 %v3542
    %3723 = vmatpush1.msra.mxu0 %v3541
    %3724 = vmatprep.subr.mxu0 %v3546
    %3725 = vmatpush1.msra.mxu0 %v3545
    %3726 = vmatprep.subr.mxu0 %v3550
    %3727 = vmatpush1.msra.mxu0 %v3549
    %3728 = vmatprep.subr.mxu0 %v3554
    %3729 = vmatpush1.msra.mxu0 %v3553
    %3730 = vmatprep.subr.mxu0 %v3558
    %3731 = vmatpush1.msra.mxu0 %v3557
    %3732 = vmatprep.subr.mxu0 %v3562
    %3733 = vmatpush1.msra.mxu0 %v3561
    %3734 = vmatprep.subr.mxu0 %v3566
    %3735 = vmatpush1.msra.mxu0 %v3565
    %3736 = vmatprep.subr.mxu0 %v3570
    %3737 = vmatpush1.msra.mxu0 %v3569
    %3738 = vmatprep.subr.mxu0 %v3574
    %3739 = vmatpush1.msra.mxu0 %v3573
    %3740 = vmatprep.subr.mxu0 %v3578
    %3741 = vmatpush1.msra.mxu0 %v3577
    %3742 = vmatprep.mubr.f32.mxu0 %v2414
    %3743 = vmatmul.mubr.f32.gmra.mrb[0].mxu0 %v3449
    %v3744 = vpop.f32.mrb[0].mxu0
    %v3745 = vadd.f32 %v3592, %v3744
    %v3746 = vpop.f32.mrb[0].mxu0
    %v3747 = vadd.f32 %v3596, %v3746
    %3748 = vmatprep.mubr.f32.mxu0 %v2415
    %3749 = vmatmul.mubr.f32.gmra.mrb[0].mxu0 %v3450
    %v3750 = vpop.f32.mrb[0].mxu0
    %v3751 = vadd.f32 %v3592, %v3750
    %v3752 = vpop.f32.mrb[0].mxu0
    %v3753 = vadd.f32 %v3596, %v3752
    %3754 = vdwg.mxu0
    %v3755 = vmul.f32 %v3668, 0.5
    %v3756 = vmul.f32 %v3674, 0.5
    %v3757 = vtanh.pop %v3755
    %v3758 = vtanh.pop %v3756
    %v3759 = vadd.f32 %v3757, 1.0
    %v3760 = vadd.f32 %v3758, 1.0
    %v3761 = vmul.f32 %v3759, 0.5
    %v3762 = vmul.f32 %v3760, 0.5
    %v3763 = vmul.f32 %v3670, 0.5
    %v3764 = vmul.f32 %v3676, 0.5
    %v3765 = vtanh.pop %v3763
    %v3766 = vtanh.pop %v3764
    %v3767 = vadd.f32 %v3765, 1.0
    %v3768 = vadd.f32 %v3766, 1.0
    %v3769 = vmul.f32 %v3767, 0.5
    %v3770 = vmul.f32 %v3768, 0.5
    %v3771 = vmul.f32 %v3761, %v3747
    %v3772 = vmul.f32 %v3762, %v3753
    %v3773 = vadd.f32 %v3745, %v3771
    %v3774 = vadd.f32 %v3751, %v3772
    %v3775 = vtanh.pop %v3773
    %v3776 = vtanh.pop %v3774
    %v3777 = vsub.f32 1.0, %v3769
    %v3778 = vsub.f32 1.0, %v3770
    %v3779 = vmul.f32 %v3777, %v3775
    %v3780 = vmul.f32 %v3778, %v3776
    %v3781 = vmul.f32 %v3769, %v2414
    %v3782 = vmul.f32 %v3770, %v2415
    %v3783 = vadd.f32 %v3779, %v3781
    %v3784 = vadd.f32 %v3780, %v3782
    %v3785 = vmax.f32 %v3783, 0.0
    %v3786 = vmax.f32 %v3784, 0.0
    %v3787 = vld [vmem:[#allocation5 + $0x30] sm:$0xff]
    %v3788 = vld [vmem:[#allocation5 + $0x38] sm:$0xff]
    %v3789 = vld [vmem:[#allocation5 + $0x40] sm:$0xff]
    %v3790 = vld [vmem:[#allocation5 + $0x48] sm:$0xff]
    %v3791 = vld [vmem:[#allocation5 + $0x98] sm:$0xff]
    %v3792 = vld [vmem:[#allocation5 + $0xa0] sm:$0xff]
    %v3793 = vld [vmem:[#allocation5 + $0xa8] sm:$0xff]
    %v3794 = vld [vmem:[#allocation5 + $0xb0] sm:$0xff]
    %v3795 = vld [vmem:[#allocation5 + $0x100] sm:$0xff]
    %v3796 = vld [vmem:[#allocation5 + $0x108] sm:$0xff]
    %v3797 = vld [vmem:[#allocation5 + $0x110] sm:$0xff]
    %v3798 = vld [vmem:[#allocation5 + $0x118] sm:$0xff]
    %v3799 = vld [vmem:[#allocation5 + $0x168] sm:$0xff]
    %v3800 = vld [vmem:[#allocation5 + $0x170] sm:$0xff]
    %v3801 = vld [vmem:[#allocation5 + $0x178] sm:$0xff]
    %v3802 = vld [vmem:[#allocation5 + $0x180] sm:$0xff]
    %v3803 = vld [vmem:[#allocation5 + $0x1d0] sm:$0xff]
    %v3804 = vld [vmem:[#allocation5 + $0x1d8] sm:$0xff]
    %v3805 = vld [vmem:[#allocation5 + $0x1e0] sm:$0xff]
    %v3806 = vld [vmem:[#allocation5 + $0x1e8] sm:$0xff]
    %v3807 = vld [vmem:[#allocation5 + $0x238] sm:$0xff]
    %v3808 = vld [vmem:[#allocation5 + $0x240] sm:$0xff]
    %v3809 = vld [vmem:[#allocation5 + $0x248] sm:$0xff]
    %v3810 = vld [vmem:[#allocation5 + $0x250] sm:$0xff]
    %v3811 = vld [vmem:[#allocation5 + $0x2a0] sm:$0xff]
    %v3812 = vld [vmem:[#allocation5 + $0x2a8] sm:$0xff]
    %v3813 = vld [vmem:[#allocation5 + $0x2b0] sm:$0xff]
    %v3814 = vld [vmem:[#allocation5 + $0x2b8] sm:$0xff]
    %v3815 = vld [vmem:[#allocation5 + $0x308] sm:$0xff]
    %v3816 = vld [vmem:[#allocation5 + $0x310] sm:$0xff]
    %v3817 = vld [vmem:[#allocation5 + $0x318] sm:$0xff]
    %v3818 = vld [vmem:[#allocation5 + $0x320] sm:$0xff]
    %v3819 = vld [vmem:[#allocation5 + $0x370] sm:$0xff]
    %v3820 = vld [vmem:[#allocation5 + $0x378] sm:$0xff]
    %v3821 = vld [vmem:[#allocation5 + $0x380] sm:$0xff]
    %v3822 = vld [vmem:[#allocation5 + $0x388] sm:$0xff]
    %v3823 = vld [vmem:[#allocation5 + $0x3d8] sm:$0xff]
    %v3824 = vld [vmem:[#allocation5 + $0x3e0] sm:$0xff]
    %v3825 = vld [vmem:[#allocation5 + $0x3e8] sm:$0xff]
    %v3826 = vld [vmem:[#allocation5 + $0x3f0] sm:$0xff]
    %v3827 = vld [vmem:[#allocation5 + $0x440] sm:$0xff]
    %v3828 = vld [vmem:[#allocation5 + $0x448] sm:$0xff]
    %v3829 = vld [vmem:[#allocation5 + $0x450] sm:$0xff]
    %v3830 = vld [vmem:[#allocation5 + $0x458] sm:$0xff]
    %v3831 = vld [vmem:[#allocation5 + $0x4a8] sm:$0xff]
    %v3832 = vld [vmem:[#allocation5 + $0x4b0] sm:$0xff]
    %v3833 = vld [vmem:[#allocation5 + $0x4b8] sm:$0xff]
    %v3834 = vld [vmem:[#allocation5 + $0x4c0] sm:$0xff]
    %v3835 = vld [vmem:[#allocation5 + $0x510] sm:$0xff]
    %v3836 = vld [vmem:[#allocation5 + $0x518] sm:$0xff]
    %v3837 = vld [vmem:[#allocation5 + $0x520] sm:$0xff]
    %v3838 = vld [vmem:[#allocation5 + $0x528] sm:$0xff]
    %v3839 = vld [vmem:[#allocation5 + $0x578] sm:$0xff]
    %v3840 = vld [vmem:[#allocation5 + $0x580] sm:$0xff]
    %v3841 = vld [vmem:[#allocation5 + $0x588] sm:$0xff]
    %v3842 = vld [vmem:[#allocation5 + $0x590] sm:$0xff]
    %v3843 = vld [vmem:[#allocation5 + $0x5e0] sm:$0xff]
    %v3844 = vld [vmem:[#allocation5 + $0x5e8] sm:$0xff]
    %v3845 = vld [vmem:[#allocation5 + $0x5f0] sm:$0xff]
    %v3846 = vld [vmem:[#allocation5 + $0x5f8] sm:$0xff]
    %v3847 = vld [vmem:[#allocation5 + $0x648] sm:$0xff]
    %v3848 = vld [vmem:[#allocation5 + $0x650] sm:$0xff]
    %v3849 = vld [vmem:[#allocation5 + $0x658] sm:$0xff]
    %v3850 = vld [vmem:[#allocation5 + $0x660] sm:$0xff]
    %v3851 = vld [vmem:[#allocation8 + $0xf] sm:$0xf]
    %v3853 = vlaneseq
    %v3854 = vshrl.u32 %v3853, 7
    %v3855 = vsub.s32 0, %v3854
    %v3856 = vrot.slane %v3851, %v3855
    %v3857 = vlaneseq
    %v3858 = vshrl.u32 %v3857, 7
    %v3859 = vsub.s32 1, %v3858
    %v3860 = vrot.slane %v3851, %v3859
    %v3861 = vlaneseq
    %v3862 = vshrl.u32 %v3861, 7
    %v3863 = vsub.s32 2, %v3862
    %v3864 = vrot.slane %v3851, %v3863
    %v3865 = vlaneseq
    %v3866 = vshrl.u32 %v3865, 7
    %v3867 = vsub.s32 3, %v3866
    %v3868 = vrot.slane %v3851, %v3867
    %3873 = vmatprep.subr.mxu0 %v3788
    %3874 = vmatpush1.msra.mxu0 %v3787
    %3875 = vmatprep.subr.mxu0 %v3792
    %3876 = vmatpush1.msra.mxu0 %v3791
    %3877 = vmatprep.subr.mxu0 %v3796
    %3878 = vmatpush1.msra.mxu0 %v3795
    %3879 = vmatprep.subr.mxu0 %v3800
    %3880 = vmatpush1.msra.mxu0 %v3799
    %3881 = vmatprep.subr.mxu0 %v3804
    %3882 = vmatpush1.msra.mxu0 %v3803
    %3883 = vmatprep.subr.mxu0 %v3808
    %3884 = vmatpush1.msra.mxu0 %v3807
    %3885 = vmatprep.subr.mxu0 %v3812
    %3886 = vmatpush1.msra.mxu0 %v3811
    %3887 = vmatprep.subr.mxu0 %v3816
    %3888 = vmatpush1.msra.mxu0 %v3815
    %3889 = vmatprep.subr.mxu0 %v3820
    %3890 = vmatpush1.msra.mxu0 %v3819
    %3891 = vmatprep.subr.mxu0 %v3824
    %3892 = vmatpush1.msra.mxu0 %v3823
    %3893 = vmatprep.subr.mxu0 %v3828
    %3894 = vmatpush1.msra.mxu0 %v3827
    %3895 = vmatprep.subr.mxu0 %v3832
    %3896 = vmatpush1.msra.mxu0 %v3831
    %3897 = vmatprep.subr.mxu0 %v3836
    %3898 = vmatpush1.msra.mxu0 %v3835
    %3899 = vmatprep.subr.mxu0 %v3840
    %3900 = vmatpush1.msra.mxu0 %v3839
    %3901 = vmatprep.subr.mxu0 %v3844
    %3902 = vmatpush1.msra.mxu0 %v3843
    %3903 = vmatprep.subr.mxu0 %v3848
    %3904 = vmatpush1.msra.mxu0 %v3847
    %3905 = vmatprep.subr.mxu0 0.0
    %3906 = vmatpush1.msra.mxu0 0.0
    %3907 = vmatprep.subr.mxu0 0.0
    %3908 = vmatpush1.msra.mxu0 0.0
    %3909 = vmatprep.subr.mxu0 0.0
    %3910 = vmatpush1.msra.mxu0 0.0
    %3911 = vmatprep.subr.mxu0 0.0
    %3912 = vmatpush1.msra.mxu0 0.0
    %3913 = vmatprep.subr.mxu0 0.0
    %3914 = vmatpush1.msra.mxu0 0.0
    %3915 = vmatprep.subr.mxu0 0.0
    %3916 = vmatpush1.msra.mxu0 0.0
    %3917 = vmatprep.subr.mxu0 0.0
    %3918 = vmatpush1.msra.mxu0 0.0
    %3919 = vmatprep.subr.mxu0 0.0
    %3920 = vmatpush1.msra.mxu0 0.0
    %3921 = vmatprep.subr.mxu0 0.0
    %3922 = vmatpush1.msra.mxu0 0.0
    %3923 = vmatprep.subr.mxu0 0.0
    %3924 = vmatpush1.msra.mxu0 0.0
    %3925 = vmatprep.subr.mxu0 0.0
    %3926 = vmatpush1.msra.mxu0 0.0
    %3927 = vmatprep.subr.mxu0 0.0
    %3928 = vmatpush1.msra.mxu0 0.0
    %3929 = vmatprep.subr.mxu0 0.0
    %3930 = vmatpush1.msra.mxu0 0.0
    %3931 = vmatprep.subr.mxu0 0.0
    %3932 = vmatpush1.msra.mxu0 0.0
    %3933 = vmatprep.subr.mxu0 0.0
    %3934 = vmatpush1.msra.mxu0 0.0
    %3935 = vmatprep.subr.mxu0 0.0
    %3936 = vmatpush1.msra.mxu0 0.0
    %3937 = vmatprep.mubr.f32.mxu0 0.0
    %3938 = vmatmul.mubr.f32.gmra.mrb[0].mxu0 %v3785
    %v3939 = vpop.f32.mrb[0].mxu0
    %v3940 = vadd.f32 %v3856, %v3939
    %v3941 = vpop.f32.mrb[0].mxu0
    %v3942 = vadd.f32 %v3860, %v3941
    %3943 = vmatprep.mubr.f32.mxu0 0.0
    %3944 = vmatmul.mubr.f32.gmra.mrb[0].mxu0 %v3786
    %v3945 = vpop.f32.mrb[0].mxu0
    %v3946 = vadd.f32 %v3856, %v3945
    %v3947 = vpop.f32.mrb[0].mxu0
    %v3948 = vadd.f32 %v3860, %v3947
    %3949 = vdwg.mxu0
    %3950 = vmatprep.subr.mxu0 %v3790
    %3951 = vmatpush1.msra.mxu0 %v3789
    %3952 = vmatprep.subr.mxu0 %v3794
    %3953 = vmatpush1.msra.mxu0 %v3793
    %3954 = vmatprep.subr.mxu0 %v3798
    %3955 = vmatpush1.msra.mxu0 %v3797
    %3956 = vmatprep.subr.mxu0 %v3802
    %3957 = vmatpush1.msra.mxu0 %v3801
    %3958 = vmatprep.subr.mxu0 %v3806
    %3959 = vmatpush1.msra.mxu0 %v3805
    %3960 = vmatprep.subr.mxu0 %v3810
    %3961 = vmatpush1.msra.mxu0 %v3809
    %3962 = vmatprep.subr.mxu0 %v3814
    %3963 = vmatpush1.msra.mxu0 %v3813
    %3964 = vmatprep.subr.mxu0 %v3818
    %3965 = vmatpush1.msra.mxu0 %v3817
    %3966 = vmatprep.subr.mxu0 %v3822
    %3967 = vmatpush1.msra.mxu0 %v3821
    %3968 = vmatprep.subr.mxu0 %v3826
    %3969 = vmatpush1.msra.mxu0 %v3825
    %3970 = vmatprep.subr.mxu0 %v3830
    %3971 = vmatpush1.msra.mxu0 %v3829
    %3972 = vmatprep.subr.mxu0 %v3834
    %3973 = vmatpush1.msra.mxu0 %v3833
    %3974 = vmatprep.subr.mxu0 %v3838
    %3975 = vmatpush1.msra.mxu0 %v3837
    %3976 = vmatprep.subr.mxu0 %v3842
    %3977 = vmatpush1.msra.mxu0 %v3841
    %3978 = vmatprep.subr.mxu0 %v3846
    %3979 = vmatpush1.msra.mxu0 %v3845
    %3980 = vmatprep.subr.mxu0 %v3850
    %3981 = vmatpush1.msra.mxu0 %v3849
    %3982 = vmatprep.subr.mxu0 0.0
    %3983 = vmatpush1.msra.mxu0 0.0
    %3984 = vmatprep.subr.mxu0 0.0
    %3985 = vmatpush1.msra.mxu0 0.0
    %3986 = vmatprep.subr.mxu0 0.0
    %3987 = vmatpush1.msra.mxu0 0.0
    %3988 = vmatprep.subr.mxu0 0.0
    %3989 = vmatpush1.msra.mxu0 0.0
    %3990 = vmatprep.subr.mxu0 0.0
    %3991 = vmatpush1.msra.mxu0 0.0
    %3992 = vmatprep.subr.mxu0 0.0
    %3993 = vmatpush1.msra.mxu0 0.0
    %3994 = vmatprep.subr.mxu0 0.0
    %3995 = vmatpush1.msra.mxu0 0.0
    %3996 = vmatprep.subr.mxu0 0.0
    %3997 = vmatpush1.msra.mxu0 0.0
    %3998 = vmatprep.subr.mxu0 0.0
    %3999 = vmatpush1.msra.mxu0 0.0
    %4000 = vmatprep.subr.mxu0 0.0
    %4001 = vmatpush1.msra.mxu0 0.0
    %4002 = vmatprep.subr.mxu0 0.0
    %4003 = vmatpush1.msra.mxu0 0.0
    %4004 = vmatprep.subr.mxu0 0.0
    %4005 = vmatpush1.msra.mxu0 0.0
    %4006 = vmatprep.subr.mxu0 0.0
    %4007 = vmatpush1.msra.mxu0 0.0
    %4008 = vmatprep.subr.mxu0 0.0
    %4009 = vmatpush1.msra.mxu0 0.0
    %4010 = vmatprep.subr.mxu0 0.0
    %4011 = vmatpush1.msra.mxu0 0.0
    %4012 = vmatprep.subr.mxu0 0.0
    %4013 = vmatpush1.msra.mxu0 0.0
    %4014 = vmatprep.mubr.f32.mxu0 0.0
    %4015 = vmatmul.mubr.f32.gmra.mrb[0].mxu0 %v3785
    %v4016 = vpop.f32.mrb[0].mxu0
    %v4017 = vadd.f32 %v3864, %v4016
    %v4018 = vpop.f32.mrb[0].mxu0
    %v4019 = vadd.f32 %v3868, %v4018
    %4020 = vmatprep.mubr.f32.mxu0 0.0
    %4021 = vmatmul.mubr.f32.gmra.mrb[0].mxu0 %v3786
    %v4022 = vpop.f32.mrb[0].mxu0
    %v4023 = vadd.f32 %v3864, %v4022
    %v4024 = vpop.f32.mrb[0].mxu0
    %v4025 = vadd.f32 %v3868, %v4024
    %4026 = vdwg.mxu0
    %v4027 = vadd.f32 %v3785, %v3786
    %v4028 = vrot.slane %v4027, 4
    %v4029 = vadd.f32 %v4027, %v4028
    %v4030 = vrot.slane %v4029, 2
    %v4031 = vadd.f32 %v4029, %v4030
    %v4032 = vrot.slane %v4031, 1
    %v4033 = vadd.f32 %v4031, %v4032
    %v4034 = vmax.f32 %v4033, 0.0
    %v4035 = vld [vmem:[#allocation5 + $0x50] sm:$0xff]
    %v4036 = vld [vmem:[#allocation5 + $0xb8] sm:$0xff]
    %v4037 = vld [vmem:[#allocation5 + $0x120] sm:$0xff]
    %v4038 = vld [vmem:[#allocation5 + $0x188] sm:$0xff]
    %v4039 = vld [vmem:[#allocation5 + $0x1f0] sm:$0xff]
    %v4040 = vld [vmem:[#allocation5 + $0x258] sm:$0xff]
    %v4041 = vld [vmem:[#allocation5 + $0x2c0] sm:$0xff]
    %v4042 = vld [vmem:[#allocation5 + $0x328] sm:$0xff]
    %v4043 = vld [vmem:[#allocation5 + $0x390] sm:$0xff]
    %v4044 = vld [vmem:[#allocation5 + $0x3f8] sm:$0xff]
    %v4045 = vld [vmem:[#allocation5 + $0x460] sm:$0xff]
    %v4046 = vld [vmem:[#allocation5 + $0x4c8] sm:$0xff]
    %v4047 = vld [vmem:[#allocation5 + $0x530] sm:$0xff]
    %v4048 = vld [vmem:[#allocation5 + $0x598] sm:$0xff]
    %v4049 = vld [vmem:[#allocation5 + $0x600] sm:$0xff]
    %v4050 = vld [vmem:[#allocation5 + $0x668] sm:$0xff]
    %4051 = vmatprep.subr.mxu0 0.0
    %4052 = vmatpush1.msra.mxu0 %v4035
    %4053 = vmatprep.subr.mxu0 0.0
    %4054 = vmatpush1.msra.mxu0 %v4036
    %4055 = vmatprep.subr.mxu0 0.0
    %4056 = vmatpush1.msra.mxu0 %v4037
    %4057 = vmatprep.subr.mxu0 0.0
    %4058 = vmatpush1.msra.mxu0 %v4038
    %4059 = vmatprep.subr.mxu0 0.0
    %4060 = vmatpush1.msra.mxu0 %v4039
    %4061 = vmatprep.subr.mxu0 0.0
    %4062 = vmatpush1.msra.mxu0 %v4040
    %4063 = vmatprep.subr.mxu0 0.0
    %4064 = vmatpush1.msra.mxu0 %v4041
    %4065 = vmatprep.subr.mxu0 0.0
    %4066 = vmatpush1.msra.mxu0 %v4042
    %4067 = vmatprep.subr.mxu0 0.0
    %4068 = vmatpush1.msra.mxu0 %v4043
    %4069 = vmatprep.subr.mxu0 0.0
    %4070 = vmatpush1.msra.mxu0 %v4044
    %4071 = vmatprep.subr.mxu0 0.0
    %4072 = vmatpush1.msra.mxu0 %v4045
    %4073 = vmatprep.subr.mxu0 0.0
    %4074 = vmatpush1.msra.mxu0 %v4046
    %4075 = vmatprep.subr.mxu0 0.0
    %4076 = vmatpush1.msra.mxu0 %v4047
    %4077 = vmatprep.subr.mxu0 0.0
    %4078 = vmatpush1.msra.mxu0 %v4048
    %4079 = vmatprep.subr.mxu0 0.0
    %4080 = vmatpush1.msra.mxu0 %v4049
    %4081 = vmatprep.subr.mxu0 0.0
    %4082 = vmatpush1.msra.mxu0 %v4050
    %4083 = vmatprep.subr.mxu0 0.0
    %4084 = vmatpush1.msra.mxu0 0.0
    %4085 = vmatprep.subr.mxu0 0.0
    %4086 = vmatpush1.msra.mxu0 0.0
    %4087 = vmatprep.subr.mxu0 0.0
    %4088 = vmatpush1.msra.mxu0 0.0
    %4089 = vmatprep.subr.mxu0 0.0
    %4090 = vmatpush1.msra.mxu0 0.0
    %4091 = vmatprep.subr.mxu0 0.0
    %4092 = vmatpush1.msra.mxu0 0.0
    %4093 = vmatprep.subr.mxu0 0.0
    %4094 = vmatpush1.msra.mxu0 0.0
    %4095 = vmatprep.subr.mxu0 0.0
    %4096 = vmatpush1.msra.mxu0 0.0
    %4097 = vmatprep.subr.mxu0 0.0
    %4098 = vmatpush1.msra.mxu0 0.0
    %4099 = vmatprep.subr.mxu0 0.0
    %4100 = vmatpush1.msra.mxu0 0.0
    %4101 = vmatprep.subr.mxu0 0.0
    %4102 = vmatpush1.msra.mxu0 0.0
    %4103 = vmatprep.subr.mxu0 0.0
    %4104 = vmatpush1.msra.mxu0 0.0
    %4105 = vmatprep.subr.mxu0 0.0
    %4106 = vmatpush1.msra.mxu0 0.0
    %4107 = vmatprep.subr.mxu0 0.0
    %4108 = vmatpush1.msra.mxu0 0.0
    %4109 = vmatprep.subr.mxu0 0.0
    %4110 = vmatpush1.msra.mxu0 0.0
    %4111 = vmatprep.subr.mxu0 0.0
    %4112 = vmatpush1.msra.mxu0 0.0
    %4113 = vmatprep.subr.mxu0 0.0
    %4114 = vmatpush1.msra.mxu0 0.0
    %4115 = vmatprep.mubr.f32.mxu0 0.0
    %4116 = vmatmul.mubr.f32.gmra.mrb[0].mxu0 %v4034
    %v4117 = vpop.f32.mrb[0].mxu0
    %v4118 = vadd.f32 0.0, %v4117
    %v4119 = vpop.f32.mrb[0].mxu0
    %4120 = vdwg.mxu0
    %v4121 = vlaneseq
    %v4122 = vshrl.u32 %v4121, 7
    %v4123 = vsub.s32 0, %v4122
    %v4124 = vrot.slane %v4118, %v4123
    %v4125 = vadd.f32 %v4124, %v3940
    %v4126 = vadd.f32 %v4124, %v3946
    %vm4127 = vcmp.gt.f32.partialorder %v4125, 0.0
    %vm4128 = vcmp.gt.f32.partialorder %v4126, 0.0
    %v4129 = vmul.f32 %v4125, 0.01
    %v4130 = vmul.f32 %v4126, 0.01
    %v4131 = vsel %vm4127, %v4125, %v4129
    %v4132 = vsel %vm4128, %v4126, %v4130
    %v4133 = vmax.f32 %v4131, %v4132
    %v4134 = vrot.slane %v4133, 4
    %v4135 = vmax.f32 %v4133, %v4134
    %v4136 = vrot.slane %v4135, 2
    %v4137 = vmax.f32 %v4135, %v4136
    %v4138 = vrot.slane %v4137, 1
    %v4139 = vmax.f32 %v4137, %v4138
    %v4140 = vsub.f32 %v4131, %v4139
    %v4141 = vsub.f32 %v4132, %v4139
    %v4142 = vmul.f32 %v4140, 1.442695
    %v4143 = vpow.pop %v4142
    %v4144 = vmul.f32 %v4141, 1.442695
    %v4145 = vpow.pop %v4144
    %v4146 = vadd.f32 %v4143, %v4145
    %v4147 = vrot.slane %v4146, 4
    %v4148 = vadd.f32 %v4146, %v4147
    %v4149 = vrot.slane %v4148, 2
    %v4150 = vadd.f32 %v4148, %v4149
    %v4151 = vrot.slane %v4150, 1
    %v4152 = vadd.f32 %v4150, %v4151
    %v4153 = vmax.f32 %v4152, 1e-09
    %v4154 = vrcp.pop %v4153
    %v4155 = vmul.f32 %v4143, %v4154
    %v4156 = vmul.f32 %v4145, %v4154
    %v4157 = vmul.f32 %v4155, %v3942
    %v4158 = vmul.f32 %v4156, %v3948
    %v4159 = vadd.f32 %v4157, %v4158
    %v4160 = vrot.slane %v4159, 4
    %v4161 = vadd.f32 %v4159, %v4160
    %v4162 = vrot.slane %v4161, 2
    %v4163 = vadd.f32 %v4161, %v4162
    %v4164 = vrot.slane %v4163, 1
    %v4165 = vadd.f32 %v4163, %v4164
    %vm4166 = vcmp.gt.f32.partialorder %v4165, 0.0
    %v4167 = vmin.f32 %v4165, 0.0
    %v4168 = vmul.f32 %v4167, 1.442695
    %v4169 = vpow.pop %v4168
    %v4170 = vsub.f32 %v4169, 1.0
    %v4171 = vsel %vm4166, %v4165, %v4170
    %v4172 = vld [vmem:[#allocation7 + $0x40] sm:$0xff]
    %v4173 = vld [vmem:[#allocation7 + $0x48] sm:$0xff]
    %v4174 = vld [vmem:[#allocation7 + $0x50] sm:$0xff]
    %v4175 = vld [vmem:[#allocation7 + $0x58] sm:$0xff]
    %v4176 = vld [vmem:[#allocation7 + $0xc0] sm:$0xff]
    %v4177 = vld [vmem:[#allocation7 + $0xc8] sm:$0xff]
    %v4178 = vld [vmem:[#allocation7 + $0xd0] sm:$0xff]
    %v4179 = vld [vmem:[#allocation7 + $0xd8] sm:$0xff]
    %v4180 = vld [vmem:[#allocation7 + $0x140] sm:$0xff]
    %v4181 = vld [vmem:[#allocation7 + $0x148] sm:$0xff]
    %v4182 = vld [vmem:[#allocation7 + $0x150] sm:$0xff]
    %v4183 = vld [vmem:[#allocation7 + $0x158] sm:$0xff]
    %v4184 = vld [vmem:[#allocation7 + $0x1c0] sm:$0xff]
    %v4185 = vld [vmem:[#allocation7 + $0x1c8] sm:$0xff]
    %v4186 = vld [vmem:[#allocation7 + $0x1d0] sm:$0xff]
    %v4187 = vld [vmem:[#allocation7 + $0x1d8] sm:$0xff]
    %v4188 = vld [vmem:[#allocation7 + $0x240] sm:$0xff]
    %v4189 = vld [vmem:[#allocation7 + $0x248] sm:$0xff]
    %v4190 = vld [vmem:[#allocation7 + $0x250] sm:$0xff]
    %v4191 = vld [vmem:[#allocation7 + $0x258] sm:$0xff]
    %v4192 = vld [vmem:[#allocation7 + $0x2c0] sm:$0xff]
    %v4193 = vld [vmem:[#allocation7 + $0x2c8] sm:$0xff]
    %v4194 = vld [vmem:[#allocation7 + $0x2d0] sm:$0xff]
    %v4195 = vld [vmem:[#allocation7 + $0x2d8] sm:$0xff]
    %v4196 = vld [vmem:[#allocation7 + $0x340] sm:$0xff]
    %v4197 = vld [vmem:[#allocation7 + $0x348] sm:$0xff]
    %v4198 = vld [vmem:[#allocation7 + $0x350] sm:$0xff]
    %v4199 = vld [vmem:[#allocation7 + $0x358] sm:$0xff]
    %v4200 = vld [vmem:[#allocation7 + $0x3c0] sm:$0xff]
    %v4201 = vld [vmem:[#allocation7 + $0x3c8] sm:$0xff]
    %v4202 = vld [vmem:[#allocation7 + $0x3d0] sm:$0xff]
    %v4203 = vld [vmem:[#allocation7 + $0x3d8] sm:$0xff]
    %v4204 = vld [vmem:[#allocation7 + $0x440] sm:$0xff]
    %v4205 = vld [vmem:[#allocation7 + $0x448] sm:$0xff]
    %v4206 = vld [vmem:[#allocation7 + $0x450] sm:$0xff]
    %v4207 = vld [vmem:[#allocation7 + $0x458] sm:$0xff]
    %v4208 = vld [vmem:[#allocation7 + $0x4c0] sm:$0xff]
    %v4209 = vld [vmem:[#allocation7 + $0x4c8] sm:$0xff]
    %v4210 = vld [vmem:[#allocation7 + $0x4d0] sm:$0xff]
    %v4211 = vld [vmem:[#allocation7 + $0x4d8] sm:$0xff]
    %v4212 = vld [vmem:[#allocation7 + $0x540] sm:$0xff]
    %v4213 = vld [vmem:[#allocation7 + $0x548] sm:$0xff]
    %v4214 = vld [vmem:[#allocation7 + $0x550] sm:$0xff]
    %v4215 = vld [vmem:[#allocation7 + $0x558] sm:$0xff]
    %v4216 = vld [vmem:[#allocation7 + $0x5c0] sm:$0xff]
    %v4217 = vld [vmem:[#allocation7 + $0x5c8] sm:$0xff]
    %v4218 = vld [vmem:[#allocation7 + $0x5d0] sm:$0xff]
    %v4219 = vld [vmem:[#allocation7 + $0x5d8] sm:$0xff]
    %v4220 = vld [vmem:[#allocation7 + $0x640] sm:$0xff]
    %v4221 = vld [vmem:[#allocation7 + $0x648] sm:$0xff]
    %v4222 = vld [vmem:[#allocation7 + $0x650] sm:$0xff]
    %v4223 = vld [vmem:[#allocation7 + $0x658] sm:$0xff]
    %v4224 = vld [vmem:[#allocation7 + $0x6c0] sm:$0xff]
    %v4225 = vld [vmem:[#allocation7 + $0x6c8] sm:$0xff]
    %v4226 = vld [vmem:[#allocation7 + $0x6d0] sm:$0xff]
    %v4227 = vld [vmem:[#allocation7 + $0x6d8] sm:$0xff]
    %v4228 = vld [vmem:[#allocation7 + $0x740] sm:$0xff]
    %v4229 = vld [vmem:[#allocation7 + $0x748] sm:$0xff]
    %v4230 = vld [vmem:[#allocation7 + $0x750] sm:$0xff]
    %v4231 = vld [vmem:[#allocation7 + $0x758] sm:$0xff]
    %v4232 = vld [vmem:[#allocation7 + $0x7c0] sm:$0xff]
    %v4233 = vld [vmem:[#allocation7 + $0x7c8] sm:$0xff]
    %v4234 = vld [vmem:[#allocation7 + $0x7d0] sm:$0xff]
    %v4235 = vld [vmem:[#allocation7 + $0x7d8] sm:$0xff]
    %v4236 = vld [vmem:[#allocation7 + $0x840] sm:$0xff]
    %v4237 = vld [vmem:[#allocation7 + $0x848] sm:$0xff]
    %v4238 = vld [vmem:[#allocation7 + $0x850] sm:$0xff]
    %v4239 = vld [vmem:[#allocation7 + $0x858] sm:$0xff]
    %v4240 = vld [vmem:[#allocation7 + $0x8c0] sm:$0xff]
    %v4241 = vld [vmem:[#allocation7 + $0x8c8] sm:$0xff]
    %v4242 = vld [vmem:[#allocation7 + $0x8d0] sm:$0xff]
    %v4243 = vld [vmem:[#allocation7 + $0x8d8] sm:$0xff]
    %v4244 = vld [vmem:[#allocation7 + $0x940] sm:$0xff]
    %v4245 = vld [vmem:[#allocation7 + $0x948] sm:$0xff]
    %v4246 = vld [vmem:[#allocation7 + $0x950] sm:$0xff]
    %v4247 = vld [vmem:[#allocation7 + $0x958] sm:$0xff]
    %v4248 = vld [vmem:[#allocation7 + $0x9c0] sm:$0xff]
    %v4249 = vld [vmem:[#allocation7 + $0x9c8] sm:$0xff]
    %v4250 = vld [vmem:[#allocation7 + $0x9d0] sm:$0xff]
    %v4251 = vld [vmem:[#allocation7 + $0x9d8] sm:$0xff]
    %v4252 = vld [vmem:[#allocation7 + $0xa40] sm:$0xff]
    %v4253 = vld [vmem:[#allocation7 + $0xa48] sm:$0xff]
    %v4254 = vld [vmem:[#allocation7 + $0xa50] sm:$0xff]
    %v4255 = vld [vmem:[#allocation7 + $0xa58] sm:$0xff]
    %v4256 = vld [vmem:[#allocation7 + $0xac0] sm:$0xff]
    %v4257 = vld [vmem:[#allocation7 + $0xac8] sm:$0xff]
    %v4258 = vld [vmem:[#allocation7 + $0xad0] sm:$0xff]
    %v4259 = vld [vmem:[#allocation7 + $0xad8] sm:$0xff]
    %v4260 = vld [vmem:[#allocation7 + $0xb40] sm:$0xff]
    %v4261 = vld [vmem:[#allocation7 + $0xb48] sm:$0xff]
    %v4262 = vld [vmem:[#allocation7 + $0xb50] sm:$0xff]
    %v4263 = vld [vmem:[#allocation7 + $0xb58] sm:$0xff]
    %v4264 = vld [vmem:[#allocation7 + $0xbc0] sm:$0xff]
    %v4265 = vld [vmem:[#allocation7 + $0xbc8] sm:$0xff]
    %v4266 = vld [vmem:[#allocation7 + $0xbd0] sm:$0xff]
    %v4267 = vld [vmem:[#allocation7 + $0xbd8] sm:$0xff]
    %v4268 = vld [vmem:[#allocation7 + $0xc40] sm:$0xff]
    %v4269 = vld [vmem:[#allocation7 + $0xc48] sm:$0xff]
    %v4270 = vld [vmem:[#allocation7 + $0xc50] sm:$0xff]
    %v4271 = vld [vmem:[#allocation7 + $0xc58] sm:$0xff]
    %v4272 = vld [vmem:[#allocation7 + $0xcc0] sm:$0xff]
    %v4273 = vld [vmem:[#allocation7 + $0xcc8] sm:$0xff]
    %v4274 = vld [vmem:[#allocation7 + $0xcd0] sm:$0xff]
    %v4275 = vld [vmem:[#allocation7 + $0xcd8] sm:$0xff]
    %v4276 = vld [vmem:[#allocation7 + $0xd40] sm:$0xff]
    %v4277 = vld [vmem:[#allocation7 + $0xd48] sm:$0xff]
    %v4278 = vld [vmem:[#allocation7 + $0xd50] sm:$0xff]
    %v4279 = vld [vmem:[#allocation7 + $0xd58] sm:$0xff]
    %v4280 = vld [vmem:[#allocation7 + $0xdc0] sm:$0xff]
    %v4281 = vld [vmem:[#allocation7 + $0xdc8] sm:$0xff]
    %v4282 = vld [vmem:[#allocation7 + $0xdd0] sm:$0xff]
    %v4283 = vld [vmem:[#allocation7 + $0xdd8] sm:$0xff]
    %v4284 = vld [vmem:[#allocation7 + $0xe40] sm:$0xff]
    %v4285 = vld [vmem:[#allocation7 + $0xe48] sm:$0xff]
    %v4286 = vld [vmem:[#allocation7 + $0xe50] sm:$0xff]
    %v4287 = vld [vmem:[#allocation7 + $0xe58] sm:$0xff]
    %v4288 = vld [vmem:[#allocation7 + $0xec0] sm:$0xff]
    %v4289 = vld [vmem:[#allocation7 + $0xec8] sm:$0xff]
    %v4290 = vld [vmem:[#allocation7 + $0xed0] sm:$0xff]
    %v4291 = vld [vmem:[#allocation7 + $0xed8] sm:$0xff]
    %v4292 = vld [vmem:[#allocation7 + $0xf40] sm:$0xff]
    %v4293 = vld [vmem:[#allocation7 + $0xf48] sm:$0xff]
    %v4294 = vld [vmem:[#allocation7 + $0xf50] sm:$0xff]
    %v4295 = vld [vmem:[#allocation7 + $0xf58] sm:$0xff]
    %v4296 = vld [vmem:[#allocation7 + $0xfc0] sm:$0xff]
    %v4297 = vld [vmem:[#allocation7 + $0xfc8] sm:$0xff]
    %v4298 = vld [vmem:[#allocation7 + $0xfd0] sm:$0xff]
    %v4299 = vld [vmem:[#allocation7 + $0xfd8] sm:$0xff]
    %v4300 = vld [vmem:[#allocation8 + $0x13] sm:$0xf]
    %v4302 = vlaneseq
    %v4303 = vshrl.u32 %v4302, 7
    %v4304 = vsub.s32 0, %v4303
    %v4305 = vrot.slane %v4300, %v4304
    %v4306 = vlaneseq
    %v4307 = vshrl.u32 %v4306, 7
    %v4308 = vsub.s32 1, %v4307
    %v4309 = vrot.slane %v4300, %v4308
    %v4310 = vlaneseq
    %v4311 = vshrl.u32 %v4310, 7
    %v4312 = vsub.s32 2, %v4311
    %v4313 = vrot.slane %v4300, %v4312
    %v4314 = vlaneseq
    %v4315 = vshrl.u32 %v4314, 7
    %v4316 = vsub.s32 3, %v4315
    %v4317 = vrot.slane %v4300, %v4316
    %4322 = vmatprep.subr.mxu0 %v4173
    %4323 = vmatpush1.msra.mxu0 %v4172
    %4324 = vmatprep.subr.mxu0 %v4177
    %4325 = vmatpush1.msra.mxu0 %v4176
    %4326 = vmatprep.subr.mxu0 %v4181
    %4327 = vmatpush1.msra.mxu0 %v4180
    %4328 = vmatprep.subr.mxu0 %v4185
    %4329 = vmatpush1.msra.mxu0 %v4184
    %4330 = vmatprep.subr.mxu0 %v4189
    %4331 = vmatpush1.msra.mxu0 %v4188
    %4332 = vmatprep.subr.mxu0 %v4193
    %4333 = vmatpush1.msra.mxu0 %v4192
    %4334 = vmatprep.subr.mxu0 %v4197
    %4335 = vmatpush1.msra.mxu0 %v4196
    %4336 = vmatprep.subr.mxu0 %v4201
    %4337 = vmatpush1.msra.mxu0 %v4200
    %4338 = vmatprep.subr.mxu0 %v4205
    %4339 = vmatpush1.msra.mxu0 %v4204
    %4340 = vmatprep.subr.mxu0 %v4209
    %4341 = vmatpush1.msra.mxu0 %v4208
    %4342 = vmatprep.subr.mxu0 %v4213
    %4343 = vmatpush1.msra.mxu0 %v4212
    %4344 = vmatprep.subr.mxu0 %v4217
    %4345 = vmatpush1.msra.mxu0 %v4216
    %4346 = vmatprep.subr.mxu0 %v4221
    %4347 = vmatpush1.msra.mxu0 %v4220
    %4348 = vmatprep.subr.mxu0 %v4225
    %4349 = vmatpush1.msra.mxu0 %v4224
    %4350 = vmatprep.subr.mxu0 %v4229
    %4351 = vmatpush1.msra.mxu0 %v4228
    %4352 = vmatprep.subr.mxu0 %v4233
    %4353 = vmatpush1.msra.mxu0 %v4232
    %4354 = vmatprep.subr.mxu0 %v4237
    %4355 = vmatpush1.msra.mxu0 %v4236
    %4356 = vmatprep.subr.mxu0 %v4241
    %4357 = vmatpush1.msra.mxu0 %v4240
    %4358 = vmatprep.subr.mxu0 %v4245
    %4359 = vmatpush1.msra.mxu0 %v4244
    %4360 = vmatprep.subr.mxu0 %v4249
    %4361 = vmatpush1.msra.mxu0 %v4248
    %4362 = vmatprep.subr.mxu0 %v4253
    %4363 = vmatpush1.msra.mxu0 %v4252
    %4364 = vmatprep.subr.mxu0 %v4257
    %4365 = vmatpush1.msra.mxu0 %v4256
    %4366 = vmatprep.subr.mxu0 %v4261
    %4367 = vmatpush1.msra.mxu0 %v4260
    %4368 = vmatprep.subr.mxu0 %v4265
    %4369 = vmatpush1.msra.mxu0 %v4264
    %4370 = vmatprep.subr.mxu0 %v4269
    %4371 = vmatpush1.msra.mxu0 %v4268
    %4372 = vmatprep.subr.mxu0 %v4273
    %4373 = vmatpush1.msra.mxu0 %v4272
    %4374 = vmatprep.subr.mxu0 %v4277
    %4375 = vmatpush1.msra.mxu0 %v4276
    %4376 = vmatprep.subr.mxu0 %v4281
    %4377 = vmatpush1.msra.mxu0 %v4280
    %4378 = vmatprep.subr.mxu0 %v4285
    %4379 = vmatpush1.msra.mxu0 %v4284
    %4380 = vmatprep.subr.mxu0 %v4289
    %4381 = vmatpush1.msra.mxu0 %v4288
    %4382 = vmatprep.subr.mxu0 %v4293
    %4383 = vmatpush1.msra.mxu0 %v4292
    %4384 = vmatprep.subr.mxu0 %v4297
    %4385 = vmatpush1.msra.mxu0 %v4296
    %4386 = vmatprep.mubr.f32.mxu0 %v4033
    %4387 = vmatmul.mubr.f32.gmra.mrb[0].mxu0 %v4171
    %v4388 = vpop.f32.mrb[0].mxu0
    %v4389 = vadd.f32 %v4305, %v4388
    %v4390 = vpop.f32.mrb[0].mxu0
    %v4391 = vadd.f32 %v4309, %v4390
    %4392 = vdwg.mxu0
    %4393 = vmatprep.subr.mxu0 %v4175
    %4394 = vmatpush1.msra.mxu0 %v4174
    %4395 = vmatprep.subr.mxu0 %v4179
    %4396 = vmatpush1.msra.mxu0 %v4178
    %4397 = vmatprep.subr.mxu0 %v4183
    %4398 = vmatpush1.msra.mxu0 %v4182
    %4399 = vmatprep.subr.mxu0 %v4187
    %4400 = vmatpush1.msra.mxu0 %v4186
    %4401 = vmatprep.subr.mxu0 %v4191
    %4402 = vmatpush1.msra.mxu0 %v4190
    %4403 = vmatprep.subr.mxu0 %v4195
    %4404 = vmatpush1.msra.mxu0 %v4194
    %4405 = vmatprep.subr.mxu0 %v4199
    %4406 = vmatpush1.msra.mxu0 %v4198
    %4407 = vmatprep.subr.mxu0 %v4203
    %4408 = vmatpush1.msra.mxu0 %v4202
    %4409 = vmatprep.subr.mxu0 %v4207
    %4410 = vmatpush1.msra.mxu0 %v4206
    %4411 = vmatprep.subr.mxu0 %v4211
    %4412 = vmatpush1.msra.mxu0 %v4210
    %4413 = vmatprep.subr.mxu0 %v4215
    %4414 = vmatpush1.msra.mxu0 %v4214
    %4415 = vmatprep.subr.mxu0 %v4219
    %4416 = vmatpush1.msra.mxu0 %v4218
    %4417 = vmatprep.subr.mxu0 %v4223
    %4418 = vmatpush1.msra.mxu0 %v4222
    %4419 = vmatprep.subr.mxu0 %v4227
    %4420 = vmatpush1.msra.mxu0 %v4226
    %4421 = vmatprep.subr.mxu0 %v4231
    %4422 = vmatpush1.msra.mxu0 %v4230
    %4423 = vmatprep.subr.mxu0 %v4235
    %4424 = vmatpush1.msra.mxu0 %v4234
    %4425 = vmatprep.subr.mxu0 %v4239
    %4426 = vmatpush1.msra.mxu0 %v4238
    %4427 = vmatprep.subr.mxu0 %v4243
    %4428 = vmatpush1.msra.mxu0 %v4242
    %4429 = vmatprep.subr.mxu0 %v4247
    %4430 = vmatpush1.msra.mxu0 %v4246
    %4431 = vmatprep.subr.mxu0 %v4251
    %4432 = vmatpush1.msra.mxu0 %v4250
    %4433 = vmatprep.subr.mxu0 %v4255
    %4434 = vmatpush1.msra.mxu0 %v4254
    %4435 = vmatprep.subr.mxu0 %v4259
    %4436 = vmatpush1.msra.mxu0 %v4258
    %4437 = vmatprep.subr.mxu0 %v4263
    %4438 = vmatpush1.msra.mxu0 %v4262
    %4439 = vmatprep.subr.mxu0 %v4267
    %4440 = vmatpush1.msra.mxu0 %v4266
    %4441 = vmatprep.subr.mxu0 %v4271
    %4442 = vmatpush1.msra.mxu0 %v4270
    %4443 = vmatprep.subr.mxu0 %v4275
    %4444 = vmatpush1.msra.mxu0 %v4274
    %4445 = vmatprep.subr.mxu0 %v4279
    %4446 = vmatpush1.msra.mxu0 %v4278
    %4447 = vmatprep.subr.mxu0 %v4283
    %4448 = vmatpush1.msra.mxu0 %v4282
    %4449 = vmatprep.subr.mxu0 %v4287
    %4450 = vmatpush1.msra.mxu0 %v4286
    %4451 = vmatprep.subr.mxu0 %v4291
    %4452 = vmatpush1.msra.mxu0 %v4290
    %4453 = vmatprep.subr.mxu0 %v4295
    %4454 = vmatpush1.msra.mxu0 %v4294
    %4455 = vmatprep.subr.mxu0 %v4299
    %4456 = vmatpush1.msra.mxu0 %v4298
    %4457 = vmatprep.mubr.f32.mxu0 %v4033
    %4458 = vmatmul.mubr.f32.gmra.mrb[0].mxu0 %v4171
    %v4459 = vpop.f32.mrb[0].mxu0
    %v4460 = vadd.f32 %v4313, %v4459
    %v4461 = vpop.f32.mrb[0].mxu0
    %v4462 = vadd.f32 %v4317, %v4461
    %4463 = vdwg.mxu0
    %v4464 = vmul.f32 %v4389, 0.5
    %v4465 = vtanh.pop %v4464
    %v4466 = vadd.f32 %v4465, 1.0
    %v4467 = vmul.f32 %v4466, 0.5
    %v4468 = vmul.f32 %v4391, 0.5
    %v4469 = vtanh.pop %v4468
    %v4470 = vadd.f32 %v4469, 1.0
    %v4471 = vmul.f32 %v4470, 0.5
    %v4472 = vmul.f32 %v4467, %v4462
    %v4473 = vadd.f32 %v4460, %v4472
    %v4474 = vtanh.pop %v4473
    %v4475 = vsub.f32 1.0, %v4471
    %v4476 = vmul.f32 %v4475, %v4474
    %v4477 = vmul.f32 %v4471, %v4033
    %v4478 = vadd.f32 %v4476, %v4477
    %v4479 = vmax.f32 %v4478, 0.0
    %v4480 = vmax.f32 %v4479, 0.0
    %v4481 = vld [vmem:[#allocation5 + $0x58] sm:$0xff]
    %v4482 = vld [vmem:[#allocation5 + $0xc0] sm:$0xff]
    %v4483 = vld [vmem:[#allocation5 + $0x128] sm:$0xff]
    %v4484 = vld [vmem:[#allocation5 + $0x190] sm:$0xff]
    %v4485 = vld [vmem:[#allocation5 + $0x1f8] sm:$0xff]
    %v4486 = vld [vmem:[#allocation5 + $0x260] sm:$0xff]
    %v4487 = vld [vmem:[#allocation5 + $0x2c8] sm:$0xff]
    %v4488 = vld [vmem:[#allocation5 + $0x330] sm:$0xff]
    %v4489 = vld [vmem:[#allocation5 + $0x398] sm:$0xff]
    %v4490 = vld [vmem:[#allocation5 + $0x400] sm:$0xff]
    %v4491 = vld [vmem:[#allocation5 + $0x468] sm:$0xff]
    %v4492 = vld [vmem:[#allocation5 + $0x4d0] sm:$0xff]
    %v4493 = vld [vmem:[#allocation5 + $0x538] sm:$0xff]
    %v4494 = vld [vmem:[#allocation5 + $0x5a0] sm:$0xff]
    %v4495 = vld [vmem:[#allocation5 + $0x608] sm:$0xff]
    %v4496 = vld [vmem:[#allocation5 + $0x670] sm:$0xff]
    %4497 = vmatprep.subr.mxu0 0.0
    %4498 = vmatpush1.msra.mxu0 %v4481
    %4499 = vmatprep.subr.mxu0 0.0
    %4500 = vmatpush1.msra.mxu0 %v4482
    %4501 = vmatprep.subr.mxu0 0.0
    %4502 = vmatpush1.msra.mxu0 %v4483
    %4503 = vmatprep.subr.mxu0 0.0
    %4504 = vmatpush1.msra.mxu0 %v4484
    %4505 = vmatprep.subr.mxu0 0.0
    %4506 = vmatpush1.msra.mxu0 %v4485
    %4507 = vmatprep.subr.mxu0 0.0
    %4508 = vmatpush1.msra.mxu0 %v4486
    %4509 = vmatprep.subr.mxu0 0.0
    %4510 = vmatpush1.msra.mxu0 %v4487
    %4511 = vmatprep.subr.mxu0 0.0
    %4512 = vmatpush1.msra.mxu0 %v4488
    %4513 = vmatprep.subr.mxu0 0.0
    %4514 = vmatpush1.msra.mxu0 %v4489
    %4515 = vmatprep.subr.mxu0 0.0
    %4516 = vmatpush1.msra.mxu0 %v4490
    %4517 = vmatprep.subr.mxu0 0.0
    %4518 = vmatpush1.msra.mxu0 %v4491
    %4519 = vmatprep.subr.mxu0 0.0
    %4520 = vmatpush1.msra.mxu0 %v4492
    %4521 = vmatprep.subr.mxu0 0.0
    %4522 = vmatpush1.msra.mxu0 %v4493
    %4523 = vmatprep.subr.mxu0 0.0
    %4524 = vmatpush1.msra.mxu0 %v4494
    %4525 = vmatprep.subr.mxu0 0.0
    %4526 = vmatpush1.msra.mxu0 %v4495
    %4527 = vmatprep.subr.mxu0 0.0
    %4528 = vmatpush1.msra.mxu0 %v4496
    %4529 = vmatprep.subr.mxu0 0.0
    %4530 = vmatpush1.msra.mxu0 0.0
    %4531 = vmatprep.subr.mxu0 0.0
    %4532 = vmatpush1.msra.mxu0 0.0
    %4533 = vmatprep.subr.mxu0 0.0
    %4534 = vmatpush1.msra.mxu0 0.0
    %4535 = vmatprep.subr.mxu0 0.0
    %4536 = vmatpush1.msra.mxu0 0.0
    %4537 = vmatprep.subr.mxu0 0.0
    %4538 = vmatpush1.msra.mxu0 0.0
    %4539 = vmatprep.subr.mxu0 0.0
    %4540 = vmatpush1.msra.mxu0 0.0
    %4541 = vmatprep.subr.mxu0 0.0
    %4542 = vmatpush1.msra.mxu0 0.0
    %4543 = vmatprep.subr.mxu0 0.0
    %4544 = vmatpush1.msra.mxu0 0.0
    %4545 = vmatprep.subr.mxu0 0.0
    %4546 = vmatpush1.msra.mxu0 0.0
    %4547 = vmatprep.subr.mxu0 0.0
    %4548 = vmatpush1.msra.mxu0 0.0
    %4549 = vmatprep.subr.mxu0 0.0
    %4550 = vmatpush1.msra.mxu0 0.0
    %4551 = vmatprep.subr.mxu0 0.0
    %4552 = vmatpush1.msra.mxu0 0.0
    %4553 = vmatprep.subr.mxu0 0.0
    %4554 = vmatpush1.msra.mxu0 0.0
    %4555 = vmatprep.subr.mxu0 0.0
    %4556 = vmatpush1.msra.mxu0 0.0
    %4557 = vmatprep.subr.mxu0 0.0
    %4558 = vmatpush1.msra.mxu0 0.0
    %4559 = vmatprep.subr.mxu0 0.0
    %4560 = vmatpush1.msra.mxu0 0.0
    %4561 = vmatprep.mubr.f32.mxu0 0.0
    %4562 = vmatmul.mubr.f32.gmra.mrb[0].mxu0 %v4480
    %v4563 = vpop.f32.mrb[0].mxu0
    %v4564 = vadd.f32 0.0, %v4563
    %v4565 = vpop.f32.mrb[0].mxu0
    %4566 = vdwg.mxu0
    %v4567 = vlaneseq
    %v4568 = vshrl.u32 %v4567, 7
    %v4569 = vsub.s32 0, %v4568
    %v4570 = vrot.slane %v4564, %v4569
    %v4571 = vadd.f32 %v4570, %v4017
    %v4572 = vadd.f32 %v4570, %v4023
    %vm4573 = vcmp.gt.f32.partialorder %v4571, 0.0
    %vm4574 = vcmp.gt.f32.partialorder %v4572, 0.0
    %v4575 = vmul.f32 %v4571, 0.01
    %v4576 = vmul.f32 %v4572, 0.01
    %v4577 = vsel %vm4573, %v4571, %v4575
    %v4578 = vsel %vm4574, %v4572, %v4576
    %v4579 = vmax.f32 %v4577, %v4578
    %v4580 = vrot.slane %v4579, 4
    %v4581 = vmax.f32 %v4579, %v4580
    %v4582 = vrot.slane %v4581, 2
    %v4583 = vmax.f32 %v4581, %v4582
    %v4584 = vrot.slane %v4583, 1
    %v4585 = vmax.f32 %v4583, %v4584
    %v4586 = vsub.f32 %v4577, %v4585
    %v4587 = vsub.f32 %v4578, %v4585
    %v4588 = vmul.f32 %v4586, 1.442695
    %v4589 = vpow.pop %v4588
    %v4590 = vmul.f32 %v4587, 1.442695
    %v4591 = vpow.pop %v4590
    %v4592 = vadd.f32 %v4589, %v4591
    %v4593 = vrot.slane %v4592, 4
    %v4594 = vadd.f32 %v4592, %v4593
    %v4595 = vrot.slane %v4594, 2
    %v4596 = vadd.f32 %v4594, %v4595
    %v4597 = vrot.slane %v4596, 1
    %v4598 = vadd.f32 %v4596, %v4597
    %v4599 = vmax.f32 %v4598, 1e-09
    %v4600 = vrcp.pop %v4599
    %v4601 = vmul.f32 %v4589, %v4600
    %v4602 = vmul.f32 %v4591, %v4600
    %v4603 = vmul.f32 %v4601, %v4019
    %v4604 = vmul.f32 %v4602, %v4025
    %v4605 = vadd.f32 %v4603, %v4604
    %v4606 = vrot.slane %v4605, 4
    %v4607 = vadd.f32 %v4605, %v4606
    %v4608 = vrot.slane %v4607, 2
    %v4609 = vadd.f32 %v4607, %v4608
    %v4610 = vrot.slane %v4609, 1
    %v4611 = vadd.f32 %v4609, %v4610
    %vm4612 = vcmp.gt.f32.partialorder %v4611, 0.0
    %v4613 = vmin.f32 %v4611, 0.0
    %v4614 = vmul.f32 %v4613, 1.442695
    %v4615 = vpow.pop %v4614
    %v4616 = vsub.f32 %v4615, 1.0
    %v4617 = vsel %vm4612, %v4611, %v4616
    %v4618 = vld [vmem:[#allocation7 + $0x60] sm:$0xff]
    %v4619 = vld [vmem:[#allocation7 + $0x68] sm:$0xff]
    %v4620 = vld [vmem:[#allocation7 + $0x70] sm:$0xff]
    %v4621 = vld [vmem:[#allocation7 + $0x78] sm:$0xff]
    %v4622 = vld [vmem:[#allocation7 + $0xe0] sm:$0xff]
    %v4623 = vld [vmem:[#allocation7 + $0xe8] sm:$0xff]
    %v4624 = vld [vmem:[#allocation7 + $0xf0] sm:$0xff]
    %v4625 = vld [vmem:[#allocation7 + $0xf8] sm:$0xff]
    %v4626 = vld [vmem:[#allocation7 + $0x160] sm:$0xff]
    %v4627 = vld [vmem:[#allocation7 + $0x168] sm:$0xff]
    %v4628 = vld [vmem:[#allocation7 + $0x170] sm:$0xff]
    %v4629 = vld [vmem:[#allocation7 + $0x178] sm:$0xff]
    %v4630 = vld [vmem:[#allocation7 + $0x1e0] sm:$0xff]
    %v4631 = vld [vmem:[#allocation7 + $0x1e8] sm:$0xff]
    %v4632 = vld [vmem:[#allocation7 + $0x1f0] sm:$0xff]
    %v4633 = vld [vmem:[#allocation7 + $0x1f8] sm:$0xff]
    %v4634 = vld [vmem:[#allocation7 + $0x260] sm:$0xff]
    %v4635 = vld [vmem:[#allocation7 + $0x268] sm:$0xff]
    %v4636 = vld [vmem:[#allocation7 + $0x270] sm:$0xff]
    %v4637 = vld [vmem:[#allocation7 + $0x278] sm:$0xff]
    %v4638 = vld [vmem:[#allocation7 + $0x2e0] sm:$0xff]
    %v4639 = vld [vmem:[#allocation7 + $0x2e8] sm:$0xff]
    %v4640 = vld [vmem:[#allocation7 + $0x2f0] sm:$0xff]
    %v4641 = vld [vmem:[#allocation7 + $0x2f8] sm:$0xff]
    %v4642 = vld [vmem:[#allocation7 + $0x360] sm:$0xff]
    %v4643 = vld [vmem:[#allocation7 + $0x368] sm:$0xff]
    %v4644 = vld [vmem:[#allocation7 + $0x370] sm:$0xff]
    %v4645 = vld [vmem:[#allocation7 + $0x378] sm:$0xff]
    %v4646 = vld [vmem:[#allocation7 + $0x3e0] sm:$0xff]
    %v4647 = vld [vmem:[#allocation7 + $0x3e8] sm:$0xff]
    %v4648 = vld [vmem:[#allocation7 + $0x3f0] sm:$0xff]
    %v4649 = vld [vmem:[#allocation7 + $0x3f8] sm:$0xff]
    %v4650 = vld [vmem:[#allocation7 + $0x460] sm:$0xff]
    %v4651 = vld [vmem:[#allocation7 + $0x468] sm:$0xff]
    %v4652 = vld [vmem:[#allocation7 + $0x470] sm:$0xff]
    %v4653 = vld [vmem:[#allocation7 + $0x478] sm:$0xff]
    %v4654 = vld [vmem:[#allocation7 + $0x4e0] sm:$0xff]
    %v4655 = vld [vmem:[#allocation7 + $0x4e8] sm:$0xff]
    %v4656 = vld [vmem:[#allocation7 + $0x4f0] sm:$0xff]
    %v4657 = vld [vmem:[#allocation7 + $0x4f8] sm:$0xff]
    %v4658 = vld [vmem:[#allocation7 + $0x560] sm:$0xff]
    %v4659 = vld [vmem:[#allocation7 + $0x568] sm:$0xff]
    %v4660 = vld [vmem:[#allocation7 + $0x570] sm:$0xff]
    %v4661 = vld [vmem:[#allocation7 + $0x578] sm:$0xff]
    %v4662 = vld [vmem:[#allocation7 + $0x5e0] sm:$0xff]
    %v4663 = vld [vmem:[#allocation7 + $0x5e8] sm:$0xff]
    %v4664 = vld [vmem:[#allocation7 + $0x5f0] sm:$0xff]
    %v4665 = vld [vmem:[#allocation7 + $0x5f8] sm:$0xff]
    %v4666 = vld [vmem:[#allocation7 + $0x660] sm:$0xff]
    %v4667 = vld [vmem:[#allocation7 + $0x668] sm:$0xff]
    %v4668 = vld [vmem:[#allocation7 + $0x670] sm:$0xff]
    %v4669 = vld [vmem:[#allocation7 + $0x678] sm:$0xff]
    %v4670 = vld [vmem:[#allocation7 + $0x6e0] sm:$0xff]
    %v4671 = vld [vmem:[#allocation7 + $0x6e8] sm:$0xff]
    %v4672 = vld [vmem:[#allocation7 + $0x6f0] sm:$0xff]
    %v4673 = vld [vmem:[#allocation7 + $0x6f8] sm:$0xff]
    %v4674 = vld [vmem:[#allocation7 + $0x760] sm:$0xff]
    %v4675 = vld [vmem:[#allocation7 + $0x768] sm:$0xff]
    %v4676 = vld [vmem:[#allocation7 + $0x770] sm:$0xff]
    %v4677 = vld [vmem:[#allocation7 + $0x778] sm:$0xff]
    %v4678 = vld [vmem:[#allocation7 + $0x7e0] sm:$0xff]
    %v4679 = vld [vmem:[#allocation7 + $0x7e8] sm:$0xff]
    %v4680 = vld [vmem:[#allocation7 + $0x7f0] sm:$0xff]
    %v4681 = vld [vmem:[#allocation7 + $0x7f8] sm:$0xff]
    %v4682 = vld [vmem:[#allocation7 + $0x860] sm:$0xff]
    %v4683 = vld [vmem:[#allocation7 + $0x868] sm:$0xff]
    %v4684 = vld [vmem:[#allocation7 + $0x870] sm:$0xff]
    %v4685 = vld [vmem:[#allocation7 + $0x878] sm:$0xff]
    %v4686 = vld [vmem:[#allocation7 + $0x8e0] sm:$0xff]
    %v4687 = vld [vmem:[#allocation7 + $0x8e8] sm:$0xff]
    %v4688 = vld [vmem:[#allocation7 + $0x8f0] sm:$0xff]
    %v4689 = vld [vmem:[#allocation7 + $0x8f8] sm:$0xff]
    %v4690 = vld [vmem:[#allocation7 + $0x960] sm:$0xff]
    %v4691 = vld [vmem:[#allocation7 + $0x968] sm:$0xff]
    %v4692 = vld [vmem:[#allocation7 + $0x970] sm:$0xff]
    %v4693 = vld [vmem:[#allocation7 + $0x978] sm:$0xff]
    %v4694 = vld [vmem:[#allocation7 + $0x9e0] sm:$0xff]
    %v4695 = vld [vmem:[#allocation7 + $0x9e8] sm:$0xff]
    %v4696 = vld [vmem:[#allocation7 + $0x9f0] sm:$0xff]
    %v4697 = vld [vmem:[#allocation7 + $0x9f8] sm:$0xff]
    %v4698 = vld [vmem:[#allocation7 + $0xa60] sm:$0xff]
    %v4699 = vld [vmem:[#allocation7 + $0xa68] sm:$0xff]
    %v4700 = vld [vmem:[#allocation7 + $0xa70] sm:$0xff]
    %v4701 = vld [vmem:[#allocation7 + $0xa78] sm:$0xff]
    %v4702 = vld [vmem:[#allocation7 + $0xae0] sm:$0xff]
    %v4703 = vld [vmem:[#allocation7 + $0xae8] sm:$0xff]
    %v4704 = vld [vmem:[#allocation7 + $0xaf0] sm:$0xff]
    %v4705 = vld [vmem:[#allocation7 + $0xaf8] sm:$0xff]
    %v4706 = vld [vmem:[#allocation7 + $0xb60] sm:$0xff]
    %v4707 = vld [vmem:[#allocation7 + $0xb68] sm:$0xff]
    %v4708 = vld [vmem:[#allocation7 + $0xb70] sm:$0xff]
    %v4709 = vld [vmem:[#allocation7 + $0xb78] sm:$0xff]
    %v4710 = vld [vmem:[#allocation7 + $0xbe0] sm:$0xff]
    %v4711 = vld [vmem:[#allocation7 + $0xbe8] sm:$0xff]
    %v4712 = vld [vmem:[#allocation7 + $0xbf0] sm:$0xff]
    %v4713 = vld [vmem:[#allocation7 + $0xbf8] sm:$0xff]
    %v4714 = vld [vmem:[#allocation7 + $0xc60] sm:$0xff]
    %v4715 = vld [vmem:[#allocation7 + $0xc68] sm:$0xff]
    %v4716 = vld [vmem:[#allocation7 + $0xc70] sm:$0xff]
    %v4717 = vld [vmem:[#allocation7 + $0xc78] sm:$0xff]
    %v4718 = vld [vmem:[#allocation7 + $0xce0] sm:$0xff]
    %v4719 = vld [vmem:[#allocation7 + $0xce8] sm:$0xff]
    %v4720 = vld [vmem:[#allocation7 + $0xcf0] sm:$0xff]
    %v4721 = vld [vmem:[#allocation7 + $0xcf8] sm:$0xff]
    %v4722 = vld [vmem:[#allocation7 + $0xd60] sm:$0xff]
    %v4723 = vld [vmem:[#allocation7 + $0xd68] sm:$0xff]
    %v4724 = vld [vmem:[#allocation7 + $0xd70] sm:$0xff]
    %v4725 = vld [vmem:[#allocation7 + $0xd78] sm:$0xff]
    %v4726 = vld [vmem:[#allocation7 + $0xde0] sm:$0xff]
    %v4727 = vld [vmem:[#allocation7 + $0xde8] sm:$0xff]
    %v4728 = vld [vmem:[#allocation7 + $0xdf0] sm:$0xff]
    %v4729 = vld [vmem:[#allocation7 + $0xdf8] sm:$0xff]
    %v4730 = vld [vmem:[#allocation7 + $0xe60] sm:$0xff]
    %v4731 = vld [vmem:[#allocation7 + $0xe68] sm:$0xff]
    %v4732 = vld [vmem:[#allocation7 + $0xe70] sm:$0xff]
    %v4733 = vld [vmem:[#allocation7 + $0xe78] sm:$0xff]
    %v4734 = vld [vmem:[#allocation7 + $0xee0] sm:$0xff]
    %v4735 = vld [vmem:[#allocation7 + $0xee8] sm:$0xff]
    %v4736 = vld [vmem:[#allocation7 + $0xef0] sm:$0xff]
    %v4737 = vld [vmem:[#allocation7 + $0xef8] sm:$0xff]
    %v4738 = vld [vmem:[#allocation7 + $0xf60] sm:$0xff]
    %v4739 = vld [vmem:[#allocation7 + $0xf68] sm:$0xff]
    %v4740 = vld [vmem:[#allocation7 + $0xf70] sm:$0xff]
    %v4741 = vld [vmem:[#allocation7 + $0xf78] sm:$0xff]
    %v4742 = vld [vmem:[#allocation7 + $0xfe0] sm:$0xff]
    %v4743 = vld [vmem:[#allocation7 + $0xfe8] sm:$0xff]
    %v4744 = vld [vmem:[#allocation7 + $0xff0] sm:$0xff]
    %v4745 = vld [vmem:[#allocation7 + $0xff8] sm:$0xff]
    %v4746 = vld [vmem:[#allocation8 + $0x17] sm:$0xf]
    %v4748 = vlaneseq
    %v4749 = vshrl.u32 %v4748, 7
    %v4750 = vsub.s32 0, %v4749
    %v4751 = vrot.slane %v4746, %v4750
    %v4752 = vlaneseq
    %v4753 = vshrl.u32 %v4752, 7
    %v4754 = vsub.s32 1, %v4753
    %v4755 = vrot.slane %v4746, %v4754
    %v4756 = vlaneseq
    %v4757 = vshrl.u32 %v4756, 7
    %v4758 = vsub.s32 2, %v4757
    %v4759 = vrot.slane %v4746, %v4758
    %v4760 = vlaneseq
    %v4761 = vshrl.u32 %v4760, 7
    %v4762 = vsub.s32 3, %v4761
    %v4763 = vrot.slane %v4746, %v4762
    %4768 = vmatprep.subr.mxu0 %v4619
    %4769 = vmatpush1.msra.mxu0 %v4618
    %4770 = vmatprep.subr.mxu0 %v4623
    %4771 = vmatpush1.msra.mxu0 %v4622
    %4772 = vmatprep.subr.mxu0 %v4627
    %4773 = vmatpush1.msra.mxu0 %v4626
    %4774 = vmatprep.subr.mxu0 %v4631
    %4775 = vmatpush1.msra.mxu0 %v4630
    %4776 = vmatprep.subr.mxu0 %v4635
    %4777 = vmatpush1.msra.mxu0 %v4634
    %4778 = vmatprep.subr.mxu0 %v4639
    %4779 = vmatpush1.msra.mxu0 %v4638
    %4780 = vmatprep.subr.mxu0 %v4643
    %4781 = vmatpush1.msra.mxu0 %v4642
    %4782 = vmatprep.subr.mxu0 %v4647
    %4783 = vmatpush1.msra.mxu0 %v4646
    %4784 = vmatprep.subr.mxu0 %v4651
    %4785 = vmatpush1.msra.mxu0 %v4650
    %4786 = vmatprep.subr.mxu0 %v4655
    %4787 = vmatpush1.msra.mxu0 %v4654
    %4788 = vmatprep.subr.mxu0 %v4659
    %4789 = vmatpush1.msra.mxu0 %v4658
    %4790 = vmatprep.subr.mxu0 %v4663
    %4791 = vmatpush1.msra.mxu0 %v4662
    %4792 = vmatprep.subr.mxu0 %v4667
    %4793 = vmatpush1.msra.mxu0 %v4666
    %4794 = vmatprep.subr.mxu0 %v4671
    %4795 = vmatpush1.msra.mxu0 %v4670
    %4796 = vmatprep.subr.mxu0 %v4675
    %4797 = vmatpush1.msra.mxu0 %v4674
    %4798 = vmatprep.subr.mxu0 %v4679
    %4799 = vmatpush1.msra.mxu0 %v4678
    %4800 = vmatprep.subr.mxu0 %v4683
    %4801 = vmatpush1.msra.mxu0 %v4682
    %4802 = vmatprep.subr.mxu0 %v4687
    %4803 = vmatpush1.msra.mxu0 %v4686
    %4804 = vmatprep.subr.mxu0 %v4691
    %4805 = vmatpush1.msra.mxu0 %v4690
    %4806 = vmatprep.subr.mxu0 %v4695
    %4807 = vmatpush1.msra.mxu0 %v4694
    %4808 = vmatprep.subr.mxu0 %v4699
    %4809 = vmatpush1.msra.mxu0 %v4698
    %4810 = vmatprep.subr.mxu0 %v4703
    %4811 = vmatpush1.msra.mxu0 %v4702
    %4812 = vmatprep.subr.mxu0 %v4707
    %4813 = vmatpush1.msra.mxu0 %v4706
    %4814 = vmatprep.subr.mxu0 %v4711
    %4815 = vmatpush1.msra.mxu0 %v4710
    %4816 = vmatprep.subr.mxu0 %v4715
    %4817 = vmatpush1.msra.mxu0 %v4714
    %4818 = vmatprep.subr.mxu0 %v4719
    %4819 = vmatpush1.msra.mxu0 %v4718
    %4820 = vmatprep.subr.mxu0 %v4723
    %4821 = vmatpush1.msra.mxu0 %v4722
    %4822 = vmatprep.subr.mxu0 %v4727
    %4823 = vmatpush1.msra.mxu0 %v4726
    %4824 = vmatprep.subr.mxu0 %v4731
    %4825 = vmatpush1.msra.mxu0 %v4730
    %4826 = vmatprep.subr.mxu0 %v4735
    %4827 = vmatpush1.msra.mxu0 %v4734
    %4828 = vmatprep.subr.mxu0 %v4739
    %4829 = vmatpush1.msra.mxu0 %v4738
    %4830 = vmatprep.subr.mxu0 %v4743
    %4831 = vmatpush1.msra.mxu0 %v4742
    %4832 = vmatprep.mubr.f32.mxu0 %v4479
    %4833 = vmatmul.mubr.f32.gmra.mrb[0].mxu0 %v4617
    %v4834 = vpop.f32.mrb[0].mxu0
    %v4835 = vadd.f32 %v4751, %v4834
    %v4836 = vpop.f32.mrb[0].mxu0
    %v4837 = vadd.f32 %v4755, %v4836
    %4838 = vdwg.mxu0
    %4839 = vmatprep.subr.mxu0 %v4621
    %4840 = vmatpush1.msra.mxu0 %v4620
    %4841 = vmatprep.subr.mxu0 %v4625
    %4842 = vmatpush1.msra.mxu0 %v4624
    %4843 = vmatprep.subr.mxu0 %v4629
    %4844 = vmatpush1.msra.mxu0 %v4628
    %4845 = vmatprep.subr.mxu0 %v4633
    %4846 = vmatpush1.msra.mxu0 %v4632
    %4847 = vmatprep.subr.mxu0 %v4637
    %4848 = vmatpush1.msra.mxu0 %v4636
    %4849 = vmatprep.subr.mxu0 %v4641
    %4850 = vmatpush1.msra.mxu0 %v4640
    %4851 = vmatprep.subr.mxu0 %v4645
    %4852 = vmatpush1.msra.mxu0 %v4644
    %4853 = vmatprep.subr.mxu0 %v4649
    %4854 = vmatpush1.msra.mxu0 %v4648
    %4855 = vmatprep.subr.mxu0 %v4653
    %4856 = vmatpush1.msra.mxu0 %v4652
    %4857 = vmatprep.subr.mxu0 %v4657
    %4858 = vmatpush1.msra.mxu0 %v4656
    %4859 = vmatprep.subr.mxu0 %v4661
    %4860 = vmatpush1.msra.mxu0 %v4660
    %4861 = vmatprep.subr.mxu0 %v4665
    %4862 = vmatpush1.msra.mxu0 %v4664
    %4863 = vmatprep.subr.mxu0 %v4669
    %4864 = vmatpush1.msra.mxu0 %v4668
    %4865 = vmatprep.subr.mxu0 %v4673
    %4866 = vmatpush1.msra.mxu0 %v4672
    %4867 = vmatprep.subr.mxu0 %v4677
    %4868 = vmatpush1.msra.mxu0 %v4676
    %4869 = vmatprep.subr.mxu0 %v4681
    %4870 = vmatpush1.msra.mxu0 %v4680
    %4871 = vmatprep.subr.mxu0 %v4685
    %4872 = vmatpush1.msra.mxu0 %v4684
    %4873 = vmatprep.subr.mxu0 %v4689
    %4874 = vmatpush1.msra.mxu0 %v4688
    %4875 = vmatprep.subr.mxu0 %v4693
    %4876 = vmatpush1.msra.mxu0 %v4692
    %4877 = vmatprep.subr.mxu0 %v4697
    %4878 = vmatpush1.msra.mxu0 %v4696
    %4879 = vmatprep.subr.mxu0 %v4701
    %4880 = vmatpush1.msra.mxu0 %v4700
    %4881 = vmatprep.subr.mxu0 %v4705
    %4882 = vmatpush1.msra.mxu0 %v4704
    %4883 = vmatprep.subr.mxu0 %v4709
    %4884 = vmatpush1.msra.mxu0 %v4708
    %4885 = vmatprep.subr.mxu0 %v4713
    %4886 = vmatpush1.msra.mxu0 %v4712
    %4887 = vmatprep.subr.mxu0 %v4717
    %4888 = vmatpush1.msra.mxu0 %v4716
    %4889 = vmatprep.subr.mxu0 %v4721
    %4890 = vmatpush1.msra.mxu0 %v4720
    %4891 = vmatprep.subr.mxu0 %v4725
    %4892 = vmatpush1.msra.mxu0 %v4724
    %4893 = vmatprep.subr.mxu0 %v4729
    %4894 = vmatpush1.msra.mxu0 %v4728
    %4895 = vmatprep.subr.mxu0 %v4733
    %4896 = vmatpush1.msra.mxu0 %v4732
    %4897 = vmatprep.subr.mxu0 %v4737
    %4898 = vmatpush1.msra.mxu0 %v4736
    %4899 = vmatprep.subr.mxu0 %v4741
    %4900 = vmatpush1.msra.mxu0 %v4740
    %4901 = vmatprep.subr.mxu0 %v4745
    %4902 = vmatpush1.msra.mxu0 %v4744
    %4903 = vmatprep.mubr.f32.mxu0 %v4479
    %4904 = vmatmul.mubr.f32.gmra.mrb[0].mxu0 %v4617
    %v4905 = vpop.f32.mrb[0].mxu0
    %v4906 = vadd.f32 %v4759, %v4905
    %v4907 = vpop.f32.mrb[0].mxu0
    %v4908 = vadd.f32 %v4763, %v4907
    %4909 = vdwg.mxu0
    %v4910 = vmul.f32 %v4835, 0.5
    %v4911 = vtanh.pop %v4910
    %v4912 = vadd.f32 %v4911, 1.0
    %v4913 = vmul.f32 %v4912, 0.5
    %v4914 = vmul.f32 %v4837, 0.5
    %v4915 = vtanh.pop %v4914
    %v4916 = vadd.f32 %v4915, 1.0
    %v4917 = vmul.f32 %v4916, 0.5
    %v4918 = vmul.f32 %v4913, %v4908
    %v4919 = vadd.f32 %v4906, %v4918
    %v4920 = vtanh.pop %v4919
    %v4921 = vsub.f32 1.0, %v4917
    %v4922 = vmul.f32 %v4921, %v4920
    %v4923 = vmul.f32 %v4917, %v4479
    %v4924 = vadd.f32 %v4922, %v4923
    %v4925 = vmax.f32 %v4924, 0.0
    %v4926 = vld [vmem:[#allocation5 + $0x60] sm:$0xff]
    %v4927 = vld [vmem:[#allocation5 + $0xc8] sm:$0xff]
    %v4928 = vld [vmem:[#allocation5 + $0x130] sm:$0xff]
    %v4929 = vld [vmem:[#allocation5 + $0x198] sm:$0xff]
    %v4930 = vld [vmem:[#allocation5 + $0x200] sm:$0xff]
    %v4931 = vld [vmem:[#allocation5 + $0x268] sm:$0xff]
    %v4932 = vld [vmem:[#allocation5 + $0x2d0] sm:$0xff]
    %v4933 = vld [vmem:[#allocation5 + $0x338] sm:$0xff]
    %v4934 = vld [vmem:[#allocation5 + $0x3a0] sm:$0xff]
    %v4935 = vld [vmem:[#allocation5 + $0x408] sm:$0xff]
    %v4936 = vld [vmem:[#allocation5 + $0x470] sm:$0xff]
    %v4937 = vld [vmem:[#allocation5 + $0x4d8] sm:$0xff]
    %v4938 = vld [vmem:[#allocation5 + $0x540] sm:$0xff]
    %v4939 = vld [vmem:[#allocation5 + $0x5a8] sm:$0xff]
    %v4940 = vld [vmem:[#allocation5 + $0x610] sm:$0xff]
    %v4941 = vld [vmem:[#allocation5 + $0x678] sm:$0xff]
    %v4942 = vld [vmem:[#allocation8 + $0x1b] sm:$0x1]
    %4943 = vmatprep.subr.mxu0 0.0
    %4944 = vmatpush1.msra.mxu0 %v4926
    %4945 = vmatprep.subr.mxu0 0.0
    %4946 = vmatpush1.msra.mxu0 %v4927
    %4947 = vmatprep.subr.mxu0 0.0
    %4948 = vmatpush1.msra.mxu0 %v4928
    %4949 = vmatprep.subr.mxu0 0.0
    %4950 = vmatpush1.msra.mxu0 %v4929
    %4951 = vmatprep.subr.mxu0 0.0
    %4952 = vmatpush1.msra.mxu0 %v4930
    %4953 = vmatprep.subr.mxu0 0.0
    %4954 = vmatpush1.msra.mxu0 %v4931
    %4955 = vmatprep.subr.mxu0 0.0
    %4956 = vmatpush1.msra.mxu0 %v4932
    %4957 = vmatprep.subr.mxu0 0.0
    %4958 = vmatpush1.msra.mxu0 %v4933
    %4959 = vmatprep.subr.mxu0 0.0
    %4960 = vmatpush1.msra.mxu0 %v4934
    %4961 = vmatprep.subr.mxu0 0.0
    %4962 = vmatpush1.msra.mxu0 %v4935
    %4963 = vmatprep.subr.mxu0 0.0
    %4964 = vmatpush1.msra.mxu0 %v4936
    %4965 = vmatprep.subr.mxu0 0.0
    %4966 = vmatpush1.msra.mxu0 %v4937
    %4967 = vmatprep.subr.mxu0 0.0
    %4968 = vmatpush1.msra.mxu0 %v4938
    %4969 = vmatprep.subr.mxu0 0.0
    %4970 = vmatpush1.msra.mxu0 %v4939
    %4971 = vmatprep.subr.mxu0 0.0
    %4972 = vmatpush1.msra.mxu0 %v4940
    %4973 = vmatprep.subr.mxu0 0.0
    %4974 = vmatpush1.msra.mxu0 %v4941
    %4975 = vmatprep.subr.mxu0 0.0
    %4976 = vmatpush1.msra.mxu0 0.0
    %4977 = vmatprep.subr.mxu0 0.0
    %4978 = vmatpush1.msra.mxu0 0.0
    %4979 = vmatprep.subr.mxu0 0.0
    %4980 = vmatpush1.msra.mxu0 0.0
    %4981 = vmatprep.subr.mxu0 0.0
    %4982 = vmatpush1.msra.mxu0 0.0
    %4983 = vmatprep.subr.mxu0 0.0
    %4984 = vmatpush1.msra.mxu0 0.0
    %4985 = vmatprep.subr.mxu0 0.0
    %4986 = vmatpush1.msra.mxu0 0.0
    %4987 = vmatprep.subr.mxu0 0.0
    %4988 = vmatpush1.msra.mxu0 0.0
    %4989 = vmatprep.subr.mxu0 0.0
    %4990 = vmatpush1.msra.mxu0 0.0
    %4991 = vmatprep.subr.mxu0 0.0
    %4992 = vmatpush1.msra.mxu0 0.0
    %4993 = vmatprep.subr.mxu0 0.0
    %4994 = vmatpush1.msra.mxu0 0.0
    %4995 = vmatprep.subr.mxu0 0.0
    %4996 = vmatpush1.msra.mxu0 0.0
    %4997 = vmatprep.subr.mxu0 0.0
    %4998 = vmatpush1.msra.mxu0 0.0
    %4999 = vmatprep.subr.mxu0 0.0
    %5000 = vmatpush1.msra.mxu0 0.0
    %5001 = vmatprep.subr.mxu0 0.0
    %5002 = vmatpush1.msra.mxu0 0.0
    %5003 = vmatprep.subr.mxu0 0.0
    %5004 = vmatpush1.msra.mxu0 0.0
    %5005 = vmatprep.subr.mxu0 0.0
    %5006 = vmatpush1.msra.mxu0 0.0
    %5007 = vmatprep.mubr.f32.mxu0 0.0
    %5008 = vmatmul.mubr.f32.gmra.mrb[0].mxu0 %v4925
    %v5009 = vpop.f32.mrb[0].mxu0
    %v5010 = vadd.f32 %v4942, %v5009
    %v5011 = vpop.f32.mrb[0].mxu0
    %5012 = vdwg.mxu0
    %5013 = vst [vmem:[#allocation10] sm:$0x1] %v5010
    // Predicated region
    $region46: #{tpu_custom_call.1} parent=1 // pred_check
      _
    $region47: #{tpu_custom_call.1} parent=1 // pred_check_branch
      %5015 = sbr.rel (0) target = $region49
    $region48: #{tpu_custom_call.1} parent=1 // pred_region
      %s5017 = ssub.s32 16, 16
      %5018 = vsyncadd [#allocation4], %s5017
      %s5020 = sshll.u32 [#allocation10], 4
      %s5021 = int_to_ptr.vmem [resolvable:$true] %s5020
      %5023 = dma.vmem_to_hbm [thread:$0]  %s5021, 16, %s7, [#allocation4]
    $region49: #{tpu_custom_call.1} parent=1 // pred_fallthru
      _
    // Predicated region
    $region50: #{tpu_custom_call.1} parent=1 // pred_check
      _
    $region51: #{tpu_custom_call.1} parent=1 // pred_check_branch
      %5025 = sbr.rel (0) target = $region53
    $region52: #{tpu_custom_call.1} parent=1 // pred_region
      %5026 = dma.done [#allocation4], 16
    $region53: #{tpu_custom_call.1} parent=1 // pred_fallthru
      _
    %5027 = vsyncpa [#allocation3], 1
    %5028 = vsyncpa [#allocation6], 1
    %5029 = vsyncpa [#allocation9], 1
    %5030 = vsyncpa [#allocation4], 1

</llo_original>
